<compile_context>
chip_gen: v5e
topology: v5e:2x2
jax: 0.10.0
libtpu: 0.0.40
codegen_flags: <defaults>
</compile_context>

<pallas_src>
import functools
import math

import numpy as np
import jax
import jax.numpy as jnp
from jax import lax
from jax.experimental import pallas as pl
from jax.experimental.pallas import tpu as pltpu

COMPUTE_DTYPE = jnp.bfloat16   # MXU operand dtype (accumulation stays f32)


# ----------------------------------------------------------------------------
# Kernel 1: linear + bias + LeakyReLU(0.2)   (lane-dense N = 1568)
# ----------------------------------------------------------------------------
def _linear_leaky_kernel(z_ref, w_ref, b_ref, o_ref):
    y = jnp.dot(z_ref[...], w_ref[...], preferred_element_type=jnp.float32)
    y = y + b_ref[...]                       # (1, N) broadcasts, f32 epilogue
    y = jnp.where(y > 0, y, 0.2 * y)         # LeakyReLU(0.2)
    o_ref[...] = y.astype(o_ref.dtype)


def linear_leaky(z, w, b):
    """z: (B, K) @ w: (K, N) + b, LeakyReLU fused.  Returns (B, N) bf16."""
    B, K = z.shape
    N = w.shape[1]
    bm = B if B <= 256 else 256              # batch-tile rows (M)
    bp = -(-B // bm) * bm
    if bp != B:
        z = jnp.pad(z, ((0, bp - B), (0, 0)))
    out = pl.pallas_call(
        _linear_leaky_kernel,
        out_shape=jax.ShapeDtypeStruct((bp, N), COMPUTE_DTYPE),
        grid_spec=pltpu.PrefetchScalarGridSpec(
            num_scalar_prefetch=0,
            grid=(bp // bm,),
            in_specs=[
                pl.BlockSpec((bm, K), lambda i: (i, 0)),
                pl.BlockSpec((K, N), lambda i: (0, 0)),
                pl.BlockSpec((1, N), lambda i: (0, 0)),
            ],
            out_specs=pl.BlockSpec((bm, N), lambda i: (i, 0)),
        ),
        compiler_params=pltpu.CompilerParams(
            dimension_semantics=("parallel",)),
    )(z.astype(COMPUTE_DTYPE), w.astype(COMPUTE_DTYPE),
      b.reshape(1, N).astype(jnp.float32))
    return out[:B]


# ----------------------------------------------------------------------------
# Kernel 2: fused upsample -> conv1 -> upsample -> conv2 -> conv3 -> sigmoid
# ----------------------------------------------------------------------------
def _conv_stack_kernel(x_ref, u1_ref, u2_ref, w1_ref, w2_ref, w3_ref,
                       b1_ref, b2_ref, b3_ref, valid_ref, o_ref,
                       pad1_ref, pad2_ref, pad3_ref, *, images_per_step):
    def leaky(v):
        return jnp.where(v > 0, v, 0.2 * v)

    def conv3x3(pad_ref, w_ref, stride, out_len):
        # 9 shifted-window reads, each an accumulating (Cout,Cin)@(Cin,out_len)
        # bf16 MXU dot with f32 accumulation (in-kernel im2col).
        cout = w_ref.shape[1]
        acc = jnp.zeros((cout, out_len), jnp.float32)
        for dy in range(3):
            for dx in range(3):
                t = dy * 3 + dx
                s = dy * stride + dx
                acc = acc + jnp.dot(w_ref[t], pad_ref[:, s:s + out_len],
                                    preferred_element_type=jnp.float32)
        return acc

    for i in range(images_per_step):
        x0 = x_ref[0, i]                                         # (32, 49) bf16

        # upsample 7x7 -> 14x14 + zero borders, fused into a one-hot matmul
        pad1_ref[...] = jnp.dot(
            x0, u1_ref[...], preferred_element_type=jnp.float32
        ).astype(pad1_ref.dtype)                                 # (32, 258)

        # conv1 3x3 (32 -> 16) + bias + LeakyReLU      -> (16, 224)
        c1 = leaky(conv3x3(pad1_ref, w1_ref, 16, 224) + b1_ref[...])

        # upsample 14x14 -> 28x28 + zero borders (one-hot matmul)
        pad2_ref[...] = jnp.dot(
            c1.astype(u2_ref.dtype), u2_ref[...],
            preferred_element_type=jnp.float32,
        ).astype(pad2_ref.dtype)                                 # (16, 964)

        # conv2 3x3 (16 -> 8) + bias + LeakyReLU, computed directly in conv3's
        # padded layout; valid_ref zeroes the border / pad-column positions.
        c2 = leaky(conv3x3(pad2_ref, w2_ref, 30, 902) + b2_ref[...])
        c2 = c2 * valid_ref[...]                                 # (8, 902)
        pad3_ref[...] = c2.astype(pad3_ref.dtype)

        # conv3 3x3 (8 -> 1) + bias + sigmoid          -> (1, 840) lane-dense
        c3 = conv3x3(pad3_ref, w3_ref, 30, 840) + b3_ref[...]
        o_ref[0, i, :] = (1.0 / (1.0 + jnp.exp(-c3)))[0]


def conv_stack(x0, kp):
    """x0: (B, 32, 49) bf16 (channel-major linear output) -> (B, 840) f32."""
    B = x0.shape[0]
    bt = 1 if B <= 2 else 4                  # images per grid step
    g = -(-B // bt)
    bp = g * bt
    if bp != B:
        x0 = jnp.pad(x0, ((0, bp - B), (0, 0), (0, 0)))
    x0 = x0.reshape(g, bt, 32, 49)

    kern = functools.partial(_conv_stack_kernel, images_per_step=bt)
    out = pl.pallas_call(
        kern,
        out_shape=jax.ShapeDtypeStruct((g, bt, 840), jnp.float32),
        grid_spec=pltpu.PrefetchScalarGridSpec(
            num_scalar_prefetch=0,
            grid=(g,),
            in_specs=[
                pl.BlockSpec((1, bt, 32, 49), lambda i: (i, 0, 0, 0)),
                pl.BlockSpec((49, 258), lambda i: (0, 0)),       # U1 (up+pad)
                pl.BlockSpec((224, 964), lambda i: (0, 0)),      # U2 (up+pad)
                pl.BlockSpec((9, 16, 32), lambda i: (0, 0, 0)),  # conv1 taps
                pl.BlockSpec((9, 8, 16), lambda i: (0, 0, 0)),   # conv2 taps
                pl.BlockSpec((9, 1, 8), lambda i: (0, 0, 0)),    # conv3 taps
                pl.BlockSpec((16, 1), lambda i: (0, 0)),         # b1
                pl.BlockSpec((8, 1), lambda i: (0, 0)),          # b2
                pl.BlockSpec((1, 1), lambda i: (0, 0)),          # b3
                pl.BlockSpec((1, 902), lambda i: (0, 0)),        # valid mask
            ],
            out_specs=pl.BlockSpec((1, bt, 840), lambda i: (i, 0, 0)),
            scratch_shapes=[
                pltpu.VMEM((32, 258), COMPUTE_DTYPE),            # pad1
                pltpu.VMEM((16, 964), COMPUTE_DTYPE),            # pad2
                pltpu.VMEM((8, 902), COMPUTE_DTYPE),             # pad3
            ],
        ),
        compiler_params=pltpu.CompilerParams(
            dimension_semantics=("parallel",)),
    )(x0, kp["u1"], kp["u2"], kp["w1"], kp["w2"], kp["w3"],
      kp["b1"], kp["b2"], kp["b3"], kp["valid2"])
    return out.reshape(bp, 840)[:B]


# ----------------------------------------------------------------------------
# Host-side constants: one-hot upsample+pad matrices, validity mask, tap packs
# ----------------------------------------------------------------------------
def _build_geometry_constants():
    # upsample 7x7 (contiguous 49) -> pad1 (14x14, stride 16, lp 17, len 258)
    u1 = np.zeros((49, 258), np.float32)
    for yy in range(14):
        for xx in range(14):
            u1[(yy // 2) * 7 + (xx // 2), 17 + yy * 16 + xx] = 1.0
    # upsample c1 (14x14, stride 16, lp 0, len 224)
    #        -> pad2 (28x28, stride 30, lp 62, len 964)
    u2 = np.zeros((224, 964), np.float32)
    for yy in range(28):
        for xx in range(28):
            u2[(yy // 2) * 16 + (xx // 2), 62 + yy * 30 + xx] = 1.0
    # validity mask of conv2's output layout (stride 30, lp 31, len 902)
    valid = np.zeros((1, 902), np.float32)
    for yy in range(28):
        for xx in range(28):
            valid[0, 31 + yy * 30 + xx] = 1.0
    return u1, u2, valid


def prepare_params(params):
    """Rearrange PyTorch-style params into kernel-ready constants (once)."""
    u1, u2, valid = _build_geometry_constants()

    def taps(w):  # (Cout, Cin, 3, 3) -> (9, Cout, Cin), t = dy*3 + dx
        cout, cin = w.shape[0], w.shape[1]
        return jnp.transpose(w, (2, 3, 0, 1)).reshape(9, cout, cin).astype(COMPUTE_DTYPE)

    return {
        "w_lin": params["w_lin"].astype(COMPUTE_DTYPE),
        "b_lin": params["b_lin"].astype(jnp.float32),
        "w1": taps(params["w_c1"]), "b1": params["b_c1"].reshape(16, 1).astype(jnp.float32),
        "w2": taps(params["w_c2"]), "b2": params["b_c2"].reshape(8, 1).astype(jnp.float32),
        "w3": taps(params["w_c3"]), "b3": params["b_c3"].reshape(1, 1).astype(jnp.float32),
        "u1": jnp.asarray(u1, COMPUTE_DTYPE),
        "u2": jnp.asarray(u2, COMPUTE_DTYPE),
        "valid2": jnp.asarray(valid, jnp.float32),
    }


# ----------------------------------------------------------------------------
# Parameters (deterministic, kaiming-uniform-like; biases zero, as in GNet)
# ----------------------------------------------------------------------------
def kaiming_uniform(key, shape, fan_in):
    bound = math.sqrt(6.0 / fan_in)
    return jax.random.uniform(key, shape, jnp.float32, -bound, bound)


def init_gnet_params(key, zdim):
    k1, k2, k3, k4 = jax.random.split(key, 4)
    return {
        "w_lin": kaiming_uniform(k1, (zdim, 1568), fan_in=zdim),   # Linear W^T
        "b_lin": jnp.zeros((1568,), jnp.float32),
        "w_c1": kaiming_uniform(k2, (16, 32, 3, 3), fan_in=32 * 9),
        "b_c1": jnp.zeros((16,), jnp.float32),
        "w_c2": kaiming_uniform(k3, (8, 16, 3, 3), fan_in=16 * 9),
        "b_c2": jnp.zeros((8,), jnp.float32),
        "w_c3": kaiming_uniform(k4, (1, 8, 3, 3), fan_in=8 * 9),
        "b_c3": jnp.zeros((1,), jnp.float32),
    }


# ----------------------------------------------------------------------------
# GNet forward (Pallas) and pure-JAX reference
# ----------------------------------------------------------------------------
def gnet_forward(z, kp):
    B = z.shape[0]
    t = linear_leaky(z, kp["w_lin"], kp["b_lin"])       # (B, 1568) bf16
    x0 = t.reshape(B, 32, 49)                           # channel-major view of (B,32,7,7)
    flat = conv_stack(x0, kp)                           # (B, 840) f32 (28 rows x 30)
    img = flat.reshape(B, 28, 30)[:, :, :28]            # strip the 2 pad columns/row
    return img.reshape(B, 1, 28, 28)                    # NCHW, like PyTorch


def gnet_reference(z, params):
    """Pure-JAX f32 reference of the PyTorch GNet forward."""
    t = z @ params["w_lin"] + params["b_lin"]
    t = jnp.where(t > 0, t, 0.2 * t)
    x = t.reshape(-1, 32, 7, 7)

    def up2(v):
        return jnp.repeat(jnp.repeat(v, 2, axis=2), 2, axis=3)

    def conv(v, w, b):
        y = lax.conv_general_dilated(
            v, w, window_strides=(1, 1), padding=((1, 1), (1, 1)),
            dimension_numbers=("NCHW", "OIHW", "NCHW"))
        return y + b.reshape(1, -1, 1, 1)

    x = up2(x)
    x = conv(x, params["w_c1"], params["b_c1"]); x = jnp.where(x > 0, x, 0.2 * x)
    x = up2(x)
    x = conv(x, params["w_c2"], params["b_c2"]); x = jnp.where(x > 0, x, 0.2 * x)
    x = conv(x, params["w_c3"], params["b_c3"])
    return jax.nn.sigmoid(x)


# ----------------------------------------------------------------------------
if __name__ == "__main__":
    ZDIM = 64
    BATCH = 2

    key = jax.random.PRNGKey(0)
    kp_key, kz = jax.random.split(key)
    params = init_gnet_params(kp_key, ZDIM)
    kparams = prepare_params(params)
    z = jax.random.normal(kz, (BATCH, ZDIM), jnp.float32)

    out = jax.jit(gnet_forward)(z, kparams)
    out = jax.block_until_ready(out)

    assert out.shape == (BATCH, 1, 28, 28), out.shape
    assert out.dtype == jnp.float32
    assert bool(jnp.all(out >= 0.0)) and bool(jnp.all(out <= 1.0))

    # Numerical check vs f32 reference (bf16 MXU operands -> loose tolerance).
    ref = jax.block_until_ready(gnet_reference(z, params))
    max_err = float(jnp.max(jnp.abs(out - ref)))
    assert max_err < 1e-1, f"max abs error too large: {max_err}"

    print("KERNEL_OK")
</pallas_src>

<mosaic_0001>
module attributes {stable_mosaic.version = 11 : i64} {
  func.func @_linear_leaky_kernel(%arg0: i32, %arg1: memref<2x64xbf16, #tpu.memory_space<vmem>>, %arg2: memref<64x1568xbf16, #tpu.memory_space<vmem>>, %arg3: memref<1x1568xf32, #tpu.memory_space<vmem>>, %arg4: memref<2x1568xbf16, #tpu.memory_space<vmem>>) attributes {dimension_semantics = [#tpu.dimension_semantics<parallel>], iteration_bounds = array<i64: 1>, scalar_prefetch = 0 : i64, scratch_operands = 0 : i64, tpu.core_type = #tpu.core_type<tc>, window_params = [{transform_indices = @transform_0, window_bounds = array<i64: 2, 64>}, {pipeline_mode = #tpu.pipeline_mode<synchronous>, transform_indices = @transform_1, window_bounds = array<i64: 64, 1568>}, {pipeline_mode = #tpu.pipeline_mode<synchronous>, transform_indices = @transform_2, window_bounds = array<i64: 1, 1568>}, {transform_indices = @transform_3, window_bounds = array<i64: 2, 1568>}]} {
    %c0 = arith.constant 0 : index
    %c0_0 = arith.constant 0 : index
    %0 = vector.load %arg1[%c0, %c0_0] : memref<2x64xbf16, #tpu.memory_space<vmem>>, vector<2x64xbf16>
    %c0_1 = arith.constant 0 : index
    %c0_2 = arith.constant 0 : index
    %1 = vector.load %arg2[%c0_1, %c0_2] : memref<64x1568xbf16, #tpu.memory_space<vmem>>, vector<64x1568xbf16>
    %cst = arith.constant dense<0.000000e+00> : vector<2x1568xf32>
    %2 = tpu.matmul %0, %1, %cst {dimension_numbers = #tpu.dot_dimension_numbers<[1], [0], [0], [1], [0, 0, 1, 1], [], []>} : vector<2x64xbf16>, vector<64x1568xbf16>, vector<2x1568xf32> -> vector<2x1568xf32>
    %c0_3 = arith.constant 0 : index
    %c0_4 = arith.constant 0 : index
    %3 = vector.load %arg3[%c0_3, %c0_4] : memref<1x1568xf32, #tpu.memory_space<vmem>>, vector<1x1568xf32>
    %4 = vector.broadcast %3 : vector<1x1568xf32> to vector<2x1568xf32>
    %5 = arith.addf %2, %4 : vector<2x1568xf32>
    %cst_5 = arith.constant 0.000000e+00 : f32
    %6 = vector.broadcast %cst_5 : f32 to vector<2x1568xf32>
    %7 = arith.cmpf ogt, %5, %6 : vector<2x1568xf32>
    %cst_6 = arith.constant 2.000000e-01 : f32
    %8 = vector.broadcast %cst_6 : f32 to vector<2x1568xf32>
    %9 = arith.mulf %8, %5 : vector<2x1568xf32>
    %10 = arith.select %7, %5, %9 : vector<2x1568xi1>, vector<2x1568xf32>
    %11 = arith.truncf %10 : vector<2x1568xf32> to vector<2x1568xbf16>
    %c0_7 = arith.constant 0 : index
    %c0_8 = arith.constant 0 : index
    %12 = vector.load %arg4[%c0_7, %c0_8] : memref<2x1568xbf16, #tpu.memory_space<vmem>>, vector<2x1568xbf16>
    tpu.vector_store %arg4[%c0_7, %c0_8], %11 {strides = array<i32>} : memref<2x1568xbf16, #tpu.memory_space<vmem>>, vector<2x1568xbf16>,
    return
  }
  func.func @transform_0(%arg0: i32) -> (i32, i32) {
    %c0_i32 = arith.constant 0 : i32
    %c0_i32_0 = arith.constant 0 : i32
    return %arg0, %c0_i32 : i32, i32
  }
  func.func @transform_1(%arg0: i32) -> (i32, i32) {
    %c0_i32 = arith.constant 0 : i32
    %c0_i32_0 = arith.constant 0 : i32
    %c0_i32_1 = arith.constant 0 : i32
    return %c0_i32, %c0_i32_0 : i32, i32
  }
  func.func @transform_2(%arg0: i32) -> (i32, i32) {
    %c0_i32 = arith.constant 0 : i32
    %c0_i32_0 = arith.constant 0 : i32
    %c0_i32_1 = arith.constant 0 : i32
    return %c0_i32, %c0_i32_0 : i32, i32
  }
  func.func @transform_3(%arg0: i32) -> (i32, i32) {
    %c0_i32 = arith.constant 0 : i32
    %c0_i32_0 = arith.constant 0 : i32
    return %arg0, %c0_i32 : i32, i32
  }
}

module attributes {stable_mosaic.version = 11 : i64} {
  func.func @_conv_stack_kernel(%arg0: i32, %arg1: memref<1x1x32x49xbf16, #tpu.memory_space<vmem>>, %arg2: memref<49x258xbf16, #tpu.memory_space<vmem>>, %arg3: memref<224x964xbf16, #tpu.memory_space<vmem>>, %arg4: memref<9x16x32xbf16, #tpu.memory_space<vmem>>, %arg5: memref<9x8x16xbf16, #tpu.memory_space<vmem>>, %arg6: memref<9x1x8xbf16, #tpu.memory_space<vmem>>, %arg7: memref<16x1xf32, #tpu.memory_space<vmem>>, %arg8: memref<8x1xf32, #tpu.memory_space<vmem>>, %arg9: memref<1x1xf32, #tpu.memory_space<vmem>>, %arg10: memref<1x902xf32, #tpu.memory_space<vmem>>, %arg11: memref<1x1x840xf32, #tpu.memory_space<vmem>>, %arg12: memref<32x258xbf16, #tpu.memory_space<vmem>>, %arg13: memref<16x964xbf16, #tpu.memory_space<vmem>>, %arg14: memref<8x902xbf16, #tpu.memory_space<vmem>>) attributes {dimension_semantics = [#tpu.dimension_semantics<parallel>], iteration_bounds = array<i64: 2>, scalar_prefetch = 0 : i64, scratch_operands = 3 : i64, tpu.core_type = #tpu.core_type<tc>, window_params = [{transform_indices = @transform_0, window_bounds = array<i64: 1, 1, 32, 49>}, {pipeline_mode = #tpu.pipeline_mode<synchronous>, transform_indices = @transform_1, window_bounds = array<i64: 49, 258>}, {pipeline_mode = #tpu.pipeline_mode<synchronous>, transform_indices = @transform_2, window_bounds = array<i64: 224, 964>}, {pipeline_mode = #tpu.pipeline_mode<synchronous>, transform_indices = @transform_3, window_bounds = array<i64: 9, 16, 32>}, {pipeline_mode = #tpu.pipeline_mode<synchronous>, transform_indices = @transform_4, window_bounds = array<i64: 9, 8, 16>}, {pipeline_mode = #tpu.pipeline_mode<synchronous>, transform_indices = @transform_5, window_bounds = array<i64: 9, 1, 8>}, {pipeline_mode = #tpu.pipeline_mode<synchronous>, transform_indices = @transform_6, window_bounds = array<i64: 16, 1>}, {pipeline_mode = #tpu.pipeline_mode<synchronous>, transform_indices = @transform_7, window_bounds = array<i64: 8, 1>}, {pipeline_mode = #tpu.pipeline_mode<synchronous>, transform_indices = @transform_8, window_bounds = array<i64: 1, 1>}, {pipeline_mode = #tpu.pipeline_mode<synchronous>, transform_indices = @transform_9, window_bounds = array<i64: 1, 902>}, {transform_indices = @transform_10, window_bounds = array<i64: 1, 1, 840>}]} {
    %c0 = arith.constant 0 : index
    %c0_0 = arith.constant 0 : index
    %c0_1 = arith.constant 0 : index
    %c0_2 = arith.constant 0 : index
    %0 = vector.load %arg1[%c0, %c0_0, %c0_1, %c0_2] : memref<1x1x32x49xbf16, #tpu.memory_space<vmem>>, vector<1x1x32x49xbf16>
    %1 = vector.shape_cast %0 : vector<1x1x32x49xbf16> to vector<32x49xbf16>
    %c0_3 = arith.constant 0 : index
    %c0_4 = arith.constant 0 : index
    %2 = vector.load %arg2[%c0_3, %c0_4] : memref<49x258xbf16, #tpu.memory_space<vmem>>, vector<49x258xbf16>
    %cst = arith.constant dense<0.000000e+00> : vector<32x258xf32>
    %3 = tpu.matmul %1, %2, %cst {dimension_numbers = #tpu.dot_dimension_numbers<[1], [0], [0], [1], [0, 0, 1, 1], [], []>} : vector<32x49xbf16>, vector<49x258xbf16>, vector<32x258xf32> -> vector<32x258xf32>
    %4 = arith.truncf %3 : vector<32x258xf32> to vector<32x258xbf16>
    %c0_5 = arith.constant 0 : index
    %c0_6 = arith.constant 0 : index
    %5 = vector.load %arg12[%c0_5, %c0_6] : memref<32x258xbf16, #tpu.memory_space<vmem>>, vector<32x258xbf16>
    tpu.vector_store %arg12[%c0_5, %c0_6], %4 {strides = array<i32>} : memref<32x258xbf16, #tpu.memory_space<vmem>>, vector<32x258xbf16>,
    %cst_7 = arith.constant 0.000000e+00 : f32
    %6 = vector.broadcast %cst_7 : f32 to vector<16x224xf32>
    %c0_8 = arith.constant 0 : index
    %c0_9 = arith.constant 0 : index
    %c0_10 = arith.constant 0 : index
    %7 = vector.load %arg4[%c0_8, %c0_9, %c0_10] : memref<9x16x32xbf16, #tpu.memory_space<vmem>>, vector<1x16x32xbf16>
    %8 = vector.shape_cast %7 : vector<1x16x32xbf16> to vector<16x32xbf16>
    %c0_11 = arith.constant 0 : index
    %c0_12 = arith.constant 0 : index
    %9 = vector.load %arg12[%c0_11, %c0_12] : memref<32x258xbf16, #tpu.memory_space<vmem>>, vector<32x224xbf16>
    %cst_13 = arith.constant dense<0.000000e+00> : vector<16x224xf32>
    %10 = tpu.matmul %8, %9, %cst_13 {dimension_numbers = #tpu.dot_dimension_numbers<[1], [0], [0], [1], [0, 0, 1, 1], [], []>} : vector<16x32xbf16>, vector<32x224xbf16>, vector<16x224xf32> -> vector<16x224xf32>
    %11 = arith.addf %6, %10 : vector<16x224xf32>
    %c1 = arith.constant 1 : index
    %c0_14 = arith.constant 0 : index
    %c0_15 = arith.constant 0 : index
    %12 = vector.load %arg4[%c1, %c0_14, %c0_15] : memref<9x16x32xbf16, #tpu.memory_space<vmem>>, vector<1x16x32xbf16>
    %13 = vector.shape_cast %12 : vector<1x16x32xbf16> to vector<16x32xbf16>
    %c0_16 = arith.constant 0 : index
    %c1_17 = arith.constant 1 : index
    %14 = vector.load %arg12[%c0_16, %c1_17] : memref<32x258xbf16, #tpu.memory_space<vmem>>, vector<32x224xbf16>
    %cst_18 = arith.constant dense<0.000000e+00> : vector<16x224xf32>
    %15 = tpu.matmul %13, %14, %cst_18 {dimension_numbers = #tpu.dot_dimension_numbers<[1], [0], [0], [1], [0, 0, 1, 1], [], []>} : vector<16x32xbf16>, vector<32x224xbf16>, vector<16x224xf32> -> vector<16x224xf32>
    %16 = arith.addf %11, %15 : vector<16x224xf32>
    %c2 = arith.constant 2 : index
    %c0_19 = arith.constant 0 : index
    %c0_20 = arith.constant 0 : index
    %17 = vector.load %arg4[%c2, %c0_19, %c0_20] : memref<9x16x32xbf16, #tpu.memory_space<vmem>>, vector<1x16x32xbf16>
    %18 = vector.shape_cast %17 : vector<1x16x32xbf16> to vector<16x32xbf16>
    %c0_21 = arith.constant 0 : index
    %c2_22 = arith.constant 2 : index
    %19 = vector.load %arg12[%c0_21, %c2_22] : memref<32x258xbf16, #tpu.memory_space<vmem>>, vector<32x224xbf16>
    %cst_23 = arith.constant dense<0.000000e+00> : vector<16x224xf32>
    %20 = tpu.matmul %18, %19, %cst_23 {dimension_numbers = #tpu.dot_dimension_numbers<[1], [0], [0], [1], [0, 0, 1, 1], [], []>} : vector<16x32xbf16>, vector<32x224xbf16>, vector<16x224xf32> -> vector<16x224xf32>
    %21 = arith.addf %16, %20 : vector<16x224xf32>
    %c3 = arith.constant 3 : index
    %c0_24 = arith.constant 0 : index
    %c0_25 = arith.constant 0 : index
    %22 = vector.load %arg4[%c3, %c0_24, %c0_25] : memref<9x16x32xbf16, #tpu.memory_space<vmem>>, vector<1x16x32xbf16>
    %23 = vector.shape_cast %22 : vector<1x16x32xbf16> to vector<16x32xbf16>
    %c0_26 = arith.constant 0 : index
    %c16 = arith.constant 16 : index
    %24 = vector.load %arg12[%c0_26, %c16] : memref<32x258xbf16, #tpu.memory_space<vmem>>, vector<32x224xbf16>
    %cst_27 = arith.constant dense<0.000000e+00> : vector<16x224xf32>
    %25 = tpu.matmul %23, %24, %cst_27 {dimension_numbers = #tpu.dot_dimension_numbers<[1], [0], [0], [1], [0, 0, 1, 1], [], []>} : vector<16x32xbf16>, vector<32x224xbf16>, vector<16x224xf32> -> vector<16x224xf32>
    %26 = arith.addf %21, %25 : vector<16x224xf32>
    %c4 = arith.constant 4 : index
    %c0_28 = arith.constant 0 : index
    %c0_29 = arith.constant 0 : index
    %27 = vector.load %arg4[%c4, %c0_28, %c0_29] : memref<9x16x32xbf16, #tpu.memory_space<vmem>>, vector<1x16x32xbf16>
    %28 = vector.shape_cast %27 : vector<1x16x32xbf16> to vector<16x32xbf16>
    %c0_30 = arith.constant 0 : index
    %c17 = arith.constant 17 : index
    %29 = vector.load %arg12[%c0_30, %c17] : memref<32x258xbf16, #tpu.memory_space<vmem>>, vector<32x224xbf16>
    %cst_31 = arith.constant dense<0.000000e+00> : vector<16x224xf32>
    %30 = tpu.matmul %28, %29, %cst_31 {dimension_numbers = #tpu.dot_dimension_numbers<[1], [0], [0], [1], [0, 0, 1, 1], [], []>} : vector<16x32xbf16>, vector<32x224xbf16>, vector<16x224xf32> -> vector<16x224xf32>
    %31 = arith.addf %26, %30 : vector<16x224xf32>
    %c5 = arith.constant 5 : index
    %c0_32 = arith.constant 0 : index
    %c0_33 = arith.constant 0 : index
    %32 = vector.load %arg4[%c5, %c0_32, %c0_33] : memref<9x16x32xbf16, #tpu.memory_space<vmem>>, vector<1x16x32xbf16>
    %33 = vector.shape_cast %32 : vector<1x16x32xbf16> to vector<16x32xbf16>
    %c0_34 = arith.constant 0 : index
    %c18 = arith.constant 18 : index
    %34 = vector.load %arg12[%c0_34, %c18] : memref<32x258xbf16, #tpu.memory_space<vmem>>, vector<32x224xbf16>
    %cst_35 = arith.constant dense<0.000000e+00> : vector<16x224xf32>
    %35 = tpu.matmul %33, %34, %cst_35 {dimension_numbers = #tpu.dot_dimension_numbers<[1], [0], [0], [1], [0, 0, 1, 1], [], []>} : vector<16x32xbf16>, vector<32x224xbf16>, vector<16x224xf32> -> vector<16x224xf32>
    %36 = arith.addf %31, %35 : vector<16x224xf32>
    %c6 = arith.constant 6 : index
    %c0_36 = arith.constant 0 : index
    %c0_37 = arith.constant 0 : index
    %37 = vector.load %arg4[%c6, %c0_36, %c0_37] : memref<9x16x32xbf16, #tpu.memory_space<vmem>>, vector<1x16x32xbf16>
    %38 = vector.shape_cast %37 : vector<1x16x32xbf16> to vector<16x32xbf16>
    %c0_38 = arith.constant 0 : index
    %c32 = arith.constant 32 : index
    %39 = vector.load %arg12[%c0_38, %c32] : memref<32x258xbf16, #tpu.memory_space<vmem>>, vector<32x224xbf16>
    %cst_39 = arith.constant dense<0.000000e+00> : vector<16x224xf32>
    %40 = tpu.matmul %38, %39, %cst_39 {dimension_numbers = #tpu.dot_dimension_numbers<[1], [0], [0], [1], [0, 0, 1, 1], [], []>} : vector<16x32xbf16>, vector<32x224xbf16>, vector<16x224xf32> -> vector<16x224xf32>
    %41 = arith.addf %36, %40 : vector<16x224xf32>
    %c7 = arith.constant 7 : index
    %c0_40 = arith.constant 0 : index
    %c0_41 = arith.constant 0 : index
    %42 = vector.load %arg4[%c7, %c0_40, %c0_41] : memref<9x16x32xbf16, #tpu.memory_space<vmem>>, vector<1x16x32xbf16>
    %43 = vector.shape_cast %42 : vector<1x16x32xbf16> to vector<16x32xbf16>
    %c0_42 = arith.constant 0 : index
    %c33 = arith.constant 33 : index
    %44 = vector.load %arg12[%c0_42, %c33] : memref<32x258xbf16, #tpu.memory_space<vmem>>, vector<32x224xbf16>
    %cst_43 = arith.constant dense<0.000000e+00> : vector<16x224xf32>
    %45 = tpu.matmul %43, %44, %cst_43 {dimension_numbers = #tpu.dot_dimension_numbers<[1], [0], [0], [1], [0, 0, 1, 1], [], []>} : vector<16x32xbf16>, vector<32x224xbf16>, vector<16x224xf32> -> vector<16x224xf32>
    %46 = arith.addf %41, %45 : vector<16x224xf32>
    %c8 = arith.constant 8 : index
    %c0_44 = arith.constant 0 : index
    %c0_45 = arith.constant 0 : index
    %47 = vector.load %arg4[%c8, %c0_44, %c0_45] : memref<9x16x32xbf16, #tpu.memory_space<vmem>>, vector<1x16x32xbf16>
    %48 = vector.shape_cast %47 : vector<1x16x32xbf16> to vector<16x32xbf16>
    %c0_46 = arith.constant 0 : index
    %c34 = arith.constant 34 : index
    %49 = vector.load %arg12[%c0_46, %c34] : memref<32x258xbf16, #tpu.memory_space<vmem>>, vector<32x224xbf16>
    %cst_47 = arith.constant dense<0.000000e+00> : vector<16x224xf32>
    %50 = tpu.matmul %48, %49, %cst_47 {dimension_numbers = #tpu.dot_dimension_numbers<[1], [0], [0], [1], [0, 0, 1, 1], [], []>} : vector<16x32xbf16>, vector<32x224xbf16>, vector<16x224xf32> -> vector<16x224xf32>
    %51 = arith.addf %46, %50 : vector<16x224xf32>
    %c0_48 = arith.constant 0 : index
    %c0_49 = arith.constant 0 : index
    %52 = vector.load %arg7[%c0_48, %c0_49] : memref<16x1xf32, #tpu.memory_space<vmem>>, vector<16x1xf32>
    %53 = vector.broadcast %52 : vector<16x1xf32> to vector<16x224xf32>
    %54 = arith.addf %51, %53 : vector<16x224xf32>
    %cst_50 = arith.constant 0.000000e+00 : f32
    %55 = vector.broadcast %cst_50 : f32 to vector<16x224xf32>
    %56 = arith.cmpf ogt, %54, %55 : vector<16x224xf32>
    %cst_51 = arith.constant 2.000000e-01 : f32
    %57 = vector.broadcast %cst_51 : f32 to vector<16x224xf32>
    %58 = arith.mulf %57, %54 : vector<16x224xf32>
    %59 = arith.select %56, %54, %58 : vector<16x224xi1>, vector<16x224xf32>
    %60 = arith.truncf %59 : vector<16x224xf32> to vector<16x224xbf16>
    %c0_52 = arith.constant 0 : index
    %c0_53 = arith.constant 0 : index
    %61 = vector.load %arg3[%c0_52, %c0_53] : memref<224x964xbf16, #tpu.memory_space<vmem>>, vector<224x964xbf16>
    %cst_54 = arith.constant dense<0.000000e+00> : vector<16x964xf32>
    %62 = tpu.matmul %60, %61, %cst_54 {dimension_numbers = #tpu.dot_dimension_numbers<[1], [0], [0], [1], [0, 0, 1, 1], [], []>} : vector<16x224xbf16>, vector<224x964xbf16>, vector<16x964xf32> -> vector<16x964xf32>
    %63 = arith.truncf %62 : vector<16x964xf32> to vector<16x964xbf16>
    %c0_55 = arith.constant 0 : index
    %c0_56 = arith.constant 0 : index
    %64 = vector.load %arg13[%c0_55, %c0_56] : memref<16x964xbf16, #tpu.memory_space<vmem>>, vector<16x964xbf16>
    tpu.vector_store %arg13[%c0_55, %c0_56], %63 {strides = array<i32>} : memref<16x964xbf16, #tpu.memory_space<vmem>>, vector<16x964xbf16>,
    %cst_57 = arith.constant 0.000000e+00 : f32
    %65 = vector.broadcast %cst_57 : f32 to vector<8x902xf32>
    %c0_58 = arith.constant 0 : index
    %c0_59 = arith.constant 0 : index
    %c0_60 = arith.constant 0 : index
    %66 = vector.load %arg5[%c0_58, %c0_59, %c0_60] : memref<9x8x16xbf16, #tpu.memory_space<vmem>>, vector<1x8x16xbf16>
    %67 = vector.shape_cast %66 : vector<1x8x16xbf16> to vector<8x16xbf16>
    %c0_61 = arith.constant 0 : index
    %c0_62 = arith.constant 0 : index
    %68 = vector.load %arg13[%c0_61, %c0_62] : memref<16x964xbf16, #tpu.memory_space<vmem>>, vector<16x902xbf16>
    %cst_63 = arith.constant dense<0.000000e+00> : vector<8x902xf32>
    %69 = tpu.matmul %67, %68, %cst_63 {dimension_numbers = #tpu.dot_dimension_numbers<[1], [0], [0], [1], [0, 0, 1, 1], [], []>} : vector<8x16xbf16>, vector<16x902xbf16>, vector<8x902xf32> -> vector<8x902xf32>
    %70 = arith.addf %65, %69 : vector<8x902xf32>
    %c1_64 = arith.constant 1 : index
    %c0_65 = arith.constant 0 : index
    %c0_66 = arith.constant 0 : index
    %71 = vector.load %arg5[%c1_64, %c0_65, %c0_66] : memref<9x8x16xbf16, #tpu.memory_space<vmem>>, vector<1x8x16xbf16>
    %72 = vector.shape_cast %71 : vector<1x8x16xbf16> to vector<8x16xbf16>
    %c0_67 = arith.constant 0 : index
    %c1_68 = arith.constant 1 : index
    %73 = vector.load %arg13[%c0_67, %c1_68] : memref<16x964xbf16, #tpu.memory_space<vmem>>, vector<16x902xbf16>
    %cst_69 = arith.constant dense<0.000000e+00> : vector<8x902xf32>
    %74 = tpu.matmul %72, %73, %cst_69 {dimension_numbers = #tpu.dot_dimension_numbers<[1], [0], [0], [1], [0, 0, 1, 1], [], []>} : vector<8x16xbf16>, vector<16x902xbf16>, vector<8x902xf32> -> vector<8x902xf32>
    %75 = arith.addf %70, %74 : vector<8x902xf32>
    %c2_70 = arith.constant 2 : index
    %c0_71 = arith.constant 0 : index
    %c0_72 = arith.constant 0 : index
    %76 = vector.load %arg5[%c2_70, %c0_71, %c0_72] : memref<9x8x16xbf16, #tpu.memory_space<vmem>>, vector<1x8x16xbf16>
    %77 = vector.shape_cast %76 : vector<1x8x16xbf16> to vector<8x16xbf16>
    %c0_73 = arith.constant 0 : index
    %c2_74 = arith.constant 2 : index
    %78 = vector.load %arg13[%c0_73, %c2_74] : memref<16x964xbf16, #tpu.memory_space<vmem>>, vector<16x902xbf16>
    %cst_75 = arith.constant dense<0.000000e+00> : vector<8x902xf32>
    %79 = tpu.matmul %77, %78, %cst_75 {dimension_numbers = #tpu.dot_dimension_numbers<[1], [0], [0], [1], [0, 0, 1, 1], [], []>} : vector<8x16xbf16>, vector<16x902xbf16>, vector<8x902xf32> -> vector<8x902xf32>
    %80 = arith.addf %75, %79 : vector<8x902xf32>
    %c3_76 = arith.constant 3 : index
    %c0_77 = arith.constant 0 : index
    %c0_78 = arith.constant 0 : index
    %81 = vector.load %arg5[%c3_76, %c0_77, %c0_78] : memref<9x8x16xbf16, #tpu.memory_space<vmem>>, vector<1x8x16xbf16>
    %82 = vector.shape_cast %81 : vector<1x8x16xbf16> to vector<8x16xbf16>
    %c0_79 = arith.constant 0 : index
    %c30 = arith.constant 30 : index
    %83 = vector.load %arg13[%c0_79, %c30] : memref<16x964xbf16, #tpu.memory_space<vmem>>, vector<16x902xbf16>
    %cst_80 = arith.constant dense<0.000000e+00> : vector<8x902xf32>
    %84 = tpu.matmul %82, %83, %cst_80 {dimension_numbers = #tpu.dot_dimension_numbers<[1], [0], [0], [1], [0, 0, 1, 1], [], []>} : vector<8x16xbf16>, vector<16x902xbf16>, vector<8x902xf32> -> vector<8x902xf32>
    %85 = arith.addf %80, %84 : vector<8x902xf32>
    %c4_81 = arith.constant 4 : index
    %c0_82 = arith.constant 0 : index
    %c0_83 = arith.constant 0 : index
    %86 = vector.load %arg5[%c4_81, %c0_82, %c0_83] : memref<9x8x16xbf16, #tpu.memory_space<vmem>>, vector<1x8x16xbf16>
    %87 = vector.shape_cast %86 : vector<1x8x16xbf16> to vector<8x16xbf16>
    %c0_84 = arith.constant 0 : index
    %c31 = arith.constant 31 : index
    %88 = vector.load %arg13[%c0_84, %c31] : memref<16x964xbf16, #tpu.memory_space<vmem>>, vector<16x902xbf16>
    %cst_85 = arith.constant dense<0.000000e+00> : vector<8x902xf32>
    %89 = tpu.matmul %87, %88, %cst_85 {dimension_numbers = #tpu.dot_dimension_numbers<[1], [0], [0], [1], [0, 0, 1, 1], [], []>} : vector<8x16xbf16>, vector<16x902xbf16>, vector<8x902xf32> -> vector<8x902xf32>
    %90 = arith.addf %85, %89 : vector<8x902xf32>
    %c5_86 = arith.constant 5 : index
    %c0_87 = arith.constant 0 : index
    %c0_88 = arith.constant 0 : index
    %91 = vector.load %arg5[%c5_86, %c0_87, %c0_88] : memref<9x8x16xbf16, #tpu.memory_space<vmem>>, vector<1x8x16xbf16>
    %92 = vector.shape_cast %91 : vector<1x8x16xbf16> to vector<8x16xbf16>
    %c0_89 = arith.constant 0 : index
    %c32_90 = arith.constant 32 : index
    %93 = vector.load %arg13[%c0_89, %c32_90] : memref<16x964xbf16, #tpu.memory_space<vmem>>, vector<16x902xbf16>
    %cst_91 = arith.constant dense<0.000000e+00> : vector<8x902xf32>
    %94 = tpu.matmul %92, %93, %cst_91 {dimension_numbers = #tpu.dot_dimension_numbers<[1], [0], [0], [1], [0, 0, 1, 1], [], []>} : vector<8x16xbf16>, vector<16x902xbf16>, vector<8x902xf32> -> vector<8x902xf32>
    %95 = arith.addf %90, %94 : vector<8x902xf32>
    %c6_92 = arith.constant 6 : index
    %c0_93 = arith.constant 0 : index
    %c0_94 = arith.constant 0 : index
    %96 = vector.load %arg5[%c6_92, %c0_93, %c0_94] : memref<9x8x16xbf16, #tpu.memory_space<vmem>>, vector<1x8x16xbf16>
    %97 = vector.shape_cast %96 : vector<1x8x16xbf16> to vector<8x16xbf16>
    %c0_95 = arith.constant 0 : index
    %c60 = arith.constant 60 : index
    %98 = vector.load %arg13[%c0_95, %c60] : memref<16x964xbf16, #tpu.memory_space<vmem>>, vector<16x902xbf16>
    %cst_96 = arith.constant dense<0.000000e+00> : vector<8x902xf32>
    %99 = tpu.matmul %97, %98, %cst_96 {dimension_numbers = #tpu.dot_dimension_numbers<[1], [0], [0], [1], [0, 0, 1, 1], [], []>} : vector<8x16xbf16>, vector<16x902xbf16>, vector<8x902xf32> -> vector<8x902xf32>
    %100 = arith.addf %95, %99 : vector<8x902xf32>
    %c7_97 = arith.constant 7 : index
    %c0_98 = arith.constant 0 : index
    %c0_99 = arith.constant 0 : index
    %101 = vector.load %arg5[%c7_97, %c0_98, %c0_99] : memref<9x8x16xbf16, #tpu.memory_space<vmem>>, vector<1x8x16xbf16>
    %102 = vector.shape_cast %101 : vector<1x8x16xbf16> to vector<8x16xbf16>
    %c0_100 = arith.constant 0 : index
    %c61 = arith.constant 61 : index
    %103 = vector.load %arg13[%c0_100, %c61] : memref<16x964xbf16, #tpu.memory_space<vmem>>, vector<16x902xbf16>
    %cst_101 = arith.constant dense<0.000000e+00> : vector<8x902xf32>
    %104 = tpu.matmul %102, %103, %cst_101 {dimension_numbers = #tpu.dot_dimension_numbers<[1], [0], [0], [1], [0, 0, 1, 1], [], []>} : vector<8x16xbf16>, vector<16x902xbf16>, vector<8x902xf32> -> vector<8x902xf32>
    %105 = arith.addf %100, %104 : vector<8x902xf32>
    %c8_102 = arith.constant 8 : index
    %c0_103 = arith.constant 0 : index
    %c0_104 = arith.constant 0 : index
    %106 = vector.load %arg5[%c8_102, %c0_103, %c0_104] : memref<9x8x16xbf16, #tpu.memory_space<vmem>>, vector<1x8x16xbf16>
    %107 = vector.shape_cast %106 : vector<1x8x16xbf16> to vector<8x16xbf16>
    %c0_105 = arith.constant 0 : index
    %c62 = arith.constant 62 : index
    %108 = vector.load %arg13[%c0_105, %c62] : memref<16x964xbf16, #tpu.memory_space<vmem>>, vector<16x902xbf16>
    %cst_106 = arith.constant dense<0.000000e+00> : vector<8x902xf32>
    %109 = tpu.matmul %107, %108, %cst_106 {dimension_numbers = #tpu.dot_dimension_numbers<[1], [0], [0], [1], [0, 0, 1, 1], [], []>} : vector<8x16xbf16>, vector<16x902xbf16>, vector<8x902xf32> -> vector<8x902xf32>
    %110 = arith.addf %105, %109 : vector<8x902xf32>
    %c0_107 = arith.constant 0 : index
    %c0_108 = arith.constant 0 : index
    %111 = vector.load %arg8[%c0_107, %c0_108] : memref<8x1xf32, #tpu.memory_space<vmem>>, vector<8x1xf32>
    %112 = vector.broadcast %111 : vector<8x1xf32> to vector<8x902xf32>
    %113 = arith.addf %110, %112 : vector<8x902xf32>
    %cst_109 = arith.constant 0.000000e+00 : f32
    %114 = vector.broadcast %cst_109 : f32 to vector<8x902xf32>
    %115 = arith.cmpf ogt, %113, %114 : vector<8x902xf32>
    %cst_110 = arith.constant 2.000000e-01 : f32
    %116 = vector.broadcast %cst_110 : f32 to vector<8x902xf32>
    %117 = arith.mulf %116, %113 : vector<8x902xf32>
    %118 = arith.select %115, %113, %117 : vector<8x902xi1>, vector<8x902xf32>
    %c0_111 = arith.constant 0 : index
    %c0_112 = arith.constant 0 : index
    %119 = vector.load %arg10[%c0_111, %c0_112] : memref<1x902xf32, #tpu.memory_space<vmem>>, vector<1x902xf32>
    %120 = vector.broadcast %119 : vector<1x902xf32> to vector<8x902xf32>
    %121 = arith.mulf %118, %120 : vector<8x902xf32>
    %122 = arith.truncf %121 : vector<8x902xf32> to vector<8x902xbf16>
    %c0_113 = arith.constant 0 : index
    %c0_114 = arith.constant 0 : index
    %123 = vector.load %arg14[%c0_113, %c0_114] : memref<8x902xbf16, #tpu.memory_space<vmem>>, vector<8x902xbf16>
    tpu.vector_store %arg14[%c0_113, %c0_114], %122 {strides = array<i32>} : memref<8x902xbf16, #tpu.memory_space<vmem>>, vector<8x902xbf16>,
    %cst_115 = arith.constant 0.000000e+00 : f32
    %124 = vector.broadcast %cst_115 : f32 to vector<1x840xf32>
    %c0_116 = arith.constant 0 : index
    %c0_117 = arith.constant 0 : index
    %c0_118 = arith.constant 0 : index
    %125 = vector.load %arg6[%c0_116, %c0_117, %c0_118] : memref<9x1x8xbf16, #tpu.memory_space<vmem>>, vector<1x1x8xbf16>
    %126 = vector.shape_cast %125 : vector<1x1x8xbf16> to vector<1x8xbf16>
    %c0_119 = arith.constant 0 : index
    %c0_120 = arith.constant 0 : index
    %127 = vector.load %arg14[%c0_119, %c0_120] : memref<8x902xbf16, #tpu.memory_space<vmem>>, vector<8x840xbf16>
    %cst_121 = arith.constant dense<0.000000e+00> : vector<1x840xf32>
    %128 = tpu.matmul %126, %127, %cst_121 {dimension_numbers = #tpu.dot_dimension_numbers<[1], [0], [0], [1], [0, 0, 1, 1], [], []>} : vector<1x8xbf16>, vector<8x840xbf16>, vector<1x840xf32> -> vector<1x840xf32>
    %129 = arith.addf %124, %128 : vector<1x840xf32>
    %c1_122 = arith.constant 1 : index
    %c0_123 = arith.constant 0 : index
    %c0_124 = arith.constant 0 : index
    %130 = vector.load %arg6[%c1_122, %c0_123, %c0_124] : memref<9x1x8xbf16, #tpu.memory_space<vmem>>, vector<1x1x8xbf16>
    %131 = vector.shape_cast %130 : vector<1x1x8xbf16> to vector<1x8xbf16>
    %c0_125 = arith.constant 0 : index
    %c1_126 = arith.constant 1 : index
    %132 = vector.load %arg14[%c0_125, %c1_126] : memref<8x902xbf16, #tpu.memory_space<vmem>>, vector<8x840xbf16>
    %cst_127 = arith.constant dense<0.000000e+00> : vector<1x840xf32>
    %133 = tpu.matmul %131, %132, %cst_127 {dimension_numbers = #tpu.dot_dimension_numbers<[1], [0], [0], [1], [0, 0, 1, 1], [], []>} : vector<1x8xbf16>, vector<8x840xbf16>, vector<1x840xf32> -> vector<1x840xf32>
    %134 = arith.addf %129, %133 : vector<1x840xf32>
    %c2_128 = arith.constant 2 : index
    %c0_129 = arith.constant 0 : index
    %c0_130 = arith.constant 0 : index
    %135 = vector.load %arg6[%c2_128, %c0_129, %c0_130] : memref<9x1x8xbf16, #tpu.memory_space<vmem>>, vector<1x1x8xbf16>
    %136 = vector.shape_cast %135 : vector<1x1x8xbf16> to vector<1x8xbf16>
    %c0_131 = arith.constant 0 : index
    %c2_132 = arith.constant 2 : index
    %137 = vector.load %arg14[%c0_131, %c2_132] : memref<8x902xbf16, #tpu.memory_space<vmem>>, vector<8x840xbf16>
    %cst_133 = arith.constant dense<0.000000e+00> : vector<1x840xf32>
    %138 = tpu.matmul %136, %137, %cst_133 {dimension_numbers = #tpu.dot_dimension_numbers<[1], [0], [0], [1], [0, 0, 1, 1], [], []>} : vector<1x8xbf16>, vector<8x840xbf16>, vector<1x840xf32> -> vector<1x840xf32>
    %139 = arith.addf %134, %138 : vector<1x840xf32>
    %c3_134 = arith.constant 3 : index
    %c0_135 = arith.constant 0 : index
    %c0_136 = arith.constant 0 : index
    %140 = vector.load %arg6[%c3_134, %c0_135, %c0_136] : memref<9x1x8xbf16, #tpu.memory_space<vmem>>, vector<1x1x8xbf16>
    %141 = vector.shape_cast %140 : vector<1x1x8xbf16> to vector<1x8xbf16>
    %c0_137 = arith.constant 0 : index
    %c30_138 = arith.constant 30 : index
    %142 = vector.load %arg14[%c0_137, %c30_138] : memref<8x902xbf16, #tpu.memory_space<vmem>>, vector<8x840xbf16>
    %cst_139 = arith.constant dense<0.000000e+00> : vector<1x840xf32>
    %143 = tpu.matmul %141, %142, %cst_139 {dimension_numbers = #tpu.dot_dimension_numbers<[1], [0], [0], [1], [0, 0, 1, 1], [], []>} : vector<1x8xbf16>, vector<8x840xbf16>, vector<1x840xf32> -> vector<1x840xf32>
    %144 = arith.addf %139, %143 : vector<1x840xf32>
    %c4_140 = arith.constant 4 : index
    %c0_141 = arith.constant 0 : index
    %c0_142 = arith.constant 0 : index
    %145 = vector.load %arg6[%c4_140, %c0_141, %c0_142] : memref<9x1x8xbf16, #tpu.memory_space<vmem>>, vector<1x1x8xbf16>
    %146 = vector.shape_cast %145 : vector<1x1x8xbf16> to vector<1x8xbf16>
    %c0_143 = arith.constant 0 : index
    %c31_144 = arith.constant 31 : index
    %147 = vector.load %arg14[%c0_143, %c31_144] : memref<8x902xbf16, #tpu.memory_space<vmem>>, vector<8x840xbf16>
    %cst_145 = arith.constant dense<0.000000e+00> : vector<1x840xf32>
    %148 = tpu.matmul %146, %147, %cst_145 {dimension_numbers = #tpu.dot_dimension_numbers<[1], [0], [0], [1], [0, 0, 1, 1], [], []>} : vector<1x8xbf16>, vector<8x840xbf16>, vector<1x840xf32> -> vector<1x840xf32>
    %149 = arith.addf %144, %148 : vector<1x840xf32>
    %c5_146 = arith.constant 5 : index
    %c0_147 = arith.constant 0 : index
    %c0_148 = arith.constant 0 : index
    %150 = vector.load %arg6[%c5_146, %c0_147, %c0_148] : memref<9x1x8xbf16, #tpu.memory_space<vmem>>, vector<1x1x8xbf16>
    %151 = vector.shape_cast %150 : vector<1x1x8xbf16> to vector<1x8xbf16>
    %c0_149 = arith.constant 0 : index
    %c32_150 = arith.constant 32 : index
    %152 = vector.load %arg14[%c0_149, %c32_150] : memref<8x902xbf16, #tpu.memory_space<vmem>>, vector<8x840xbf16>
    %cst_151 = arith.constant dense<0.000000e+00> : vector<1x840xf32>
    %153 = tpu.matmul %151, %152, %cst_151 {dimension_numbers = #tpu.dot_dimension_numbers<[1], [0], [0], [1], [0, 0, 1, 1], [], []>} : vector<1x8xbf16>, vector<8x840xbf16>, vector<1x840xf32> -> vector<1x840xf32>
    %154 = arith.addf %149, %153 : vector<1x840xf32>
    %c6_152 = arith.constant 6 : index
    %c0_153 = arith.constant 0 : index
    %c0_154 = arith.constant 0 : index
    %155 = vector.load %arg6[%c6_152, %c0_153, %c0_154] : memref<9x1x8xbf16, #tpu.memory_space<vmem>>, vector<1x1x8xbf16>
    %156 = vector.shape_cast %155 : vector<1x1x8xbf16> to vector<1x8xbf16>
    %c0_155 = arith.constant 0 : index
    %c60_156 = arith.constant 60 : index
    %157 = vector.load %arg14[%c0_155, %c60_156] : memref<8x902xbf16, #tpu.memory_space<vmem>>, vector<8x840xbf16>
    %cst_157 = arith.constant dense<0.000000e+00> : vector<1x840xf32>
    %158 = tpu.matmul %156, %157, %cst_157 {dimension_numbers = #tpu.dot_dimension_numbers<[1], [0], [0], [1], [0, 0, 1, 1], [], []>} : vector<1x8xbf16>, vector<8x840xbf16>, vector<1x840xf32> -> vector<1x840xf32>
    %159 = arith.addf %154, %158 : vector<1x840xf32>
    %c7_158 = arith.constant 7 : index
    %c0_159 = arith.constant 0 : index
    %c0_160 = arith.constant 0 : index
    %160 = vector.load %arg6[%c7_158, %c0_159, %c0_160] : memref<9x1x8xbf16, #tpu.memory_space<vmem>>, vector<1x1x8xbf16>
    %161 = vector.shape_cast %160 : vector<1x1x8xbf16> to vector<1x8xbf16>
    %c0_161 = arith.constant 0 : index
    %c61_162 = arith.constant 61 : index
    %162 = vector.load %arg14[%c0_161, %c61_162] : memref<8x902xbf16, #tpu.memory_space<vmem>>, vector<8x840xbf16>
    %cst_163 = arith.constant dense<0.000000e+00> : vector<1x840xf32>
    %163 = tpu.matmul %161, %162, %cst_163 {dimension_numbers = #tpu.dot_dimension_numbers<[1], [0], [0], [1], [0, 0, 1, 1], [], []>} : vector<1x8xbf16>, vector<8x840xbf16>, vector<1x840xf32> -> vector<1x840xf32>
    %164 = arith.addf %159, %163 : vector<1x840xf32>
    %c8_164 = arith.constant 8 : index
    %c0_165 = arith.constant 0 : index
    %c0_166 = arith.constant 0 : index
    %165 = vector.load %arg6[%c8_164, %c0_165, %c0_166] : memref<9x1x8xbf16, #tpu.memory_space<vmem>>, vector<1x1x8xbf16>
    %166 = vector.shape_cast %165 : vector<1x1x8xbf16> to vector<1x8xbf16>
    %c0_167 = arith.constant 0 : index
    %c62_168 = arith.constant 62 : index
    %167 = vector.load %arg14[%c0_167, %c62_168] : memref<8x902xbf16, #tpu.memory_space<vmem>>, vector<8x840xbf16>
    %cst_169 = arith.constant dense<0.000000e+00> : vector<1x840xf32>
    %168 = tpu.matmul %166, %167, %cst_169 {dimension_numbers = #tpu.dot_dimension_numbers<[1], [0], [0], [1], [0, 0, 1, 1], [], []>} : vector<1x8xbf16>, vector<8x840xbf16>, vector<1x840xf32> -> vector<1x840xf32>
    %169 = arith.addf %164, %168 : vector<1x840xf32>
    %c0_170 = arith.constant 0 : index
    %c0_171 = arith.constant 0 : index
    %170 = vector.load %arg9[%c0_170, %c0_171] : memref<1x1xf32, #tpu.memory_space<vmem>>, vector<1x1xf32>
    %171 = vector.broadcast %170 : vector<1x1xf32> to vector<1x840xf32>
    %172 = arith.addf %169, %171 : vector<1x840xf32>
    %cst_172 = arith.constant 0.000000e+00 : f32
    %173 = vector.broadcast %cst_172 : f32 to vector<1x840xf32>
    %174 = arith.subf %173, %172 : vector<1x840xf32>
    %175 = math.exp %174 : vector<1x840xf32>
    %cst_173 = arith.constant 1.000000e+00 : f32
    %176 = vector.broadcast %cst_173 : f32 to vector<1x840xf32>
    %177 = arith.addf %176, %175 : vector<1x840xf32>
    %cst_174 = arith.constant 1.000000e+00 : f32
    %178 = vector.broadcast %cst_174 : f32 to vector<1x840xf32>
    %179 = arith.divf %178, %177 : vector<1x840xf32>
    %180 = vector.shape_cast %179 : vector<1x840xf32> to vector<840xf32>
    %c0_175 = arith.constant 0 : index
    %c0_176 = arith.constant 0 : index
    %c0_177 = arith.constant 0 : index
    %181 = vector.load %arg11[%c0_175, %c0_176, %c0_177] : memref<1x1x840xf32, #tpu.memory_space<vmem>>, vector<1x1x840xf32>
    %182 = vector.shape_cast %181 : vector<1x1x840xf32> to vector<840xf32>
    %183 = vector.shape_cast %180 : vector<840xf32> to vector<1x1x840xf32>
    tpu.vector_store %arg11[%c0_175, %c0_176, %c0_177], %183 {strides = array<i32>} : memref<1x1x840xf32, #tpu.memory_space<vmem>>, vector<1x1x840xf32>,
    return
  }
  func.func @transform_0(%arg0: i32) -> (i32, i32, i32, i32) {
    %c0_i32 = arith.constant 0 : i32
    %c0_i32_0 = arith.constant 0 : i32
    %c0_i32_1 = arith.constant 0 : i32
    %c0_i32_2 = arith.constant 0 : i32
    return %arg0, %c0_i32, %c0_i32_0, %c0_i32_1 : i32, i32, i32, i32
  }
  func.func @transform_1(%arg0: i32) -> (i32, i32) {
    %c0_i32 = arith.constant 0 : i32
    %c0_i32_0 = arith.constant 0 : i32
    %c0_i32_1 = arith.constant 0 : i32
    return %c0_i32, %c0_i32_0 : i32, i32
  }
  func.func @transform_2(%arg0: i32) -> (i32, i32) {
    %c0_i32 = arith.constant 0 : i32
    %c0_i32_0 = arith.constant 0 : i32
    %c0_i32_1 = arith.constant 0 : i32
    return %c0_i32, %c0_i32_0 : i32, i32
  }
  func.func @transform_3(%arg0: i32) -> (i32, i32, i32) {
    %c0_i32 = arith.constant 0 : i32
    %c0_i32_0 = arith.constant 0 : i32
    %c0_i32_1 = arith.constant 0 : i32
    %c0_i32_2 = arith.constant 0 : i32
    return %c0_i32, %c0_i32_0, %c0_i32_1 : i32, i32, i32
  }
  func.func @transform_4(%arg0: i32) -> (i32, i32, i32) {
    %c0_i32 = arith.constant 0 : i32
    %c0_i32_0 = arith.constant 0 : i32
    %c0_i32_1 = arith.constant 0 : i32
    %c0_i32_2 = arith.constant 0 : i32
    return %c0_i32, %c0_i32_0, %c0_i32_1 : i32, i32, i32
  }
  func.func @transform_5(%arg0: i32) -> (i32, i32, i32) {
    %c0_i32 = arith.constant 0 : i32
    %c0_i32_0 = arith.constant 0 : i32
    %c0_i32_1 = arith.constant 0 : i32
    %c0_i32_2 = arith.constant 0 : i32
    return %c0_i32, %c0_i32_0, %c0_i32_1 : i32, i32, i32
  }
  func.func @transform_6(%arg0: i32) -> (i32, i32) {
    %c0_i32 = arith.constant 0 : i32
    %c0_i32_0 = arith.constant 0 : i32
    %c0_i32_1 = arith.constant 0 : i32
    return %c0_i32, %c0_i32_0 : i32, i32
  }
  func.func @transform_7(%arg0: i32) -> (i32, i32) {
    %c0_i32 = arith.constant 0 : i32
    %c0_i32_0 = arith.constant 0 : i32
    %c0_i32_1 = arith.constant 0 : i32
    return %c0_i32, %c0_i32_0 : i32, i32
  }
  func.func @transform_8(%arg0: i32) -> (i32, i32) {
    %c0_i32 = arith.constant 0 : i32
    %c0_i32_0 = arith.constant 0 : i32
    %c0_i32_1 = arith.constant 0 : i32
    return %c0_i32, %c0_i32_0 : i32, i32
  }
  func.func @transform_9(%arg0: i32) -> (i32, i32) {
    %c0_i32 = arith.constant 0 : i32
    %c0_i32_0 = arith.constant 0 : i32
    %c0_i32_1 = arith.constant 0 : i32
    return %c0_i32, %c0_i32_0 : i32, i32
  }
  func.func @transform_10(%arg0: i32) -> (i32, i32, i32) {
    %c0_i32 = arith.constant 0 : i32
    %c0_i32_0 = arith.constant 0 : i32
    %c0_i32_1 = arith.constant 0 : i32
    return %arg0, %c0_i32, %c0_i32_0 : i32, i32, i32
  }
}

</mosaic_0001>

<llo_original>
// kernel: gnet_forward.2
$region0: #{gnet_forward.2}
  #allocation0 [shape = 'u32[]', space=smem, size = 0x4, offset = 0x4, fixed_abs, tag = 'smem constant byte address 0x4 - core index']
  #allocation1 [shape = 'u32[72,128]{1,0:T(1,128)}', space=vmem, size = 0x9000, scoped, tag = 'internal scratch']
  %s0 = inlined_call_operand.vmem [shape: bf16[2,64], index: 0, kind: input, shape index: {}]
  %s1 = inlined_call_operand.hbm [shape: bf16[64,1568], index: 1, kind: input, shape index: {}]
  %s2 = inlined_call_operand.vmem [shape: f32[1,1568], index: 2, kind: input, shape index: {}]
  %s3 = inlined_call_operand.vmem [shape: bf16[2,1568], index: 3, kind: output, shape index: {}]
  %s4 = sld [smem:[#allocation0]]
  $region26: #{gnet_forward.2} parent=0
    _
  %s6 = ssub.s32 1, %s4
  %s7 = scalar_select 0, %s6, %s4
  $region1: #{gnet_forward.2} parent=0
    #allocation2 [shape = 'u8[212992]{0}', space=vmem, size = 0x34000, scoped, tag = 'input window, operand 1, single buffered']
    #allocation3 [shape = 's32[1]{0}', space=sflag, size = 0x4, scoped, tag = 'scoped memory for gnet_forward.2']
    %8 = vsyncpa [#allocation3], 0
    // Predicated region
    $region2: #{gnet_forward.2} parent=1 // pred_check
      _
    $region3: #{gnet_forward.2} parent=1 // pred_check_branch
      %10 = sbr.rel (0) target = $region5
    $region4: #{gnet_forward.2} parent=1 // pred_region
      _
    $region5: #{gnet_forward.2} parent=1 // pred_fallthru
      _
    // Predicated region
    $region6: #{gnet_forward.2} parent=1 // pred_check
      _
    $region7: #{gnet_forward.2} parent=1 // pred_check_branch
      %12 = sbr.rel (0) target = $region9
    $region8: #{gnet_forward.2} parent=1 // pred_region
      %14 = vsyncadd [#allocation3], 0
      %s15 = sshll.u32 %s1, 4
      %s16 = int_to_ptr.hbm [resolvable:$true] %s15
      %s17 = sshll.u32 [#allocation2], 4
      %s18 = int_to_ptr.vmem [resolvable:$true] %s17
      %23 = dma.hbm_to_vmem [thread:$0]  %s16, 6656, %s18, [#allocation3], 832, 832, 52
    $region9: #{gnet_forward.2} parent=1 // pred_fallthru
      _
    // Predicated region
    $region10: #{gnet_forward.2} parent=1 // pred_check
      _
    $region11: #{gnet_forward.2} parent=1 // pred_check_branch
      %25 = sbr.rel (0) target = $region13
    $region12: #{gnet_forward.2} parent=1 // pred_region
      _
    $region13: #{gnet_forward.2} parent=1 // pred_fallthru
      _
    // Predicated region
    $region14: #{gnet_forward.2} parent=1 // pred_check
      _
    $region15: #{gnet_forward.2} parent=1 // pred_check_branch
      %27 = sbr.rel (0) target = $region17
    $region16: #{gnet_forward.2} parent=1 // pred_region
      %29 = dma.done [#allocation3], 6656
    $region17: #{gnet_forward.2} parent=1 // pred_fallthru
      _
    %v31 = vld [vmem:[%s0] sm:$0x1]
    %v32 = vld [vmem:[#allocation2] sm:$0xff]
    %v33 = vld [vmem:[#allocation2 + $0x8] sm:$0xff]
    %v34 = vld [vmem:[#allocation2 + $0x10] sm:$0xff]
    %v35 = vld [vmem:[#allocation2 + $0x18] sm:$0xff]
    %v36 = vld [vmem:[#allocation2 + $0x20] sm:$0xff]
    %v37 = vld [vmem:[#allocation2 + $0x28] sm:$0xff]
    %v38 = vld [vmem:[#allocation2 + $0x30] sm:$0xf]
    %v39 = vld [vmem:[#allocation2 + $0x34] sm:$0xff]
    %v40 = vld [vmem:[#allocation2 + $0x3c] sm:$0xff]
    %v41 = vld [vmem:[#allocation2 + $0x44] sm:$0xff]
    %v42 = vld [vmem:[#allocation2 + $0x4c] sm:$0xff]
    %v43 = vld [vmem:[#allocation2 + $0x54] sm:$0xff]
    %v44 = vld [vmem:[#allocation2 + $0x5c] sm:$0xff]
    %v45 = vld [vmem:[#allocation2 + $0x64] sm:$0xf]
    %v46 = vld [vmem:[#allocation2 + $0x68] sm:$0xff]
    %v47 = vld [vmem:[#allocation2 + $0x70] sm:$0xff]
    %v48 = vld [vmem:[#allocation2 + $0x78] sm:$0xff]
    %v49 = vld [vmem:[#allocation2 + $0x80] sm:$0xff]
    %v50 = vld [vmem:[#allocation2 + $0x88] sm:$0xff]
    %v51 = vld [vmem:[#allocation2 + $0x90] sm:$0xff]
    %v52 = vld [vmem:[#allocation2 + $0x98] sm:$0xf]
    %v53 = vld [vmem:[#allocation2 + $0x9c] sm:$0xff]
    %v54 = vld [vmem:[#allocation2 + $0xa4] sm:$0xff]
    %v55 = vld [vmem:[#allocation2 + $0xac] sm:$0xff]
    %v56 = vld [vmem:[#allocation2 + $0xb4] sm:$0xff]
    %v57 = vld [vmem:[#allocation2 + $0xbc] sm:$0xff]
    %v58 = vld [vmem:[#allocation2 + $0xc4] sm:$0xff]
    %v59 = vld [vmem:[#allocation2 + $0xcc] sm:$0xf]
    %v60 = vld [vmem:[#allocation2 + $0xd0] sm:$0xff]
    %v61 = vld [vmem:[#allocation2 + $0xd8] sm:$0xff]
    %v62 = vld [vmem:[#allocation2 + $0xe0] sm:$0xff]
    %v63 = vld [vmem:[#allocation2 + $0xe8] sm:$0xff]
    %v64 = vld [vmem:[#allocation2 + $0xf0] sm:$0xff]
    %v65 = vld [vmem:[#allocation2 + $0xf8] sm:$0xff]
    %v66 = vld [vmem:[#allocation2 + $0x100] sm:$0xf]
    %v67 = vld [vmem:[#allocation2 + $0x104] sm:$0xff]
    %v68 = vld [vmem:[#allocation2 + $0x10c] sm:$0xff]
    %v69 = vld [vmem:[#allocation2 + $0x114] sm:$0xff]
    %v70 = vld [vmem:[#allocation2 + $0x11c] sm:$0xff]
    %v71 = vld [vmem:[#allocation2 + $0x124] sm:$0xff]
    %v72 = vld [vmem:[#allocation2 + $0x12c] sm:$0xff]
    %v73 = vld [vmem:[#allocation2 + $0x134] sm:$0xf]
    %v74 = vld [vmem:[#allocation2 + $0x138] sm:$0xff]
    %v75 = vld [vmem:[#allocation2 + $0x140] sm:$0xff]
    %v76 = vld [vmem:[#allocation2 + $0x148] sm:$0xff]
    %v77 = vld [vmem:[#allocation2 + $0x150] sm:$0xff]
    %v78 = vld [vmem:[#allocation2 + $0x158] sm:$0xff]
    %v79 = vld [vmem:[#allocation2 + $0x160] sm:$0xff]
    %v80 = vld [vmem:[#allocation2 + $0x168] sm:$0xf]
    %v81 = vld [vmem:[#allocation2 + $0x16c] sm:$0xff]
    %v82 = vld [vmem:[#allocation2 + $0x174] sm:$0xff]
    %v83 = vld [vmem:[#allocation2 + $0x17c] sm:$0xff]
    %v84 = vld [vmem:[#allocation2 + $0x184] sm:$0xff]
    %v85 = vld [vmem:[#allocation2 + $0x18c] sm:$0xff]
    %v86 = vld [vmem:[#allocation2 + $0x194] sm:$0xff]
    %v87 = vld [vmem:[#allocation2 + $0x19c] sm:$0xf]
    %v88 = vld [vmem:[%s2] sm:$0xff]
    %v89 = vld [vmem:[%s2 + $0x8] sm:$0x1f]
    %v92 = vperm.slane %v88, 0
    %v93 = vperm.slane %v88, 1
    %v94 = vperm.slane %v88, 2
    %v95 = vperm.slane %v88, 3
    %v96 = vperm.slane %v88, 4
    %v97 = vperm.slane %v88, 5
    %v98 = vperm.slane %v88, 6
    %v99 = vperm.slane %v88, 7
    %v100 = vperm.slane %v89, 0
    %v101 = vperm.slane %v89, 1
    %v102 = vperm.slane %v89, 2
    %v103 = vperm.slane %v89, 3
    %v104 = vperm.slane %v89, 4
    %v174 = vunpack.c.l.b16 %v32
    %v175 = vunpack.c.h.b16 %v32
    %v176 = vunpack.c.l.b16 %v33
    %v177 = vunpack.c.h.b16 %v33
    %v178 = vunpack.c.l.b16 %v34
    %v179 = vunpack.c.h.b16 %v34
    %v180 = vunpack.c.l.b16 %v35
    %v181 = vunpack.c.h.b16 %v35
    %v182 = vunpack.c.l.b16 %v36
    %v183 = vunpack.c.h.b16 %v36
    %v184 = vunpack.c.l.b16 %v37
    %v185 = vunpack.c.h.b16 %v37
    %v186 = vunpack.c.l.b16 %v38
    %v187 = vunpack.c.l.b16 %v39
    %v188 = vunpack.c.h.b16 %v39
    %v189 = vunpack.c.l.b16 %v40
    %v190 = vunpack.c.h.b16 %v40
    %v191 = vunpack.c.l.b16 %v41
    %v192 = vunpack.c.h.b16 %v41
    %v193 = vunpack.c.l.b16 %v42
    %v194 = vunpack.c.h.b16 %v42
    %v195 = vunpack.c.l.b16 %v43
    %v196 = vunpack.c.h.b16 %v43
    %v197 = vunpack.c.l.b16 %v44
    %v198 = vunpack.c.h.b16 %v44
    %v199 = vunpack.c.l.b16 %v45
    %v200 = vunpack.c.l.b16 %v46
    %v201 = vunpack.c.h.b16 %v46
    %v202 = vunpack.c.l.b16 %v47
    %v203 = vunpack.c.h.b16 %v47
    %v204 = vunpack.c.l.b16 %v48
    %v205 = vunpack.c.h.b16 %v48
    %v206 = vunpack.c.l.b16 %v49
    %v207 = vunpack.c.h.b16 %v49
    %v208 = vunpack.c.l.b16 %v50
    %v209 = vunpack.c.h.b16 %v50
    %v210 = vunpack.c.l.b16 %v51
    %v211 = vunpack.c.h.b16 %v51
    %v212 = vunpack.c.l.b16 %v52
    %v213 = vunpack.c.l.b16 %v53
    %v214 = vunpack.c.h.b16 %v53
    %v215 = vunpack.c.l.b16 %v54
    %v216 = vunpack.c.h.b16 %v54
    %v217 = vunpack.c.l.b16 %v55
    %v218 = vunpack.c.h.b16 %v55
    %v219 = vunpack.c.l.b16 %v56
    %v220 = vunpack.c.h.b16 %v56
    %v221 = vunpack.c.l.b16 %v57
    %v222 = vunpack.c.h.b16 %v57
    %v223 = vunpack.c.l.b16 %v58
    %v224 = vunpack.c.h.b16 %v58
    %v225 = vunpack.c.l.b16 %v59
    %v226 = vunpack.c.l.b16 %v60
    %v227 = vunpack.c.h.b16 %v60
    %v228 = vunpack.c.l.b16 %v61
    %v229 = vunpack.c.h.b16 %v61
    %v230 = vunpack.c.l.b16 %v62
    %v231 = vunpack.c.h.b16 %v62
    %v232 = vunpack.c.l.b16 %v63
    %v233 = vunpack.c.h.b16 %v63
    %v234 = vunpack.c.l.b16 %v64
    %v235 = vunpack.c.h.b16 %v64
    %v236 = vunpack.c.l.b16 %v65
    %v237 = vunpack.c.h.b16 %v65
    %v238 = vunpack.c.l.b16 %v66
    %v239 = vunpack.c.l.b16 %v67
    %v240 = vunpack.c.h.b16 %v67
    %v241 = vunpack.c.l.b16 %v68
    %v242 = vunpack.c.h.b16 %v68
    %v243 = vunpack.c.l.b16 %v69
    %v244 = vunpack.c.h.b16 %v69
    %v245 = vunpack.c.l.b16 %v70
    %v246 = vunpack.c.h.b16 %v70
    %v247 = vunpack.c.l.b16 %v71
    %v248 = vunpack.c.h.b16 %v71
    %v249 = vunpack.c.l.b16 %v72
    %v250 = vunpack.c.h.b16 %v72
    %v251 = vunpack.c.l.b16 %v73
    %v252 = vunpack.c.l.b16 %v74
    %v253 = vunpack.c.h.b16 %v74
    %v254 = vunpack.c.l.b16 %v75
    %v255 = vunpack.c.h.b16 %v75
    %v256 = vunpack.c.l.b16 %v76
    %v257 = vunpack.c.h.b16 %v76
    %v258 = vunpack.c.l.b16 %v77
    %v259 = vunpack.c.h.b16 %v77
    %v260 = vunpack.c.l.b16 %v78
    %v261 = vunpack.c.h.b16 %v78
    %v262 = vunpack.c.l.b16 %v79
    %v263 = vunpack.c.h.b16 %v79
    %v264 = vunpack.c.l.b16 %v80
    %v265 = vunpack.c.l.b16 %v81
    %v266 = vunpack.c.h.b16 %v81
    %v267 = vunpack.c.l.b16 %v82
    %v268 = vunpack.c.h.b16 %v82
    %v269 = vunpack.c.l.b16 %v83
    %v270 = vunpack.c.h.b16 %v83
    %v271 = vunpack.c.l.b16 %v84
    %v272 = vunpack.c.h.b16 %v84
    %v273 = vunpack.c.l.b16 %v85
    %v274 = vunpack.c.h.b16 %v85
    %v275 = vunpack.c.l.b16 %v86
    %v276 = vunpack.c.h.b16 %v86
    %v277 = vunpack.c.l.b16 %v87
    %v278 = vpack.c.b16 %v187, %v174
    %v279 = vpack.c.b16 %v188, %v175
    %v280 = vpack.c.b16 %v189, %v176
    %v281 = vpack.c.b16 %v190, %v177
    %v282 = vpack.c.b16 %v191, %v178
    %v283 = vpack.c.b16 %v192, %v179
    %v284 = vpack.c.b16 %v193, %v180
    %v285 = vpack.c.b16 %v194, %v181
    %v286 = vpack.c.b16 %v195, %v182
    %v287 = vpack.c.b16 %v196, %v183
    %v288 = vpack.c.b16 %v197, %v184
    %v289 = vpack.c.b16 %v198, %v185
    %v290 = vpack.c.b16 %v199, %v186
    %v291 = vpack.c.b16 %v213, %v200
    %v292 = vpack.c.b16 %v214, %v201
    %v293 = vpack.c.b16 %v215, %v202
    %v294 = vpack.c.b16 %v216, %v203
    %v295 = vpack.c.b16 %v217, %v204
    %v296 = vpack.c.b16 %v218, %v205
    %v297 = vpack.c.b16 %v219, %v206
    %v298 = vpack.c.b16 %v220, %v207
    %v299 = vpack.c.b16 %v221, %v208
    %v300 = vpack.c.b16 %v222, %v209
    %v301 = vpack.c.b16 %v223, %v210
    %v302 = vpack.c.b16 %v224, %v211
    %v303 = vpack.c.b16 %v225, %v212
    %v304 = vpack.c.b16 %v239, %v226
    %v305 = vpack.c.b16 %v240, %v227
    %v306 = vpack.c.b16 %v241, %v228
    %v307 = vpack.c.b16 %v242, %v229
    %v308 = vpack.c.b16 %v243, %v230
    %v309 = vpack.c.b16 %v244, %v231
    %v310 = vpack.c.b16 %v245, %v232
    %v311 = vpack.c.b16 %v246, %v233
    %v312 = vpack.c.b16 %v247, %v234
    %v313 = vpack.c.b16 %v248, %v235
    %v314 = vpack.c.b16 %v249, %v236
    %v315 = vpack.c.b16 %v250, %v237
    %v316 = vpack.c.b16 %v251, %v238
    %v317 = vpack.c.b16 %v265, %v252
    %v318 = vpack.c.b16 %v266, %v253
    %v319 = vpack.c.b16 %v267, %v254
    %v320 = vpack.c.b16 %v268, %v255
    %v321 = vpack.c.b16 %v269, %v256
    %v322 = vpack.c.b16 %v270, %v257
    %v323 = vpack.c.b16 %v271, %v258
    %v324 = vpack.c.b16 %v272, %v259
    %v325 = vpack.c.b16 %v273, %v260
    %v326 = vpack.c.b16 %v274, %v261
    %v327 = vpack.c.b16 %v275, %v262
    %v328 = vpack.c.b16 %v276, %v263
    %v329 = vpack.c.b16 %v277, %v264
    %vm382 = vcmask 523264
    %v384 = vsel %vm382, %v31, 0
    %386 = vmatpush.bf16.msra.mxu0 0
    %387 = vmatpush.bf16.msra.mxu0 0
    %388 = vmatpush.bf16.msra.mxu0 0
    %389 = vmatpush.bf16.msra.mxu0 0
    %390 = vmatpush.bf16.msra.mxu0 %v317
    %391 = vmatpush.bf16.msra.mxu0 %v304
    %392 = vmatpush.bf16.msra.mxu0 %v291
    %393 = vmatpush.bf16.msra.mxu0 %v278
    %394 = vmatmul.bf16.gmra.mxu0 %v384
    %v395 = vpop.f32.mrf.mxu0
    %v396 = vadd.f32 %v92, %v395
    %v397 = vpop.f32.mrf.mxu0
    %398 = vdwg.mxu0
    %399 = vmatpush.bf16.msra.mxu0 0
    %400 = vmatpush.bf16.msra.mxu0 0
    %401 = vmatpush.bf16.msra.mxu0 0
    %402 = vmatpush.bf16.msra.mxu0 0
    %403 = vmatpush.bf16.msra.mxu0 %v318
    %404 = vmatpush.bf16.msra.mxu0 %v305
    %405 = vmatpush.bf16.msra.mxu0 %v292
    %406 = vmatpush.bf16.msra.mxu0 %v279
    %407 = vmatmul.bf16.gmra.mxu0 %v384
    %v408 = vpop.f32.mrf.mxu0
    %v409 = vadd.f32 %v93, %v408
    %v410 = vpop.f32.mrf.mxu0
    %411 = vdwg.mxu0
    %412 = vmatpush.bf16.msra.mxu0 0
    %413 = vmatpush.bf16.msra.mxu0 0
    %414 = vmatpush.bf16.msra.mxu0 0
    %415 = vmatpush.bf16.msra.mxu0 0
    %416 = vmatpush.bf16.msra.mxu0 %v319
    %417 = vmatpush.bf16.msra.mxu0 %v306
    %418 = vmatpush.bf16.msra.mxu0 %v293
    %419 = vmatpush.bf16.msra.mxu0 %v280
    %420 = vmatmul.bf16.gmra.mxu0 %v384
    %v421 = vpop.f32.mrf.mxu0
    %v422 = vadd.f32 %v94, %v421
    %v423 = vpop.f32.mrf.mxu0
    %424 = vdwg.mxu0
    %425 = vmatpush.bf16.msra.mxu0 0
    %426 = vmatpush.bf16.msra.mxu0 0
    %427 = vmatpush.bf16.msra.mxu0 0
    %428 = vmatpush.bf16.msra.mxu0 0
    %429 = vmatpush.bf16.msra.mxu0 %v320
    %430 = vmatpush.bf16.msra.mxu0 %v307
    %431 = vmatpush.bf16.msra.mxu0 %v294
    %432 = vmatpush.bf16.msra.mxu0 %v281
    %433 = vmatmul.bf16.gmra.mxu0 %v384
    %v434 = vpop.f32.mrf.mxu0
    %v435 = vadd.f32 %v95, %v434
    %v436 = vpop.f32.mrf.mxu0
    %437 = vdwg.mxu0
    %438 = vmatpush.bf16.msra.mxu0 0
    %439 = vmatpush.bf16.msra.mxu0 0
    %440 = vmatpush.bf16.msra.mxu0 0
    %441 = vmatpush.bf16.msra.mxu0 0
    %442 = vmatpush.bf16.msra.mxu0 %v321
    %443 = vmatpush.bf16.msra.mxu0 %v308
    %444 = vmatpush.bf16.msra.mxu0 %v295
    %445 = vmatpush.bf16.msra.mxu0 %v282
    %446 = vmatmul.bf16.gmra.mxu0 %v384
    %v447 = vpop.f32.mrf.mxu0
    %v448 = vadd.f32 %v96, %v447
    %v449 = vpop.f32.mrf.mxu0
    %450 = vdwg.mxu0
    %451 = vmatpush.bf16.msra.mxu0 0
    %452 = vmatpush.bf16.msra.mxu0 0
    %453 = vmatpush.bf16.msra.mxu0 0
    %454 = vmatpush.bf16.msra.mxu0 0
    %455 = vmatpush.bf16.msra.mxu0 %v322
    %456 = vmatpush.bf16.msra.mxu0 %v309
    %457 = vmatpush.bf16.msra.mxu0 %v296
    %458 = vmatpush.bf16.msra.mxu0 %v283
    %459 = vmatmul.bf16.gmra.mxu0 %v384
    %v460 = vpop.f32.mrf.mxu0
    %v461 = vadd.f32 %v97, %v460
    %v462 = vpop.f32.mrf.mxu0
    %463 = vdwg.mxu0
    %464 = vmatpush.bf16.msra.mxu0 0
    %465 = vmatpush.bf16.msra.mxu0 0
    %466 = vmatpush.bf16.msra.mxu0 0
    %467 = vmatpush.bf16.msra.mxu0 0
    %468 = vmatpush.bf16.msra.mxu0 %v323
    %469 = vmatpush.bf16.msra.mxu0 %v310
    %470 = vmatpush.bf16.msra.mxu0 %v297
    %471 = vmatpush.bf16.msra.mxu0 %v284
    %472 = vmatmul.bf16.gmra.mxu0 %v384
    %v473 = vpop.f32.mrf.mxu0
    %v474 = vadd.f32 %v98, %v473
    %v475 = vpop.f32.mrf.mxu0
    %476 = vdwg.mxu0
    %477 = vmatpush.bf16.msra.mxu0 0
    %478 = vmatpush.bf16.msra.mxu0 0
    %479 = vmatpush.bf16.msra.mxu0 0
    %480 = vmatpush.bf16.msra.mxu0 0
    %481 = vmatpush.bf16.msra.mxu0 %v324
    %482 = vmatpush.bf16.msra.mxu0 %v311
    %483 = vmatpush.bf16.msra.mxu0 %v298
    %484 = vmatpush.bf16.msra.mxu0 %v285
    %485 = vmatmul.bf16.gmra.mxu0 %v384
    %v486 = vpop.f32.mrf.mxu0
    %v487 = vadd.f32 %v99, %v486
    %v488 = vpop.f32.mrf.mxu0
    %489 = vdwg.mxu0
    %490 = vmatpush.bf16.msra.mxu0 0
    %491 = vmatpush.bf16.msra.mxu0 0
    %492 = vmatpush.bf16.msra.mxu0 0
    %493 = vmatpush.bf16.msra.mxu0 0
    %494 = vmatpush.bf16.msra.mxu0 %v325
    %495 = vmatpush.bf16.msra.mxu0 %v312
    %496 = vmatpush.bf16.msra.mxu0 %v299
    %497 = vmatpush.bf16.msra.mxu0 %v286
    %498 = vmatmul.bf16.gmra.mxu0 %v384
    %v499 = vpop.f32.mrf.mxu0
    %v500 = vadd.f32 %v100, %v499
    %v501 = vpop.f32.mrf.mxu0
    %502 = vdwg.mxu0
    %503 = vmatpush.bf16.msra.mxu0 0
    %504 = vmatpush.bf16.msra.mxu0 0
    %505 = vmatpush.bf16.msra.mxu0 0
    %506 = vmatpush.bf16.msra.mxu0 0
    %507 = vmatpush.bf16.msra.mxu0 %v326
    %508 = vmatpush.bf16.msra.mxu0 %v313
    %509 = vmatpush.bf16.msra.mxu0 %v300
    %510 = vmatpush.bf16.msra.mxu0 %v287
    %511 = vmatmul.bf16.gmra.mxu0 %v384
    %v512 = vpop.f32.mrf.mxu0
    %v513 = vadd.f32 %v101, %v512
    %v514 = vpop.f32.mrf.mxu0
    %515 = vdwg.mxu0
    %516 = vmatpush.bf16.msra.mxu0 0
    %517 = vmatpush.bf16.msra.mxu0 0
    %518 = vmatpush.bf16.msra.mxu0 0
    %519 = vmatpush.bf16.msra.mxu0 0
    %520 = vmatpush.bf16.msra.mxu0 %v327
    %521 = vmatpush.bf16.msra.mxu0 %v314
    %522 = vmatpush.bf16.msra.mxu0 %v301
    %523 = vmatpush.bf16.msra.mxu0 %v288
    %524 = vmatmul.bf16.gmra.mxu0 %v384
    %v525 = vpop.f32.mrf.mxu0
    %v526 = vadd.f32 %v102, %v525
    %v527 = vpop.f32.mrf.mxu0
    %528 = vdwg.mxu0
    %529 = vmatpush.bf16.msra.mxu0 0
    %530 = vmatpush.bf16.msra.mxu0 0
    %531 = vmatpush.bf16.msra.mxu0 0
    %532 = vmatpush.bf16.msra.mxu0 0
    %533 = vmatpush.bf16.msra.mxu0 %v328
    %534 = vmatpush.bf16.msra.mxu0 %v315
    %535 = vmatpush.bf16.msra.mxu0 %v302
    %536 = vmatpush.bf16.msra.mxu0 %v289
    %537 = vmatmul.bf16.gmra.mxu0 %v384
    %v538 = vpop.f32.mrf.mxu0
    %v539 = vadd.f32 %v103, %v538
    %v540 = vpop.f32.mrf.mxu0
    %541 = vdwg.mxu0
    %542 = vmatpush.bf16.msra.mxu0 0
    %543 = vmatpush.bf16.msra.mxu0 0
    %544 = vmatpush.bf16.msra.mxu0 0
    %545 = vmatpush.bf16.msra.mxu0 0
    %546 = vmatpush.bf16.msra.mxu0 %v329
    %547 = vmatpush.bf16.msra.mxu0 %v316
    %548 = vmatpush.bf16.msra.mxu0 %v303
    %549 = vmatpush.bf16.msra.mxu0 %v290
    %550 = vmatmul.bf16.gmra.mxu0 %v384
    %v551 = vpop.f32.mrf.mxu0
    %v552 = vadd.f32 %v104, %v551
    %v553 = vpop.f32.mrf.mxu0
    %554 = vdwg.mxu0
    %vm555 = vcmp.gt.f32.partialorder %v396, 0.0
    %vm556 = vcmp.gt.f32.partialorder %v409, 0.0
    %vm557 = vcmp.gt.f32.partialorder %v422, 0.0
    %vm558 = vcmp.gt.f32.partialorder %v435, 0.0
    %vm559 = vcmp.gt.f32.partialorder %v448, 0.0
    %vm560 = vcmp.gt.f32.partialorder %v461, 0.0
    %vm561 = vcmp.gt.f32.partialorder %v474, 0.0
    %vm562 = vcmp.gt.f32.partialorder %v487, 0.0
    %vm563 = vcmp.gt.f32.partialorder %v500, 0.0
    %vm564 = vcmp.gt.f32.partialorder %v513, 0.0
    %vm565 = vcmp.gt.f32.partialorder %v526, 0.0
    %vm566 = vcmp.gt.f32.partialorder %v539, 0.0
    %vm567 = vcmp.gt.f32.partialorder %v552, 0.0
    %v568 = vmul.f32 %v396, 0.2
    %v569 = vmul.f32 %v409, 0.2
    %v570 = vmul.f32 %v422, 0.2
    %v571 = vmul.f32 %v435, 0.2
    %v572 = vmul.f32 %v448, 0.2
    %v573 = vmul.f32 %v461, 0.2
    %v574 = vmul.f32 %v474, 0.2
    %v575 = vmul.f32 %v487, 0.2
    %v576 = vmul.f32 %v500, 0.2
    %v577 = vmul.f32 %v513, 0.2
    %v578 = vmul.f32 %v526, 0.2
    %v579 = vmul.f32 %v539, 0.2
    %v580 = vmul.f32 %v552, 0.2
    %v581 = vsel %vm555, %v396, %v568
    %v582 = vsel %vm556, %v409, %v569
    %v583 = vsel %vm557, %v422, %v570
    %v584 = vsel %vm558, %v435, %v571
    %v585 = vsel %vm559, %v448, %v572
    %v586 = vsel %vm560, %v461, %v573
    %v587 = vsel %vm561, %v474, %v574
    %v588 = vsel %vm562, %v487, %v575
    %v589 = vsel %vm563, %v500, %v576
    %v590 = vsel %vm564, %v513, %v577
    %v591 = vsel %vm565, %v526, %v578
    %v592 = vsel %vm566, %v539, %v579
    %v593 = vsel %vm567, %v552, %v580
    %v594 = vpack.c.bf16 %v582, %v581
    %v595 = vpack.c.bf16 %v584, %v583
    %v596 = vpack.c.bf16 %v586, %v585
    %v597 = vpack.c.bf16 %v588, %v587
    %v598 = vpack.c.bf16 %v590, %v589
    %v599 = vpack.c.bf16 %v592, %v591
    %v600 = vpack.c.bf16 %v593, %v593
    %v608 = vrot.slane %v594, 3
    %v609 = vrot.slane %v595, 6
    %v610 = vrot.slane %v595, 1
    %v611 = vrot.slane %v596, 4
    %v612 = vrot.slane %v596, 7
    %v613 = vrot.slane %v597, 2
    %v614 = vrot.slane %v597, 5
    %v615 = vrot.slane %v598, 3
    %v616 = vrot.slane %v599, 6
    %v617 = vrot.slane %v599, 1
    %v618 = vrot.slane %v600, 4
    %v619 = vrot.slane %v600, 7
    %vm620 = vcmask 1040384
    %v623 = vsel %vm620, %v594, %v608
    %vm624 = vcmask 1042434
    %v627 = vsel %vm624, %v609, %v610
    %vm628 = vcmask 1041408
    %v629 = vsel %vm628, %v623, %v627
    %vm630 = vcmask 1044484
    %v633 = vsel %vm630, %v611, %v612
    %vm634 = vcmask 1046534
    %v637 = vsel %vm634, %v613, %v614
    %vm638 = vcmask 1045508
    %v639 = vsel %vm638, %v633, %v637
    %vm640 = vcmask 1043456
    %v641 = vsel %vm640, %v629, %v639
    %v644 = vsel %vm620, %v598, %v615
    %v646 = vsel %vm628, %v644, %v616
    %vm647 = vcmask 1043459
    %v650 = vsel %vm647, %v617, %v618
    %vm651 = vcmask 1044483
    %v653 = vsel %vm651, %v650, %v619
    %vm654 = vcmask 1042432
    %v655 = vsel %vm654, %v646, %v653
    %658 = vst [vmem:[%s3] sm:$0xff] %v641
    %vm659 = vcmask 1041409
    %vm660 = vmor %vm659, %vm620
    %vm661 = vmor %vm624, %vm660
    %vm662 = vmor %vm647, %vm661
    %vm663 = vcmask 258052
    %vm664 = vmor %vm663, %vm662
    %665 = vst.msk [vmem:[%s3 + $0x8] sm:$0x1f] %vm664, %v655
    // Predicated region
    $region18: #{gnet_forward.2} parent=1 // pred_check
      _
    $region19: #{gnet_forward.2} parent=1 // pred_check_branch
      %667 = sbr.rel (0) target = $region21
    $region20: #{gnet_forward.2} parent=1 // pred_region
      _
    $region21: #{gnet_forward.2} parent=1 // pred_fallthru
      _
    // Predicated region
    $region22: #{gnet_forward.2} parent=1 // pred_check
      _
    $region23: #{gnet_forward.2} parent=1 // pred_check_branch
      %669 = sbr.rel (0) target = $region25
    $region24: #{gnet_forward.2} parent=1 // pred_region
      _
    $region25: #{gnet_forward.2} parent=1 // pred_fallthru
      _
    %670 = vsyncpa [#allocation3], 1

// kernel: gnet_forward.3
$region0: #{gnet_forward.3}
  #allocation0 [shape = 'u32[]', space=smem, size = 0x4, offset = 0x4, fixed_abs, tag = 'smem constant byte address 0x4 - core index']
  #allocation1 [shape = 'u32[72,128]{1,0:T(1,128)}', space=vmem, size = 0x9000, scoped, tag = 'internal scratch']
  #allocation2 [shape = 'bf16[32,258]{1,0:T(8,128)(2,1)}', space=vmem, size = 0x6000, scoped, tag = 'scratch operand']
  #allocation3 [shape = 'bf16[16,964]{1,0:T(8,128)(2,1)}', space=vmem, size = 0x8000, scoped, tag = 'scratch operand']
  #allocation4 [shape = 'bf16[8,902]{1,0:T(8,128)(2,1)}', space=vmem, size = 0x4000, scoped, tag = 'scratch operand']
  #allocation5 [shape = 'f32[1,1]{1,0:T(1,128)S(1)}', space=vmem, size = 0x200, scoped, tag = 'scoped memory for gnet_forward.3']
  %s0 = inlined_call_operand.vmem [shape: bf16[2,1,32,49], index: 0, kind: input, shape index: {}]
  %s1 = inlined_call_operand.vmem [shape: bf16[49,258], index: 1, kind: input, shape index: {}]
  %s2 = inlined_call_operand.hbm [shape: bf16[224,964], index: 2, kind: input, shape index: {}]
  %s3 = inlined_call_operand.hbm [shape: bf16[9,16,32], index: 3, kind: input, shape index: {}]
  %s4 = inlined_call_operand.hbm [shape: bf16[9,8,16], index: 4, kind: input, shape index: {}]
  %s5 = inlined_call_operand.vmem [shape: bf16[9,1,8], index: 5, kind: input, shape index: {}]
  %s6 = inlined_call_operand.vmem [shape: f32[16,1], index: 6, kind: input, shape index: {}]
  %s7 = inlined_call_operand.vmem [shape: f32[8,1], index: 7, kind: input, shape index: {}]
  %s8 = inlined_call_operand.<no memory space> [shape: f32[1,1], index: 8, kind: input, shape index: {}]
  %s9 = inlined_call_operand.vmem [shape: f32[1,902], index: 9, kind: input, shape index: {}]
  %s10 = inlined_call_operand.vmem [shape: f32[2,1,840], index: 10, kind: output, shape index: {}]
  %s11 = sld [smem:[#allocation0]]
  $region85: #{gnet_forward.3} parent=0
    _
  %s13 = ssub.s32 1, %s11
  %s14 = scalar_select 0, %s13, %s11
  %v15 = vstv %s8
  %16 = vst [vmem:[#allocation5] sm:$0x1] %v15
  $region1: #{gnet_forward.3} parent=0
    #allocation6 [shape = 'u8[458752]{0}', space=vmem, size = 0x70000, scoped, tag = 'input window, operand 2, single buffered']
    #allocation7 [shape = 's32[2]{0}', space=sflag, size = 0x8, scoped, tag = 'scoped memory for gnet_forward.3']
    #allocation8 [shape = 'u8[36864]{0}', space=vmem, size = 0x9000, scoped, tag = 'input window, operand 3, single buffered']
    #allocation9 [shape = 's32[1]{0}', space=sflag, size = 0x4, scoped, tag = 'scoped memory for gnet_forward.3']
    #allocation10 [shape = 'u8[18432]{0}', space=vmem, size = 0x4800, scoped, tag = 'input window, operand 4, single buffered']
    %17 = vsyncpa [#allocation7], 0
    %18 = vsyncpa [#allocation9], 0
    loop: start=0, step=1, limit=4
    $region2: #{gnet_forward.3} parent=1 // loop_pre_header
      _
    $region3: #{gnet_forward.3} parent=1 // loop_header
      %s20 = sphi 0, %s24
      %p21 = scmp.ge.s32.totalorder %s20, 4
      %s30 = sphi 0, %s32
      %s33 = sphi 0, %s30
      %s34 = sphi 0, %s33
      %s50 = sphi 0, %s34
      %s54 = sphi 0, %s54
      %s56 = sphi 0, %s54
      %s57 = sphi 0, %s56
      %s71 = sphi 0, %s57
      %s75 = sphi 0, %s75
      %s77 = sphi 0, %s75
      %s78 = sphi 0, %s77
      %s92 = sphi 0, %s78
      %s96 = sphi 0, %s96
      %s98 = sphi 0, %s96
      %s99 = sphi 0, %s98
      %s113 = sphi 0, %s99
      %s117 = sphi 0, %s117
      %s119 = sphi 0, %s117
      %s120 = sphi 0, %s119
      %s134 = sphi 0, %s120
      %s138 = sphi 0, %s138
      %s140 = sphi 0, %s138
      %s141 = sphi 0, %s140
      %s155 = sphi 0, %s141
      %s159 = sphi 0, %s159
      %s161 = sphi 0, %s159
      %s162 = sphi 0, %s161
      %s176 = sphi 0, %s162
      %s180 = sphi 0, %s180
      %s182 = sphi 0, %s180
      %s183 = sphi 0, %s182
      %s197 = sphi 0, %s183
      %s201 = sphi 0, %s201
      %s203 = sphi 0, %s201
      %s204 = sphi 0, %s203
      %s218 = sphi 0, %s204
      %s222 = sphi 0, %s222
      %s224 = sphi 0, %s222
      %s225 = sphi 0, %s224
      %s239 = sphi 0, %s225
      %s245 = sphi 0, %s247
      %s248 = sphi 0, %s245
      %s249 = sphi 0, %s248
      %s265 = sphi 0, %s249
    $region4: #{gnet_forward.3} parent=1 // loop_header_branch
      %23 = sbr.rel (%p21) target = $region8
    $region5: #{gnet_forward.3} parent=1 // loop_body
      %s25 = ssub.s32 %s20, 1
      %s26 = ssub.s32 %s20, 2
      %s27 = sadd.s32 %s20, 1
      %s28 = ssub.s32 %s20, %s27
      %p29 = scmp.eq.s32.totalorder %s28, 0
      %s31 = sadd.s32 %s30, 1
      %s32 = scalar_select %p29, %s30, %s31
      %p35 = pneg %p29
      %p36 = scmp.eq.s32.totalorder %s20, 1
      %p37 = por %p35, %p36
      %p38 = scmp.ne.s32.totalorder %s30, %s33
      %p39 = scmp.eq.s32.totalorder %s20, 0
      %p40 = por %p38, %p39
      %p41 = scmp.ne.s32.totalorder %s30, %s33
      %p42 = scmp.eq.s32.totalorder %s25, 1
      %p43 = por %p41, %p42
      %p44 = scmp.ne.s32.totalorder %s33, %s34
      %p45 = scmp.eq.s32.totalorder %s25, 0
      %p46 = por %p44, %p45
      %p47 = scmp.ne.s32.totalorder %s33, %s34
      %p48 = scmp.eq.s32.totalorder %s26, 1
      %p49 = por %p47, %p48
      %p51 = scmp.ne.s32.totalorder %s34, %s50
      %p52 = scmp.eq.s32.totalorder %s26, 0
      %p53 = por %p51, %p52
      %s55 = sadd.s32 %s54, 1
      %p58 = scmp.eq.s32.totalorder %s20, 1
      %p59 = scmp.ne.s32.totalorder %s54, %s56
      %p60 = scmp.eq.s32.totalorder %s20, 0
      %p61 = por %p59, %p60
      %p62 = scmp.ne.s32.totalorder %s54, %s56
      %p63 = scmp.eq.s32.totalorder %s25, 1
      %p64 = por %p62, %p63
      %p65 = scmp.ne.s32.totalorder %s56, %s57
      %p66 = scmp.eq.s32.totalorder %s25, 0
      %p67 = por %p65, %p66
      %p68 = scmp.ne.s32.totalorder %s56, %s57
      %p69 = scmp.eq.s32.totalorder %s26, 1
      %p70 = por %p68, %p69
      %p72 = scmp.ne.s32.totalorder %s57, %s71
      %p73 = scmp.eq.s32.totalorder %s26, 0
      %p74 = por %p72, %p73
      %s76 = sadd.s32 %s75, 1
      %p79 = scmp.eq.s32.totalorder %s20, 1
      %p80 = scmp.ne.s32.totalorder %s75, %s77
      %p81 = scmp.eq.s32.totalorder %s20, 0
      %p82 = por %p80, %p81
      %p83 = scmp.ne.s32.totalorder %s75, %s77
      %p84 = scmp.eq.s32.totalorder %s25, 1
      %p85 = por %p83, %p84
      %p86 = scmp.ne.s32.totalorder %s77, %s78
      %p87 = scmp.eq.s32.totalorder %s25, 0
      %p88 = por %p86, %p87
      %p89 = scmp.ne.s32.totalorder %s77, %s78
      %p90 = scmp.eq.s32.totalorder %s26, 1
      %p91 = por %p89, %p90
      %p93 = scmp.ne.s32.totalorder %s78, %s92
      %p94 = scmp.eq.s32.totalorder %s26, 0
      %p95 = por %p93, %p94
      %s97 = sadd.s32 %s96, 1
      %p100 = scmp.eq.s32.totalorder %s20, 1
      %p101 = scmp.ne.s32.totalorder %s96, %s98
      %p102 = scmp.eq.s32.totalorder %s20, 0
      %p103 = por %p101, %p102
      %p104 = scmp.ne.s32.totalorder %s96, %s98
      %p105 = scmp.eq.s32.totalorder %s25, 1
      %p106 = por %p104, %p105
      %p107 = scmp.ne.s32.totalorder %s98, %s99
      %p108 = scmp.eq.s32.totalorder %s25, 0
      %p109 = por %p107, %p108
      %p110 = scmp.ne.s32.totalorder %s98, %s99
      %p111 = scmp.eq.s32.totalorder %s26, 1
      %p112 = por %p110, %p111
      %p114 = scmp.ne.s32.totalorder %s99, %s113
      %p115 = scmp.eq.s32.totalorder %s26, 0
      %p116 = por %p114, %p115
      %s118 = sadd.s32 %s117, 1
      %p121 = scmp.eq.s32.totalorder %s20, 1
      %p122 = scmp.ne.s32.totalorder %s117, %s119
      %p123 = scmp.eq.s32.totalorder %s20, 0
      %p124 = por %p122, %p123
      %p125 = scmp.ne.s32.totalorder %s117, %s119
      %p126 = scmp.eq.s32.totalorder %s25, 1
      %p127 = por %p125, %p126
      %p128 = scmp.ne.s32.totalorder %s119, %s120
      %p129 = scmp.eq.s32.totalorder %s25, 0
      %p130 = por %p128, %p129
      %p131 = scmp.ne.s32.totalorder %s119, %s120
      %p132 = scmp.eq.s32.totalorder %s26, 1
      %p133 = por %p131, %p132
      %p135 = scmp.ne.s32.totalorder %s120, %s134
      %p136 = scmp.eq.s32.totalorder %s26, 0
      %p137 = por %p135, %p136
      %s139 = sadd.s32 %s138, 1
      %p142 = scmp.eq.s32.totalorder %s20, 1
      %p143 = scmp.ne.s32.totalorder %s138, %s140
      %p144 = scmp.eq.s32.totalorder %s20, 0
      %p145 = por %p143, %p144
      %p146 = scmp.ne.s32.totalorder %s138, %s140
      %p147 = scmp.eq.s32.totalorder %s25, 1
      %p148 = por %p146, %p147
      %p149 = scmp.ne.s32.totalorder %s140, %s141
      %p150 = scmp.eq.s32.totalorder %s25, 0
      %p151 = por %p149, %p150
      %p152 = scmp.ne.s32.totalorder %s140, %s141
      %p153 = scmp.eq.s32.totalorder %s26, 1
      %p154 = por %p152, %p153
      %p156 = scmp.ne.s32.totalorder %s141, %s155
      %p157 = scmp.eq.s32.totalorder %s26, 0
      %p158 = por %p156, %p157
      %s160 = sadd.s32 %s159, 1
      %p163 = scmp.eq.s32.totalorder %s20, 1
      %p164 = scmp.ne.s32.totalorder %s159, %s161
      %p165 = scmp.eq.s32.totalorder %s20, 0
      %p166 = por %p164, %p165
      %p167 = scmp.ne.s32.totalorder %s159, %s161
      %p168 = scmp.eq.s32.totalorder %s25, 1
      %p169 = por %p167, %p168
      %p170 = scmp.ne.s32.totalorder %s161, %s162
      %p171 = scmp.eq.s32.totalorder %s25, 0
      %p172 = por %p170, %p171
      %p173 = scmp.ne.s32.totalorder %s161, %s162
      %p174 = scmp.eq.s32.totalorder %s26, 1
      %p175 = por %p173, %p174
      %p177 = scmp.ne.s32.totalorder %s162, %s176
      %p178 = scmp.eq.s32.totalorder %s26, 0
      %p179 = por %p177, %p178
      %s181 = sadd.s32 %s180, 1
      %p184 = scmp.eq.s32.totalorder %s20, 1
      %p185 = scmp.ne.s32.totalorder %s180, %s182
      %p186 = scmp.eq.s32.totalorder %s20, 0
      %p187 = por %p185, %p186
      %p188 = scmp.ne.s32.totalorder %s180, %s182
      %p189 = scmp.eq.s32.totalorder %s25, 1
      %p190 = por %p188, %p189
      %p191 = scmp.ne.s32.totalorder %s182, %s183
      %p192 = scmp.eq.s32.totalorder %s25, 0
      %p193 = por %p191, %p192
      %p194 = scmp.ne.s32.totalorder %s182, %s183
      %p195 = scmp.eq.s32.totalorder %s26, 1
      %p196 = por %p194, %p195
      %p198 = scmp.ne.s32.totalorder %s183, %s197
      %p199 = scmp.eq.s32.totalorder %s26, 0
      %p200 = por %p198, %p199
      %s202 = sadd.s32 %s201, 1
      %p205 = scmp.eq.s32.totalorder %s20, 1
      %p206 = scmp.ne.s32.totalorder %s201, %s203
      %p207 = scmp.eq.s32.totalorder %s20, 0
      %p208 = por %p206, %p207
      %p209 = scmp.ne.s32.totalorder %s201, %s203
      %p210 = scmp.eq.s32.totalorder %s25, 1
      %p211 = por %p209, %p210
      %p212 = scmp.ne.s32.totalorder %s203, %s204
      %p213 = scmp.eq.s32.totalorder %s25, 0
      %p214 = por %p212, %p213
      %p215 = scmp.ne.s32.totalorder %s203, %s204
      %p216 = scmp.eq.s32.totalorder %s26, 1
      %p217 = por %p215, %p216
      %p219 = scmp.ne.s32.totalorder %s204, %s218
      %p220 = scmp.eq.s32.totalorder %s26, 0
      %p221 = por %p219, %p220
      %s223 = sadd.s32 %s222, 1
      %p226 = scmp.eq.s32.totalorder %s20, 1
      %p227 = scmp.ne.s32.totalorder %s222, %s224
      %p228 = scmp.eq.s32.totalorder %s20, 0
      %p229 = por %p227, %p228
      %p230 = scmp.ne.s32.totalorder %s222, %s224
      %p231 = scmp.eq.s32.totalorder %s25, 1
      %p232 = por %p230, %p231
      %p233 = scmp.ne.s32.totalorder %s224, %s225
      %p234 = scmp.eq.s32.totalorder %s25, 0
      %p235 = por %p233, %p234
      %p236 = scmp.ne.s32.totalorder %s224, %s225
      %p237 = scmp.eq.s32.totalorder %s26, 1
      %p238 = por %p236, %p237
      %p240 = scmp.ne.s32.totalorder %s225, %s239
      %p241 = scmp.eq.s32.totalorder %s26, 0
      %p242 = por %p240, %p241
      %s243 = ssub.s32 %s20, %s27
      %p244 = scmp.eq.s32.totalorder %s243, 0
      %s246 = sadd.s32 %s245, 1
      %s247 = scalar_select %p244, %s245, %s246
      %p250 = pneg %p244
      %p251 = scmp.eq.s32.totalorder %s20, 1
      %p252 = por %p250, %p251
      %p253 = scmp.ne.s32.totalorder %s245, %s248
      %p254 = scmp.eq.s32.totalorder %s20, 0
      %p255 = por %p253, %p254
      %p256 = scmp.ne.s32.totalorder %s245, %s248
      %p257 = scmp.eq.s32.totalorder %s25, 1
      %p258 = por %p256, %p257
      %p259 = scmp.ne.s32.totalorder %s248, %s249
      %p260 = scmp.eq.s32.totalorder %s25, 0
      %p261 = por %p259, %p260
      %p262 = scmp.ne.s32.totalorder %s248, %s249
      %p263 = scmp.eq.s32.totalorder %s26, 1
      %p264 = por %p262, %p263
      %p266 = scmp.ne.s32.totalorder %s249, %s265
      %p267 = scmp.eq.s32.totalorder %s26, 0
      %p268 = por %p266, %p267
      %p269 = scmp.le.s32.totalorder 1, %s20
      %p270 = scmp.lt.s32.totalorder %s20, 3
      %p271 = pnand %p269, %p270
      %p272 = pneg %p271
      // Predicated region
      $region9: #{gnet_forward.3} parent=5 // pred_check
        _
      $region10: #{gnet_forward.3} parent=5 // pred_check_branch
        %274 = sbr.rel (%p271) target = $region12
      $region11: #{gnet_forward.3} parent=5 // pred_region
        %s275 = ssub.s32 %s20, 1
        // Predicated region
        $region13: #{gnet_forward.3} parent=11 // pred_check
          %p276 = pneg %p67
        $region14: #{gnet_forward.3} parent=11 // pred_check_branch
          %278 = sbr.rel (%p276) target = $region16
        $region15: #{gnet_forward.3} parent=11 // pred_region
          _
        $region16: #{gnet_forward.3} parent=11 // pred_fallthru
          _
        // Predicated region
        $region17: #{gnet_forward.3} parent=11 // pred_check
          %p279 = pneg %p88
        $region18: #{gnet_forward.3} parent=11 // pred_check_branch
          %281 = sbr.rel (%p279) target = $region20
        $region19: #{gnet_forward.3} parent=11 // pred_region
          %283 = vsyncadd [#allocation7], 0
          %s284 = sshll.u32 %s2, 4
          %s285 = int_to_ptr.hbm [resolvable:$true] %s284
          %s286 = sshll.u32 [#allocation6], 4
          %s287 = int_to_ptr.vmem [resolvable:$true] %s286
          %292 = dma.hbm_to_vmem [thread:$0]  %s285, 14336, %s287, [#allocation7], 512, 512, 32
        $region20: #{gnet_forward.3} parent=11 // pred_fallthru
          _
        // Predicated region
        $region21: #{gnet_forward.3} parent=11 // pred_check
          %p293 = pneg %p109
        $region22: #{gnet_forward.3} parent=11 // pred_check_branch
          %295 = sbr.rel (%p293) target = $region24
        $region23: #{gnet_forward.3} parent=11 // pred_region
          %297 = vsyncadd [#allocation9], 0
          %s298 = sshll.u32 %s3, 4
          %s299 = int_to_ptr.hbm [resolvable:$true] %s298
          %s300 = sshll.u32 [#allocation8], 4
          %s301 = int_to_ptr.vmem [resolvable:$true] %s300
          %306 = dma.hbm_to_vmem [thread:$0]  %s299, 1152, %s301, [#allocation9], 64, 64, 4
        $region24: #{gnet_forward.3} parent=11 // pred_fallthru
          _
        // Predicated region
        $region25: #{gnet_forward.3} parent=11 // pred_check
          %p307 = pneg %p130
        $region26: #{gnet_forward.3} parent=11 // pred_check_branch
          %309 = sbr.rel (%p307) target = $region28
        $region27: #{gnet_forward.3} parent=11 // pred_region
          %311 = vsyncadd [#allocation9], 0
          %s312 = sshll.u32 %s4, 4
          %s313 = int_to_ptr.hbm [resolvable:$true] %s312
          %s314 = sshll.u32 [#allocation10], 4
          %s315 = int_to_ptr.vmem [resolvable:$true] %s314
          %320 = dma.hbm_to_vmem [thread:$0]  %s313, 576, %s315, [#allocation9], 64, 64, 4
        $region28: #{gnet_forward.3} parent=11 // pred_fallthru
          _
        // Predicated region
        $region29: #{gnet_forward.3} parent=11 // pred_check
          %p321 = pneg %p151
        $region30: #{gnet_forward.3} parent=11 // pred_check_branch
          %323 = sbr.rel (%p321) target = $region32
        $region31: #{gnet_forward.3} parent=11 // pred_region
          _
        $region32: #{gnet_forward.3} parent=11 // pred_fallthru
          _
        // Predicated region
        $region33: #{gnet_forward.3} parent=11 // pred_check
          %p324 = pneg %p172
        $region34: #{gnet_forward.3} parent=11 // pred_check_branch
          %326 = sbr.rel (%p324) target = $region36
        $region35: #{gnet_forward.3} parent=11 // pred_region
          _
        $region36: #{gnet_forward.3} parent=11 // pred_fallthru
          _
        // Predicated region
        $region37: #{gnet_forward.3} parent=11 // pred_check
          %p327 = pneg %p193
        $region38: #{gnet_forward.3} parent=11 // pred_check_branch
          %329 = sbr.rel (%p327) target = $region40
        $region39: #{gnet_forward.3} parent=11 // pred_region
          _
        $region40: #{gnet_forward.3} parent=11 // pred_fallthru
          _
        // Predicated region
        $region41: #{gnet_forward.3} parent=11 // pred_check
          %p330 = pneg %p214
        $region42: #{gnet_forward.3} parent=11 // pred_check_branch
          %332 = sbr.rel (%p330) target = $region44
        $region43: #{gnet_forward.3} parent=11 // pred_region
          _
        $region44: #{gnet_forward.3} parent=11 // pred_fallthru
          _
        // Predicated region
        $region45: #{gnet_forward.3} parent=11 // pred_check
          %p333 = pneg %p235
        $region46: #{gnet_forward.3} parent=11 // pred_check_branch
          %335 = sbr.rel (%p333) target = $region48
        $region47: #{gnet_forward.3} parent=11 // pred_region
          _
        $region48: #{gnet_forward.3} parent=11 // pred_fallthru
          _
      $region12: #{gnet_forward.3} parent=5 // pred_fallthru
        _
      %p336 = scmp.lt.s32.totalorder %s20, 2
      // Predicated region
      $region49: #{gnet_forward.3} parent=5 // pred_check
        %p337 = pneg %p336
      $region50: #{gnet_forward.3} parent=5 // pred_check_branch
        %339 = sbr.rel (%p337) target = $region52
      $region51: #{gnet_forward.3} parent=5 // pred_region
        // Predicated region
        $region53: #{gnet_forward.3} parent=51 // pred_check
          %p340 = pneg %p40
        $region54: #{gnet_forward.3} parent=51 // pred_check_branch
          %342 = sbr.rel (%p340) target = $region56
        $region55: #{gnet_forward.3} parent=51 // pred_region
          %p343 = scmp.lt.s32.totalorder %s20, 1
          %s344 = scalar_select %p343, %s20, 1
          %s345 = smul.addr %s344, 4
          %s346 = smul.addr %s345, 4
          %s347 = scalar_lea.vmem %s0, %s346
        $region56: #{gnet_forward.3} parent=51 // pred_fallthru
          _
      $region52: #{gnet_forward.3} parent=5 // pred_fallthru
        _
      %p348 = scmp.le.s32.totalorder 1, %s20
      %p349 = scmp.lt.s32.totalorder %s20, 3
      %p350 = pnand %p348, %p349
      %p351 = pneg %p350
      // Predicated region
      $region57: #{gnet_forward.3} parent=5 // pred_check
        _
      $region58: #{gnet_forward.3} parent=5 // pred_check_branch
        %353 = sbr.rel (%p350) target = $region60
      $region59: #{gnet_forward.3} parent=5 // pred_region
        %s354 = ssub.s32 %s20, 1
        // Predicated region
        $region61: #{gnet_forward.3} parent=59 // pred_check
          %p355 = pneg %p88
        $region62: #{gnet_forward.3} parent=59 // pred_check_branch
          %357 = sbr.rel (%p355) target = $region64
        $region63: #{gnet_forward.3} parent=59 // pred_region
          %359 = dma.done [#allocation7], 14336
        $region64: #{gnet_forward.3} parent=59 // pred_fallthru
          _
        // Predicated region
        $region65: #{gnet_forward.3} parent=59 // pred_check
          %p360 = pneg %p109
        $region66: #{gnet_forward.3} parent=59 // pred_check_branch
          %362 = sbr.rel (%p360) target = $region68
        $region67: #{gnet_forward.3} parent=59 // pred_region
          %364 = dma.done [#allocation9], 1152
        $region68: #{gnet_forward.3} parent=59 // pred_fallthru
          _
        // Predicated region
        $region69: #{gnet_forward.3} parent=59 // pred_check
          %p365 = pneg %p130
        $region70: #{gnet_forward.3} parent=59 // pred_check_branch
          %367 = sbr.rel (%p365) target = $region72
        $region71: #{gnet_forward.3} parent=59 // pred_region
          %369 = dma.done [#allocation9], 576
        $region72: #{gnet_forward.3} parent=59 // pred_fallthru
          _
        %p370 = scmp.lt.s32.totalorder %s25, 1
        %s371 = scalar_select %p370, %s25, 1
        %s372 = smul.addr %s371, 4
        %s373 = smul.addr %s372, 4
        %s374 = scalar_lea.vmem %s0, %s373
        %p375 = pneg %p46
        %p376 = pneg %p43
        %p377 = pneg %p67
        %p378 = pneg %p64
        %p379 = pneg %p88
        %p380 = pneg %p85
        %p381 = pneg %p109
        %p382 = pneg %p106
        %p383 = pneg %p130
        %p384 = pneg %p127
        %p385 = pneg %p151
        %p386 = pneg %p148
        %p387 = pneg %p172
        %p388 = pneg %p169
        %p389 = pneg %p193
        %p390 = pneg %p190
        %p391 = pneg %p214
        %p392 = pneg %p211
        %p393 = pneg %p235
        %p394 = pneg %p232
        %p395 = pneg %p261
        %p396 = pneg %p258
        %p397 = scmp.lt.s32.totalorder %s25, 1
        %s398 = scalar_select %p397, %s25, 1
        %s399 = smul.addr %s398, 7
        %s400 = scalar_lea.vmem %s10, %s399
        %p401 = scmp.lt.s32.totalorder %s25, 1
        %s402 = scalar_select %p401, %s25, 1
        %s403 = smul.addr %s402, 4
        %s404 = smul.addr %s403, 4
        %s405 = scalar_lea.vmem %s0, %s404
        %p406 = scmp.lt.s32.totalorder %s25, 1
        %s407 = scalar_select %p406, %s25, 1
        %s408 = smul.addr %s407, 7
        %s409 = scalar_lea.vmem %s10, %s408
        %v411 = vld [vmem:[%s405] sm:$0xf]
        %v412 = vld [vmem:[%s405 + $0x4] sm:$0xf]
        %v413 = vld [vmem:[%s405 + $0x8] sm:$0xf]
        %v414 = vld [vmem:[%s405 + $0xc] sm:$0xf]
        %v415 = vld [vmem:[%s1] sm:$0xff]
        %v416 = vld [vmem:[%s1 + $0x8] sm:$0xf]
        %v417 = vld [vmem:[%s1 + $0xc] sm:$0xff]
        %v418 = vld [vmem:[%s1 + $0x14] sm:$0xf]
        %v419 = vld [vmem:[%s1 + $0x18] sm:$0xff]
        %v420 = vld [vmem:[%s1 + $0x20] sm:$0xf]
        %v421 = vld [vmem:[%s1 + $0x24] sm:$0xff]
        %v422 = vld [vmem:[%s1 + $0x2c] sm:$0xf]
        %v423 = vld [vmem:[%s1 + $0x30] sm:$0xff]
        %v424 = vld [vmem:[%s1 + $0x38] sm:$0xf]
        %v425 = vld [vmem:[%s1 + $0x3c] sm:$0xff]
        %v426 = vld [vmem:[%s1 + $0x44] sm:$0xf]
        %v427 = vld [vmem:[%s1 + $0x48] sm:$0x11]
        %v428 = vld [vmem:[%s1 + $0x50] sm:$0x1]
        %v433 = vunpack.c.l.b16 %v411
        %v434 = vunpack.c.l.b16 %v412
        %v435 = vunpack.c.l.b16 %v413
        %v436 = vunpack.c.l.b16 %v414
        %v437 = vpack.c.b16 %v434, %v433
        %v438 = vpack.c.b16 %v436, %v435
        %v453 = vunpack.c.l.b16 %v415
        %v454 = vunpack.c.h.b16 %v415
        %v455 = vunpack.c.l.b16 %v416
        %v456 = vunpack.c.l.b16 %v417
        %v457 = vunpack.c.h.b16 %v417
        %v458 = vunpack.c.l.b16 %v418
        %v459 = vunpack.c.l.b16 %v419
        %v460 = vunpack.c.h.b16 %v419
        %v461 = vunpack.c.l.b16 %v420
        %v462 = vunpack.c.l.b16 %v421
        %v463 = vunpack.c.h.b16 %v421
        %v464 = vunpack.c.l.b16 %v422
        %v465 = vunpack.c.l.b16 %v423
        %v466 = vunpack.c.h.b16 %v423
        %v467 = vunpack.c.l.b16 %v424
        %v468 = vunpack.c.l.b16 %v425
        %v469 = vunpack.c.h.b16 %v425
        %v470 = vunpack.c.l.b16 %v426
        %v471 = vunpack.c.l.b16 %v427
        %v472 = vunpack.c.h.b16 %v427
        %v473 = vunpack.c.l.b16 %v428
        %v474 = vpack.c.b16 %v456, %v453
        %v475 = vpack.c.b16 %v457, %v454
        %v476 = vpack.c.b16 %v458, %v455
        %v477 = vpack.c.b16 %v462, %v459
        %v478 = vpack.c.b16 %v463, %v460
        %v479 = vpack.c.b16 %v464, %v461
        %v480 = vpack.c.b16 %v468, %v465
        %v481 = vpack.c.b16 %v469, %v466
        %v482 = vpack.c.b16 %v470, %v467
        %v483 = vpack.c.b16 %v471, %v471
        %v484 = vpack.c.b16 %v472, %v472
        %v485 = vpack.c.b16 %v473, %v473
        %vm495 = vcmask 400384
        %v497 = vsel %vm495, %v437, 0
        %v500 = vsel %vm495, %v438, 0
        %vm502 = vcmask 1040384
        %v503 = vsel 0, 4294967295, 65535
        %v504 = vsel %vm502, %v503, 0
        %v506 = vand.u32 %v483, %v504
        %v509 = vand.u32 %v484, %v504
        %v512 = vand.u32 %v485, %v504
        %514 = vmatpush.bf16.msra.mxu0 0
        %515 = vmatpush.bf16.msra.mxu0 0
        %516 = vmatpush.bf16.msra.mxu0 0
        %517 = vmatpush.bf16.msra.mxu0 0
        %518 = vmatpush.bf16.msra.mxu0 %v506
        %519 = vmatpush.bf16.msra.mxu0 %v480
        %520 = vmatpush.bf16.msra.mxu0 %v477
        %521 = vmatpush.bf16.msra.mxu0 %v474
        %522 = vmatmul.bf16.gmra.mxu0 %v497
        %v523 = vpop.f32.mrf.mxu0
        %v524 = vadd.f32 0.0, %v523
        %v525 = vpop.f32.mrf.mxu0
        %v526 = vadd.f32 0.0, %v525
        %527 = vmatmul.bf16.gmra.mxu0 %v500
        %v528 = vpop.f32.mrf.mxu0
        %v529 = vadd.f32 0.0, %v528
        %v530 = vpop.f32.mrf.mxu0
        %v531 = vadd.f32 0.0, %v530
        %532 = vdwg.mxu0
        %533 = vmatpush.bf16.msra.mxu0 0
        %534 = vmatpush.bf16.msra.mxu0 0
        %535 = vmatpush.bf16.msra.mxu0 0
        %536 = vmatpush.bf16.msra.mxu0 0
        %537 = vmatpush.bf16.msra.mxu0 %v509
        %538 = vmatpush.bf16.msra.mxu0 %v481
        %539 = vmatpush.bf16.msra.mxu0 %v478
        %540 = vmatpush.bf16.msra.mxu0 %v475
        %541 = vmatmul.bf16.gmra.mxu0 %v497
        %v542 = vpop.f32.mrf.mxu0
        %v543 = vadd.f32 0.0, %v542
        %v544 = vpop.f32.mrf.mxu0
        %v545 = vadd.f32 0.0, %v544
        %546 = vmatmul.bf16.gmra.mxu0 %v500
        %v547 = vpop.f32.mrf.mxu0
        %v548 = vadd.f32 0.0, %v547
        %v549 = vpop.f32.mrf.mxu0
        %v550 = vadd.f32 0.0, %v549
        %551 = vdwg.mxu0
        %552 = vmatpush.bf16.msra.mxu0 0
        %553 = vmatpush.bf16.msra.mxu0 0
        %554 = vmatpush.bf16.msra.mxu0 0
        %555 = vmatpush.bf16.msra.mxu0 0
        %556 = vmatpush.bf16.msra.mxu0 %v512
        %557 = vmatpush.bf16.msra.mxu0 %v482
        %558 = vmatpush.bf16.msra.mxu0 %v479
        %559 = vmatpush.bf16.msra.mxu0 %v476
        %560 = vmatmul.bf16.gmra.mxu0 %v497
        %v561 = vpop.f32.mrf.mxu0
        %v562 = vadd.f32 0.0, %v561
        %v563 = vpop.f32.mrf.mxu0
        %v564 = vadd.f32 0.0, %v563
        %565 = vmatmul.bf16.gmra.mxu0 %v500
        %v566 = vpop.f32.mrf.mxu0
        %v567 = vadd.f32 0.0, %v566
        %v568 = vpop.f32.mrf.mxu0
        %v569 = vadd.f32 0.0, %v568
        %570 = vdwg.mxu0
        %v571 = vpack.c.bf16 %v543, %v524
        %v572 = vpack.c.bf16 %v562, %v562
        %v573 = vpack.c.bf16 %v545, %v526
        %v574 = vpack.c.bf16 %v564, %v564
        %v575 = vpack.c.bf16 %v548, %v529
        %v576 = vpack.c.bf16 %v567, %v567
        %v577 = vpack.c.bf16 %v550, %v531
        %v578 = vpack.c.bf16 %v569, %v569
        %579 = vst [vmem:[#allocation2] sm:$0xff] %v571
        %vm580 = vcmask 11264
        %581 = vst.msk [vmem:[#allocation2 + $0x8] sm:$0xf] %vm580, %v572
        %582 = vst [vmem:[#allocation2 + $0xc] sm:$0xff] %v573
        %583 = vst.msk [vmem:[#allocation2 + $0x14] sm:$0xf] %vm580, %v574
        %584 = vst [vmem:[#allocation2 + $0x18] sm:$0xff] %v575
        %585 = vst.msk [vmem:[#allocation2 + $0x20] sm:$0xf] %vm580, %v576
        %586 = vst [vmem:[#allocation2 + $0x24] sm:$0xff] %v577
        %587 = vst.msk [vmem:[#allocation2 + $0x2c] sm:$0xf] %vm580, %v578
        %v588 = vld [vmem:[#allocation8] sm:$0xf]
        %v589 = vld [vmem:[#allocation8 + $0x4] sm:$0xf]
        %v590 = vld [vmem:[#allocation2] sm:$0xff]
        %v591 = vld [vmem:[#allocation2 + $0xc] sm:$0xff]
        %v592 = vld [vmem:[#allocation2 + $0x18] sm:$0xff]
        %v593 = vld [vmem:[#allocation2 + $0x24] sm:$0xff]
        %s594 = scalar_lea.vmem [#allocation8], 8
        %v595 = vld [vmem:[%s594] sm:$0xf]
        %v596 = vld [vmem:[%s594 + $0x4] sm:$0xf]
        %v599 = vunpack.c.l.b16 %v595
        %v600 = vunpack.c.l.b16 %v596
        %v601 = vpack.c.b16 %v600, %v599
        %v606 = vunpack.c.l.b16 %v590
        %v607 = vunpack.c.h.b16 %v590
        %v608 = vunpack.c.l.b16 %v591
        %v609 = vunpack.c.h.b16 %v591
        %v610 = vunpack.c.l.b16 %v592
        %v611 = vunpack.c.h.b16 %v592
        %v612 = vunpack.c.l.b16 %v593
        %v613 = vunpack.c.h.b16 %v593
        %v614 = vpack.c.b16 %v608, %v606
        %v615 = vpack.c.b16 %v609, %v607
        %v616 = vpack.c.b16 %v612, %v610
        %v617 = vpack.c.b16 %v613, %v611
        %618 = vrot.lane.b32.xlu0 %v614, 127
        %v619 = vpop.permute.xlu0 %618
        %620 = vrot.lane.b32.xlu0 %v615, 127
        %v621 = vpop.permute.xlu0 %620
        %622 = vrot.lane.b32.xlu0 %v616, 127
        %v623 = vpop.permute.xlu0 %622
        %624 = vrot.lane.b32.xlu0 %v617, 127
        %v625 = vpop.permute.xlu0 %624
        %vm626 = vcmask 1039360
        %v627 = vsel %vm626, %v619, %v621
        %v628 = vsel %vm626, %v623, %v625
        %vm633 = vcmask 261120
        %v635 = vsel %vm633, %v601, 0
        %637 = vmatpush.bf16.msra.mxu0 0
        %638 = vmatpush.bf16.msra.mxu0 0
        %639 = vmatpush.bf16.msra.mxu0 0
        %640 = vmatpush.bf16.msra.mxu0 0
        %641 = vmatpush.bf16.msra.mxu0 0
        %642 = vmatpush.bf16.msra.mxu0 0
        %643 = vmatpush.bf16.msra.mxu0 %v628
        %644 = vmatpush.bf16.msra.mxu0 %v627
        %645 = vmatmul.bf16.gmra.mxu0 %v635
        %v646 = vpop.f32.mrf.mxu0
        %v647 = vadd.f32 0.0, %v646
        %v648 = vpop.f32.mrf.mxu0
        %v649 = vadd.f32 0.0, %v648
        %650 = vdwg.mxu0
        %651 = vmatpush.bf16.msra.mxu0 0
        %652 = vmatpush.bf16.msra.mxu0 0
        %653 = vmatpush.bf16.msra.mxu0 0
        %654 = vmatpush.bf16.msra.mxu0 0
        %655 = vmatpush.bf16.msra.mxu0 0
        %656 = vmatpush.bf16.msra.mxu0 0
        %657 = vmatpush.bf16.msra.mxu0 %v625
        %658 = vmatpush.bf16.msra.mxu0 %v621
        %659 = vmatmul.bf16.gmra.mxu0 %v635
        %v660 = vpop.f32.mrf.mxu0
        %v661 = vadd.f32 0.0, %v660
        %v662 = vpop.f32.mrf.mxu0
        %v663 = vadd.f32 0.0, %v662
        %664 = vdwg.mxu0
        %v667 = vunpack.c.l.b16 %v588
        %v668 = vunpack.c.l.b16 %v589
        %v669 = vpack.c.b16 %v668, %v667
        %v675 = vsel %vm633, %v669, 0
        %677 = vmatpush.bf16.msra.mxu0 0
        %678 = vmatpush.bf16.msra.mxu0 0
        %679 = vmatpush.bf16.msra.mxu0 0
        %680 = vmatpush.bf16.msra.mxu0 0
        %681 = vmatpush.bf16.msra.mxu0 0
        %682 = vmatpush.bf16.msra.mxu0 0
        %683 = vmatpush.bf16.msra.mxu0 %v616
        %684 = vmatpush.bf16.msra.mxu0 %v614
        %685 = vmatmul.bf16.gmra.mxu0 %v675
        %v686 = vpop.f32.mrf.mxu0
        %v687 = vadd.f32 %v647, %v686
        %v688 = vpop.f32.mrf.mxu0
        %v689 = vadd.f32 %v649, %v688
        %690 = vdwg.mxu0
        %691 = vmatpush.bf16.msra.mxu0 0
        %692 = vmatpush.bf16.msra.mxu0 0
        %693 = vmatpush.bf16.msra.mxu0 0
        %694 = vmatpush.bf16.msra.mxu0 0
        %695 = vmatpush.bf16.msra.mxu0 0
        %696 = vmatpush.bf16.msra.mxu0 0
        %697 = vmatpush.bf16.msra.mxu0 %v617
        %698 = vmatpush.bf16.msra.mxu0 %v615
        %699 = vmatmul.bf16.gmra.mxu0 %v675
        %v700 = vpop.f32.mrf.mxu0
        %v701 = vadd.f32 %v661, %v700
        %v702 = vpop.f32.mrf.mxu0
        %v703 = vadd.f32 %v663, %v702
        %704 = vdwg.mxu0
        %s705 = scalar_lea.vmem [#allocation8], 16
        %v706 = vld [vmem:[%s705] sm:$0xf]
        %v707 = vld [vmem:[%s705 + $0x4] sm:$0xf]
        %v710 = vunpack.c.l.b16 %v706
        %v711 = vunpack.c.l.b16 %v707
        %v712 = vpack.c.b16 %v711, %v710
        %713 = vrot.lane.b32.xlu0 %v614, 126
        %v714 = vpop.permute.xlu0 %713
        %715 = vrot.lane.b32.xlu0 %v615, 126
        %v716 = vpop.permute.xlu0 %715
        %717 = vrot.lane.b32.xlu0 %v616, 126
        %v718 = vpop.permute.xlu0 %717
        %719 = vrot.lane.b32.xlu0 %v617, 126
        %v720 = vpop.permute.xlu0 %719
        %vm721 = vcmask 1031168
        %v722 = vsel %vm721, %v714, %v716
        %v723 = vsel %vm721, %v718, %v720
        %v729 = vsel %vm633, %v712, 0
        %731 = vmatpush.bf16.msra.mxu0 0
        %732 = vmatpush.bf16.msra.mxu0 0
        %733 = vmatpush.bf16.msra.mxu0 0
        %734 = vmatpush.bf16.msra.mxu0 0
        %735 = vmatpush.bf16.msra.mxu0 0
        %736 = vmatpush.bf16.msra.mxu0 0
        %737 = vmatpush.bf16.msra.mxu0 %v723
        %738 = vmatpush.bf16.msra.mxu0 %v722
        %739 = vmatmul.bf16.gmra.mxu0 %v729
        %v740 = vpop.f32.mrf.mxu0
        %v741 = vadd.f32 0.0, %v740
        %v742 = vpop.f32.mrf.mxu0
        %v743 = vadd.f32 0.0, %v742
        %744 = vdwg.mxu0
        %745 = vmatpush.bf16.msra.mxu0 0
        %746 = vmatpush.bf16.msra.mxu0 0
        %747 = vmatpush.bf16.msra.mxu0 0
        %748 = vmatpush.bf16.msra.mxu0 0
        %749 = vmatpush.bf16.msra.mxu0 0
        %750 = vmatpush.bf16.msra.mxu0 0
        %751 = vmatpush.bf16.msra.mxu0 %v720
        %752 = vmatpush.bf16.msra.mxu0 %v716
        %753 = vmatmul.bf16.gmra.mxu0 %v729
        %v754 = vpop.f32.mrf.mxu0
        %v755 = vadd.f32 0.0, %v754
        %v756 = vpop.f32.mrf.mxu0
        %v757 = vadd.f32 0.0, %v756
        %758 = vdwg.mxu0
        %v759 = vadd.f32 %v687, %v741
        %v760 = vadd.f32 %v701, %v755
        %v761 = vadd.f32 %v689, %v743
        %v762 = vadd.f32 %v703, %v757
        %s763 = scalar_lea.vmem [#allocation8], 24
        %v764 = vld [vmem:[%s763] sm:$0xf]
        %v765 = vld [vmem:[%s763 + $0x4] sm:$0xf]
        %v768 = vunpack.c.l.b16 %v764
        %v769 = vunpack.c.l.b16 %v765
        %v770 = vpack.c.b16 %v769, %v768
        %771 = vrot.lane.b32.xlu0 %v614, 112
        %v772 = vpop.permute.xlu0 %771
        %773 = vrot.lane.b32.xlu0 %v615, 112
        %v774 = vpop.permute.xlu0 %773
        %775 = vrot.lane.b32.xlu0 %v616, 112
        %v776 = vpop.permute.xlu0 %775
        %777 = vrot.lane.b32.xlu0 %v617, 112
        %v778 = vpop.permute.xlu0 %777
        %vm779 = vcmask 916480
        %v780 = vsel %vm779, %v772, %v774
        %v781 = vsel %vm779, %v776, %v778
        %v787 = vsel %vm633, %v770, 0
        %789 = vmatpush.bf16.msra.mxu0 0
        %790 = vmatpush.bf16.msra.mxu0 0
        %791 = vmatpush.bf16.msra.mxu0 0
        %792 = vmatpush.bf16.msra.mxu0 0
        %793 = vmatpush.bf16.msra.mxu0 0
        %794 = vmatpush.bf16.msra.mxu0 0
        %795 = vmatpush.bf16.msra.mxu0 %v781
        %796 = vmatpush.bf16.msra.mxu0 %v780
        %797 = vmatmul.bf16.gmra.mxu0 %v787
        %v798 = vpop.f32.mrf.mxu0
        %v799 = vadd.f32 0.0, %v798
        %v800 = vpop.f32.mrf.mxu0
        %v801 = vadd.f32 0.0, %v800
        %802 = vdwg.mxu0
        %803 = vmatpush.bf16.msra.mxu0 0
        %804 = vmatpush.bf16.msra.mxu0 0
        %805 = vmatpush.bf16.msra.mxu0 0
        %806 = vmatpush.bf16.msra.mxu0 0
        %807 = vmatpush.bf16.msra.mxu0 0
        %808 = vmatpush.bf16.msra.mxu0 0
        %809 = vmatpush.bf16.msra.mxu0 %v778
        %810 = vmatpush.bf16.msra.mxu0 %v774
        %811 = vmatmul.bf16.gmra.mxu0 %v787
        %v812 = vpop.f32.mrf.mxu0
        %v813 = vadd.f32 0.0, %v812
        %v814 = vpop.f32.mrf.mxu0
        %v815 = vadd.f32 0.0, %v814
        %816 = vdwg.mxu0
        %v817 = vadd.f32 %v759, %v799
        %v818 = vadd.f32 %v760, %v813
        %v819 = vadd.f32 %v761, %v801
        %v820 = vadd.f32 %v762, %v815
        %s821 = scalar_lea.vmem [#allocation8], 32
        %v822 = vld [vmem:[%s821] sm:$0xf]
        %v823 = vld [vmem:[%s821 + $0x4] sm:$0xf]
        %v826 = vunpack.c.l.b16 %v822
        %v827 = vunpack.c.l.b16 %v823
        %v828 = vpack.c.b16 %v827, %v826
        %829 = vrot.lane.b32.xlu0 %v614, 111
        %v830 = vpop.permute.xlu0 %829
        %831 = vrot.lane.b32.xlu0 %v615, 111
        %v832 = vpop.permute.xlu0 %831
        %833 = vrot.lane.b32.xlu0 %v616, 111
        %v834 = vpop.permute.xlu0 %833
        %835 = vrot.lane.b32.xlu0 %v617, 111
        %v836 = vpop.permute.xlu0 %835
        %vm837 = vcmask 908288
        %v838 = vsel %vm837, %v830, %v832
        %v839 = vsel %vm837, %v834, %v836
        %v845 = vsel %vm633, %v828, 0
        %847 = vmatpush.bf16.msra.mxu0 0
        %848 = vmatpush.bf16.msra.mxu0 0
        %849 = vmatpush.bf16.msra.mxu0 0
        %850 = vmatpush.bf16.msra.mxu0 0
        %851 = vmatpush.bf16.msra.mxu0 0
        %852 = vmatpush.bf16.msra.mxu0 0
        %853 = vmatpush.bf16.msra.mxu0 %v839
        %854 = vmatpush.bf16.msra.mxu0 %v838
        %855 = vmatmul.bf16.gmra.mxu0 %v845
        %v856 = vpop.f32.mrf.mxu0
        %v857 = vadd.f32 0.0, %v856
        %v858 = vpop.f32.mrf.mxu0
        %v859 = vadd.f32 0.0, %v858
        %860 = vdwg.mxu0
        %861 = vmatpush.bf16.msra.mxu0 0
        %862 = vmatpush.bf16.msra.mxu0 0
        %863 = vmatpush.bf16.msra.mxu0 0
        %864 = vmatpush.bf16.msra.mxu0 0
        %865 = vmatpush.bf16.msra.mxu0 0
        %866 = vmatpush.bf16.msra.mxu0 0
        %867 = vmatpush.bf16.msra.mxu0 %v836
        %868 = vmatpush.bf16.msra.mxu0 %v832
        %869 = vmatmul.bf16.gmra.mxu0 %v845
        %v870 = vpop.f32.mrf.mxu0
        %v871 = vadd.f32 0.0, %v870
        %v872 = vpop.f32.mrf.mxu0
        %v873 = vadd.f32 0.0, %v872
        %874 = vdwg.mxu0
        %v875 = vadd.f32 %v817, %v857
        %v876 = vadd.f32 %v818, %v871
        %v877 = vadd.f32 %v819, %v859
        %v878 = vadd.f32 %v820, %v873
        %s879 = scalar_lea.vmem [#allocation8], 40
        %v880 = vld [vmem:[%s879] sm:$0xf]
        %v881 = vld [vmem:[%s879 + $0x4] sm:$0xf]
        %v884 = vunpack.c.l.b16 %v880
        %v885 = vunpack.c.l.b16 %v881
        %v886 = vpack.c.b16 %v885, %v884
        %887 = vrot.lane.b32.xlu0 %v614, 110
        %v888 = vpop.permute.xlu0 %887
        %889 = vrot.lane.b32.xlu0 %v615, 110
        %v890 = vpop.permute.xlu0 %889
        %891 = vrot.lane.b32.xlu0 %v616, 110
        %v892 = vpop.permute.xlu0 %891
        %893 = vrot.lane.b32.xlu0 %v617, 110
        %v894 = vpop.permute.xlu0 %893
        %vm895 = vcmask 900096
        %v896 = vsel %vm895, %v888, %v890
        %v897 = vsel %vm895, %v892, %v894
        %v903 = vsel %vm633, %v886, 0
        %905 = vmatpush.bf16.msra.mxu0 0
        %906 = vmatpush.bf16.msra.mxu0 0
        %907 = vmatpush.bf16.msra.mxu0 0
        %908 = vmatpush.bf16.msra.mxu0 0
        %909 = vmatpush.bf16.msra.mxu0 0
        %910 = vmatpush.bf16.msra.mxu0 0
        %911 = vmatpush.bf16.msra.mxu0 %v897
        %912 = vmatpush.bf16.msra.mxu0 %v896
        %913 = vmatmul.bf16.gmra.mxu0 %v903
        %v914 = vpop.f32.mrf.mxu0
        %v915 = vadd.f32 0.0, %v914
        %v916 = vpop.f32.mrf.mxu0
        %v917 = vadd.f32 0.0, %v916
        %918 = vdwg.mxu0
        %919 = vmatpush.bf16.msra.mxu0 0
        %920 = vmatpush.bf16.msra.mxu0 0
        %921 = vmatpush.bf16.msra.mxu0 0
        %922 = vmatpush.bf16.msra.mxu0 0
        %923 = vmatpush.bf16.msra.mxu0 0
        %924 = vmatpush.bf16.msra.mxu0 0
        %925 = vmatpush.bf16.msra.mxu0 %v894
        %926 = vmatpush.bf16.msra.mxu0 %v890
        %927 = vmatmul.bf16.gmra.mxu0 %v903
        %v928 = vpop.f32.mrf.mxu0
        %v929 = vadd.f32 0.0, %v928
        %v930 = vpop.f32.mrf.mxu0
        %v931 = vadd.f32 0.0, %v930
        %932 = vdwg.mxu0
        %v933 = vadd.f32 %v875, %v915
        %v934 = vadd.f32 %v876, %v929
        %v935 = vadd.f32 %v877, %v917
        %v936 = vadd.f32 %v878, %v931
        %s937 = scalar_lea.vmem [#allocation8], 48
        %v938 = vld [vmem:[%s937] sm:$0xf]
        %v939 = vld [vmem:[%s937 + $0x4] sm:$0xf]
        %v942 = vunpack.c.l.b16 %v938
        %v943 = vunpack.c.l.b16 %v939
        %v944 = vpack.c.b16 %v943, %v942
        %945 = vrot.lane.b32.xlu0 %v614, 96
        %v946 = vpop.permute.xlu0 %945
        %947 = vrot.lane.b32.xlu0 %v615, 96
        %v948 = vpop.permute.xlu0 %947
        %949 = vrot.lane.b32.xlu0 %v616, 96
        %v950 = vpop.permute.xlu0 %949
        %951 = vrot.lane.b32.xlu0 %v617, 96
        %v952 = vpop.permute.xlu0 %951
        %vm953 = vcmask 785408
        %v954 = vsel %vm953, %v946, %v948
        %v955 = vsel %vm953, %v950, %v952
        %v961 = vsel %vm633, %v944, 0
        %963 = vmatpush.bf16.msra.mxu0 0
        %964 = vmatpush.bf16.msra.mxu0 0
        %965 = vmatpush.bf16.msra.mxu0 0
        %966 = vmatpush.bf16.msra.mxu0 0
        %967 = vmatpush.bf16.msra.mxu0 0
        %968 = vmatpush.bf16.msra.mxu0 0
        %969 = vmatpush.bf16.msra.mxu0 %v955
        %970 = vmatpush.bf16.msra.mxu0 %v954
        %971 = vmatmul.bf16.gmra.mxu0 %v961
        %v972 = vpop.f32.mrf.mxu0
        %v973 = vadd.f32 0.0, %v972
        %v974 = vpop.f32.mrf.mxu0
        %v975 = vadd.f32 0.0, %v974
        %976 = vdwg.mxu0
        %977 = vmatpush.bf16.msra.mxu0 0
        %978 = vmatpush.bf16.msra.mxu0 0
        %979 = vmatpush.bf16.msra.mxu0 0
        %980 = vmatpush.bf16.msra.mxu0 0
        %981 = vmatpush.bf16.msra.mxu0 0
        %982 = vmatpush.bf16.msra.mxu0 0
        %983 = vmatpush.bf16.msra.mxu0 %v952
        %984 = vmatpush.bf16.msra.mxu0 %v948
        %985 = vmatmul.bf16.gmra.mxu0 %v961
        %v986 = vpop.f32.mrf.mxu0
        %v987 = vadd.f32 0.0, %v986
        %v988 = vpop.f32.mrf.mxu0
        %v989 = vadd.f32 0.0, %v988
        %990 = vdwg.mxu0
        %v991 = vadd.f32 %v933, %v973
        %v992 = vadd.f32 %v934, %v987
        %v993 = vadd.f32 %v935, %v975
        %v994 = vadd.f32 %v936, %v989
        %s995 = scalar_lea.vmem [#allocation8], 56
        %v996 = vld [vmem:[%s995] sm:$0xf]
        %v997 = vld [vmem:[%s995 + $0x4] sm:$0xf]
        %v998 = vld [vmem:[#allocation2] sm:$0xff]
        %v999 = vld [vmem:[#allocation2 + $0x8] sm:$0xf]
        %v1000 = vld [vmem:[#allocation2 + $0xc] sm:$0xff]
        %v1001 = vld [vmem:[#allocation2 + $0x14] sm:$0xf]
        %v1002 = vld [vmem:[#allocation2 + $0x18] sm:$0xff]
        %v1003 = vld [vmem:[#allocation2 + $0x20] sm:$0xf]
        %v1004 = vld [vmem:[#allocation2 + $0x24] sm:$0xff]
        %v1005 = vld [vmem:[#allocation2 + $0x2c] sm:$0xf]
        %v1008 = vunpack.c.l.b16 %v996
        %v1009 = vunpack.c.l.b16 %v997
        %v1010 = vpack.c.b16 %v1009, %v1008
        %v1019 = vunpack.c.l.b16 %v998
        %v1020 = vunpack.c.h.b16 %v998
        %v1021 = vunpack.c.l.b16 %v999
        %v1022 = vunpack.c.l.b16 %v1000
        %v1023 = vunpack.c.h.b16 %v1000
        %v1024 = vunpack.c.l.b16 %v1001
        %v1025 = vunpack.c.l.b16 %v1002
        %v1026 = vunpack.c.h.b16 %v1002
        %v1027 = vunpack.c.l.b16 %v1003
        %v1028 = vunpack.c.l.b16 %v1004
        %v1029 = vunpack.c.h.b16 %v1004
        %v1030 = vunpack.c.l.b16 %v1005
        %v1031 = vpack.c.b16 %v1022, %v1019
        %v1032 = vpack.c.b16 %v1023, %v1020
        %v1033 = vpack.c.b16 %v1024, %v1021
        %v1034 = vpack.c.b16 %v1028, %v1025
        %v1035 = vpack.c.b16 %v1029, %v1026
        %v1036 = vpack.c.b16 %v1030, %v1027
        %1037 = vrot.lane.b32.xlu0 %v1031, 95
        %v1038 = vpop.permute.xlu0 %1037
        %1039 = vrot.lane.b32.xlu0 %v1032, 95
        %v1040 = vpop.permute.xlu0 %1039
        %1041 = vrot.lane.b32.xlu0 %v1033, 95
        %v1042 = vpop.permute.xlu0 %1041
        %1043 = vrot.lane.b32.xlu0 %v1034, 95
        %v1044 = vpop.permute.xlu0 %1043
        %1045 = vrot.lane.b32.xlu0 %v1035, 95
        %v1046 = vpop.permute.xlu0 %1045
        %1047 = vrot.lane.b32.xlu0 %v1036, 95
        %v1048 = vpop.permute.xlu0 %1047
        %vm1049 = vcmask 777216
        %v1050 = vsel %vm1049, %v1038, %v1040
        %v1051 = vsel %vm1049, %v1040, %v1042
        %v1052 = vsel %vm1049, %v1044, %v1046
        %v1053 = vsel %vm1049, %v1046, %v1048
        %v1059 = vsel %vm633, %v1010, 0
        %1061 = vmatpush.bf16.msra.mxu0 0
        %1062 = vmatpush.bf16.msra.mxu0 0
        %1063 = vmatpush.bf16.msra.mxu0 0
        %1064 = vmatpush.bf16.msra.mxu0 0
        %1065 = vmatpush.bf16.msra.mxu0 0
        %1066 = vmatpush.bf16.msra.mxu0 0
        %1067 = vmatpush.bf16.msra.mxu0 %v1052
        %1068 = vmatpush.bf16.msra.mxu0 %v1050
        %1069 = vmatmul.bf16.gmra.mxu0 %v1059
        %v1070 = vpop.f32.mrf.mxu0
        %v1071 = vadd.f32 0.0, %v1070
        %v1072 = vpop.f32.mrf.mxu0
        %v1073 = vadd.f32 0.0, %v1072
        %1074 = vdwg.mxu0
        %1075 = vmatpush.bf16.msra.mxu0 0
        %1076 = vmatpush.bf16.msra.mxu0 0
        %1077 = vmatpush.bf16.msra.mxu0 0
        %1078 = vmatpush.bf16.msra.mxu0 0
        %1079 = vmatpush.bf16.msra.mxu0 0
        %1080 = vmatpush.bf16.msra.mxu0 0
        %1081 = vmatpush.bf16.msra.mxu0 %v1053
        %1082 = vmatpush.bf16.msra.mxu0 %v1051
        %1083 = vmatmul.bf16.gmra.mxu0 %v1059
        %v1084 = vpop.f32.mrf.mxu0
        %v1085 = vadd.f32 0.0, %v1084
        %v1086 = vpop.f32.mrf.mxu0
        %v1087 = vadd.f32 0.0, %v1086
        %1088 = vdwg.mxu0
        %v1089 = vadd.f32 %v991, %v1071
        %v1090 = vadd.f32 %v992, %v1085
        %v1091 = vadd.f32 %v993, %v1073
        %v1092 = vadd.f32 %v994, %v1087
        %s1093 = scalar_lea.vmem [#allocation8], 64
        %v1094 = vld [vmem:[%s1093] sm:$0xf]
        %v1095 = vld [vmem:[%s1093 + $0x4] sm:$0xf]
        %v1098 = vunpack.c.l.b16 %v1094
        %v1099 = vunpack.c.l.b16 %v1095
        %v1100 = vpack.c.b16 %v1099, %v1098
        %1101 = vrot.lane.b32.xlu0 %v1031, 94
        %v1102 = vpop.permute.xlu0 %1101
        %1103 = vrot.lane.b32.xlu0 %v1032, 94
        %v1104 = vpop.permute.xlu0 %1103
        %1105 = vrot.lane.b32.xlu0 %v1033, 94
        %v1106 = vpop.permute.xlu0 %1105
        %1107 = vrot.lane.b32.xlu0 %v1034, 94
        %v1108 = vpop.permute.xlu0 %1107
        %1109 = vrot.lane.b32.xlu0 %v1035, 94
        %v1110 = vpop.permute.xlu0 %1109
        %1111 = vrot.lane.b32.xlu0 %v1036, 94
        %v1112 = vpop.permute.xlu0 %1111
        %vm1113 = vcmask 769024
        %v1114 = vsel %vm1113, %v1102, %v1104
        %v1115 = vsel %vm1113, %v1104, %v1106
        %v1116 = vsel %vm1113, %v1108, %v1110
        %v1117 = vsel %vm1113, %v1110, %v1112
        %v1123 = vsel %vm633, %v1100, 0
        %1125 = vmatpush.bf16.msra.mxu0 0
        %1126 = vmatpush.bf16.msra.mxu0 0
        %1127 = vmatpush.bf16.msra.mxu0 0
        %1128 = vmatpush.bf16.msra.mxu0 0
        %1129 = vmatpush.bf16.msra.mxu0 0
        %1130 = vmatpush.bf16.msra.mxu0 0
        %1131 = vmatpush.bf16.msra.mxu0 %v1116
        %1132 = vmatpush.bf16.msra.mxu0 %v1114
        %1133 = vmatmul.bf16.gmra.mxu0 %v1123
        %v1134 = vpop.f32.mrf.mxu0
        %v1135 = vadd.f32 0.0, %v1134
        %v1136 = vpop.f32.mrf.mxu0
        %v1137 = vadd.f32 0.0, %v1136
        %1138 = vdwg.mxu0
        %1139 = vmatpush.bf16.msra.mxu0 0
        %1140 = vmatpush.bf16.msra.mxu0 0
        %1141 = vmatpush.bf16.msra.mxu0 0
        %1142 = vmatpush.bf16.msra.mxu0 0
        %1143 = vmatpush.bf16.msra.mxu0 0
        %1144 = vmatpush.bf16.msra.mxu0 0
        %1145 = vmatpush.bf16.msra.mxu0 %v1117
        %1146 = vmatpush.bf16.msra.mxu0 %v1115
        %1147 = vmatmul.bf16.gmra.mxu0 %v1123
        %v1148 = vpop.f32.mrf.mxu0
        %v1149 = vadd.f32 0.0, %v1148
        %v1150 = vpop.f32.mrf.mxu0
        %v1151 = vadd.f32 0.0, %v1150
        %1152 = vdwg.mxu0
        %v1153 = vadd.f32 %v1089, %v1135
        %v1154 = vadd.f32 %v1090, %v1149
        %v1155 = vadd.f32 %v1091, %v1137
        %v1156 = vadd.f32 %v1092, %v1151
        %v1157 = vld [vmem:[%s6] sm:$0xff]
        %v1158 = vld [vmem:[%s6 + $0x8] sm:$0xff]
        %1160 = vset.pattern.permute.xlu0 0
        %1161 = vperm.xlu0 %1160, %v1157
        %v1162 = vpop.permute.xlu0 %1161
        %1165 = vset.pattern.permute.xlu0 0
        %1166 = vperm.xlu0 %1165, %v1158
        %v1167 = vpop.permute.xlu0 %1166
        %v1169 = vadd.f32 %v1153, %v1162
        %v1170 = vadd.f32 %v1154, %v1162
        %v1171 = vadd.f32 %v1155, %v1167
        %v1172 = vadd.f32 %v1156, %v1167
        %vm1173 = vcmp.gt.f32.partialorder %v1169, 0.0
        %vm1174 = vcmp.gt.f32.partialorder %v1170, 0.0
        %vm1175 = vcmp.gt.f32.partialorder %v1171, 0.0
        %vm1176 = vcmp.gt.f32.partialorder %v1172, 0.0
        %v1177 = vmul.f32 %v1169, 0.2
        %v1178 = vmul.f32 %v1170, 0.2
        %v1179 = vmul.f32 %v1171, 0.2
        %v1180 = vmul.f32 %v1172, 0.2
        %v1181 = vsel %vm1173, %v1169, %v1177
        %v1182 = vsel %vm1174, %v1170, %v1178
        %v1183 = vsel %vm1175, %v1171, %v1179
        %v1184 = vsel %vm1176, %v1172, %v1180
        %v1185 = vpack.c.bf16 %v1183, %v1181
        %v1186 = vpack.c.bf16 %v1184, %v1182
        %v1187 = vld [vmem:[#allocation6] sm:$0xff]
        %v1188 = vld [vmem:[#allocation6 + $0x8] sm:$0xff]
        %v1189 = vld [vmem:[#allocation6 + $0x10] sm:$0xff]
        %v1190 = vld [vmem:[#allocation6 + $0x18] sm:$0xff]
        %v1191 = vld [vmem:[#allocation6 + $0x20] sm:$0xff]
        %v1192 = vld [vmem:[#allocation6 + $0x28] sm:$0xff]
        %v1193 = vld [vmem:[#allocation6 + $0x30] sm:$0xff]
        %v1194 = vld [vmem:[#allocation6 + $0x38] sm:$0xff]
        %v1195 = vld [vmem:[#allocation6 + $0x40] sm:$0xff]
        %v1196 = vld [vmem:[#allocation6 + $0x48] sm:$0xff]
        %v1197 = vld [vmem:[#allocation6 + $0x50] sm:$0xff]
        %v1198 = vld [vmem:[#allocation6 + $0x58] sm:$0xff]
        %v1199 = vld [vmem:[#allocation6 + $0x60] sm:$0xff]
        %v1200 = vld [vmem:[#allocation6 + $0x68] sm:$0xff]
        %v1201 = vld [vmem:[#allocation6 + $0x70] sm:$0xff]
        %v1202 = vld [vmem:[#allocation6 + $0x78] sm:$0xff]
        %v1203 = vld [vmem:[#allocation6 + $0x80] sm:$0xff]
        %v1204 = vld [vmem:[#allocation6 + $0x88] sm:$0xff]
        %v1205 = vld [vmem:[#allocation6 + $0x90] sm:$0xff]
        %v1206 = vld [vmem:[#allocation6 + $0x98] sm:$0xff]
        %v1207 = vld [vmem:[#allocation6 + $0xa0] sm:$0xff]
        %v1208 = vld [vmem:[#allocation6 + $0xa8] sm:$0xff]
        %v1209 = vld [vmem:[#allocation6 + $0xb0] sm:$0xff]
        %v1210 = vld [vmem:[#allocation6 + $0xb8] sm:$0xff]
        %v1211 = vld [vmem:[#allocation6 + $0xc0] sm:$0xff]
        %v1212 = vld [vmem:[#allocation6 + $0xc8] sm:$0xff]
        %v1213 = vld [vmem:[#allocation6 + $0xd0] sm:$0xff]
        %v1214 = vld [vmem:[#allocation6 + $0xd8] sm:$0xff]
        %v1215 = vld [vmem:[#allocation6 + $0xe0] sm:$0xff]
        %v1216 = vld [vmem:[#allocation6 + $0xe8] sm:$0xff]
        %v1217 = vld [vmem:[#allocation6 + $0xf0] sm:$0xff]
        %v1218 = vld [vmem:[#allocation6 + $0xf8] sm:$0xff]
        %v1219 = vld [vmem:[#allocation6 + $0x100] sm:$0xff]
        %v1220 = vld [vmem:[#allocation6 + $0x108] sm:$0xff]
        %v1221 = vld [vmem:[#allocation6 + $0x110] sm:$0xff]
        %v1222 = vld [vmem:[#allocation6 + $0x118] sm:$0xff]
        %v1223 = vld [vmem:[#allocation6 + $0x120] sm:$0xff]
        %v1224 = vld [vmem:[#allocation6 + $0x128] sm:$0xff]
        %v1225 = vld [vmem:[#allocation6 + $0x130] sm:$0xff]
        %v1226 = vld [vmem:[#allocation6 + $0x138] sm:$0xff]
        %v1227 = vld [vmem:[#allocation6 + $0x140] sm:$0xff]
        %v1228 = vld [vmem:[#allocation6 + $0x148] sm:$0xff]
        %v1229 = vld [vmem:[#allocation6 + $0x150] sm:$0xff]
        %v1230 = vld [vmem:[#allocation6 + $0x158] sm:$0xff]
        %v1231 = vld [vmem:[#allocation6 + $0x160] sm:$0xff]
        %v1232 = vld [vmem:[#allocation6 + $0x168] sm:$0xff]
        %v1233 = vld [vmem:[#allocation6 + $0x170] sm:$0xff]
        %v1234 = vld [vmem:[#allocation6 + $0x178] sm:$0xff]
        %v1235 = vld [vmem:[#allocation6 + $0x180] sm:$0xff]
        %v1236 = vld [vmem:[#allocation6 + $0x188] sm:$0xff]
        %v1237 = vld [vmem:[#allocation6 + $0x190] sm:$0xff]
        %v1238 = vld [vmem:[#allocation6 + $0x198] sm:$0xff]
        %v1239 = vld [vmem:[#allocation6 + $0x1a0] sm:$0xff]
        %v1240 = vld [vmem:[#allocation6 + $0x1a8] sm:$0xff]
        %v1241 = vld [vmem:[#allocation6 + $0x1b0] sm:$0xff]
        %v1242 = vld [vmem:[#allocation6 + $0x1b8] sm:$0xff]
        %v1243 = vld [vmem:[#allocation6 + $0x1c0] sm:$0xff]
        %v1244 = vld [vmem:[#allocation6 + $0x1c8] sm:$0xff]
        %v1245 = vld [vmem:[#allocation6 + $0x1d0] sm:$0xff]
        %v1246 = vld [vmem:[#allocation6 + $0x1d8] sm:$0xff]
        %v1247 = vld [vmem:[#allocation6 + $0x1e0] sm:$0xff]
        %v1248 = vld [vmem:[#allocation6 + $0x1e8] sm:$0xff]
        %v1249 = vld [vmem:[#allocation6 + $0x1f0] sm:$0xff]
        %v1250 = vld [vmem:[#allocation6 + $0x1f8] sm:$0xff]
        %v1251 = vld [vmem:[#allocation6 + $0x200] sm:$0xff]
        %v1252 = vld [vmem:[#allocation6 + $0x208] sm:$0xff]
        %v1253 = vld [vmem:[#allocation6 + $0x210] sm:$0xff]
        %v1254 = vld [vmem:[#allocation6 + $0x218] sm:$0xff]
        %v1255 = vld [vmem:[#allocation6 + $0x220] sm:$0xff]
        %v1256 = vld [vmem:[#allocation6 + $0x228] sm:$0xff]
        %v1257 = vld [vmem:[#allocation6 + $0x230] sm:$0xff]
        %v1258 = vld [vmem:[#allocation6 + $0x238] sm:$0xff]
        %v1259 = vld [vmem:[#allocation6 + $0x240] sm:$0xff]
        %v1260 = vld [vmem:[#allocation6 + $0x248] sm:$0xff]
        %v1261 = vld [vmem:[#allocation6 + $0x250] sm:$0xff]
        %v1262 = vld [vmem:[#allocation6 + $0x258] sm:$0xff]
        %v1263 = vld [vmem:[#allocation6 + $0x260] sm:$0xff]
        %v1264 = vld [vmem:[#allocation6 + $0x268] sm:$0xff]
        %v1265 = vld [vmem:[#allocation6 + $0x270] sm:$0xff]
        %v1266 = vld [vmem:[#allocation6 + $0x278] sm:$0xff]
        %v1267 = vld [vmem:[#allocation6 + $0x280] sm:$0xff]
        %v1268 = vld [vmem:[#allocation6 + $0x288] sm:$0xff]
        %v1269 = vld [vmem:[#allocation6 + $0x290] sm:$0xff]
        %v1270 = vld [vmem:[#allocation6 + $0x298] sm:$0xff]
        %v1271 = vld [vmem:[#allocation6 + $0x2a0] sm:$0xff]
        %v1272 = vld [vmem:[#allocation6 + $0x2a8] sm:$0xff]
        %v1273 = vld [vmem:[#allocation6 + $0x2b0] sm:$0xff]
        %v1274 = vld [vmem:[#allocation6 + $0x2b8] sm:$0xff]
        %v1275 = vld [vmem:[#allocation6 + $0x2c0] sm:$0xff]
        %v1276 = vld [vmem:[#allocation6 + $0x2c8] sm:$0xff]
        %v1277 = vld [vmem:[#allocation6 + $0x2d0] sm:$0xff]
        %v1278 = vld [vmem:[#allocation6 + $0x2d8] sm:$0xff]
        %v1279 = vld [vmem:[#allocation6 + $0x2e0] sm:$0xff]
        %v1280 = vld [vmem:[#allocation6 + $0x2e8] sm:$0xff]
        %v1281 = vld [vmem:[#allocation6 + $0x2f0] sm:$0xff]
        %v1282 = vld [vmem:[#allocation6 + $0x2f8] sm:$0xff]
        %v1283 = vld [vmem:[#allocation6 + $0x300] sm:$0xff]
        %v1284 = vld [vmem:[#allocation6 + $0x308] sm:$0xff]
        %v1285 = vld [vmem:[#allocation6 + $0x310] sm:$0xff]
        %v1286 = vld [vmem:[#allocation6 + $0x318] sm:$0xff]
        %v1287 = vld [vmem:[#allocation6 + $0x320] sm:$0xff]
        %v1288 = vld [vmem:[#allocation6 + $0x328] sm:$0xff]
        %v1289 = vld [vmem:[#allocation6 + $0x330] sm:$0xff]
        %v1290 = vld [vmem:[#allocation6 + $0x338] sm:$0xff]
        %v1291 = vld [vmem:[#allocation6 + $0x340] sm:$0xff]
        %v1292 = vld [vmem:[#allocation6 + $0x348] sm:$0xff]
        %v1293 = vld [vmem:[#allocation6 + $0x350] sm:$0xff]
        %v1294 = vld [vmem:[#allocation6 + $0x358] sm:$0xff]
        %v1295 = vld [vmem:[#allocation6 + $0x360] sm:$0xff]
        %v1296 = vld [vmem:[#allocation6 + $0x368] sm:$0xff]
        %v1297 = vld [vmem:[#allocation6 + $0x370] sm:$0xff]
        %v1298 = vld [vmem:[#allocation6 + $0x378] sm:$0xff]
        %v1411 = vunpack.c.l.b16 %v1187
        %v1412 = vunpack.c.h.b16 %v1187
        %v1413 = vunpack.c.l.b16 %v1188
        %v1414 = vunpack.c.h.b16 %v1188
        %v1415 = vunpack.c.l.b16 %v1189
        %v1416 = vunpack.c.h.b16 %v1189
        %v1417 = vunpack.c.l.b16 %v1190
        %v1418 = vunpack.c.h.b16 %v1190
        %v1419 = vunpack.c.l.b16 %v1191
        %v1420 = vunpack.c.h.b16 %v1191
        %v1421 = vunpack.c.l.b16 %v1192
        %v1422 = vunpack.c.h.b16 %v1192
        %v1423 = vunpack.c.l.b16 %v1193
        %v1424 = vunpack.c.h.b16 %v1193
        %v1425 = vunpack.c.l.b16 %v1194
        %v1426 = vunpack.c.h.b16 %v1194
        %v1427 = vunpack.c.l.b16 %v1195
        %v1428 = vunpack.c.h.b16 %v1195
        %v1429 = vunpack.c.l.b16 %v1196
        %v1430 = vunpack.c.h.b16 %v1196
        %v1431 = vunpack.c.l.b16 %v1197
        %v1432 = vunpack.c.h.b16 %v1197
        %v1433 = vunpack.c.l.b16 %v1198
        %v1434 = vunpack.c.h.b16 %v1198
        %v1435 = vunpack.c.l.b16 %v1199
        %v1436 = vunpack.c.h.b16 %v1199
        %v1437 = vunpack.c.l.b16 %v1200
        %v1438 = vunpack.c.h.b16 %v1200
        %v1439 = vunpack.c.l.b16 %v1201
        %v1440 = vunpack.c.h.b16 %v1201
        %v1441 = vunpack.c.l.b16 %v1202
        %v1442 = vunpack.c.h.b16 %v1202
        %v1443 = vunpack.c.l.b16 %v1203
        %v1444 = vunpack.c.h.b16 %v1203
        %v1445 = vunpack.c.l.b16 %v1204
        %v1446 = vunpack.c.h.b16 %v1204
        %v1447 = vunpack.c.l.b16 %v1205
        %v1448 = vunpack.c.h.b16 %v1205
        %v1449 = vunpack.c.l.b16 %v1206
        %v1450 = vunpack.c.h.b16 %v1206
        %v1451 = vunpack.c.l.b16 %v1207
        %v1452 = vunpack.c.h.b16 %v1207
        %v1453 = vunpack.c.l.b16 %v1208
        %v1454 = vunpack.c.h.b16 %v1208
        %v1455 = vunpack.c.l.b16 %v1209
        %v1456 = vunpack.c.h.b16 %v1209
        %v1457 = vunpack.c.l.b16 %v1210
        %v1458 = vunpack.c.h.b16 %v1210
        %v1459 = vunpack.c.l.b16 %v1211
        %v1460 = vunpack.c.h.b16 %v1211
        %v1461 = vunpack.c.l.b16 %v1212
        %v1462 = vunpack.c.h.b16 %v1212
        %v1463 = vunpack.c.l.b16 %v1213
        %v1464 = vunpack.c.h.b16 %v1213
        %v1465 = vunpack.c.l.b16 %v1214
        %v1466 = vunpack.c.h.b16 %v1214
        %v1467 = vunpack.c.l.b16 %v1215
        %v1468 = vunpack.c.h.b16 %v1215
        %v1469 = vunpack.c.l.b16 %v1216
        %v1470 = vunpack.c.h.b16 %v1216
        %v1471 = vunpack.c.l.b16 %v1217
        %v1472 = vunpack.c.h.b16 %v1217
        %v1473 = vunpack.c.l.b16 %v1218
        %v1474 = vunpack.c.h.b16 %v1218
        %v1475 = vunpack.c.l.b16 %v1219
        %v1476 = vunpack.c.h.b16 %v1219
        %v1477 = vunpack.c.l.b16 %v1220
        %v1478 = vunpack.c.h.b16 %v1220
        %v1479 = vunpack.c.l.b16 %v1221
        %v1480 = vunpack.c.h.b16 %v1221
        %v1481 = vunpack.c.l.b16 %v1222
        %v1482 = vunpack.c.h.b16 %v1222
        %v1483 = vunpack.c.l.b16 %v1223
        %v1484 = vunpack.c.h.b16 %v1223
        %v1485 = vunpack.c.l.b16 %v1224
        %v1486 = vunpack.c.h.b16 %v1224
        %v1487 = vunpack.c.l.b16 %v1225
        %v1488 = vunpack.c.h.b16 %v1225
        %v1489 = vunpack.c.l.b16 %v1226
        %v1490 = vunpack.c.h.b16 %v1226
        %v1491 = vunpack.c.l.b16 %v1227
        %v1492 = vunpack.c.h.b16 %v1227
        %v1493 = vunpack.c.l.b16 %v1228
        %v1494 = vunpack.c.h.b16 %v1228
        %v1495 = vunpack.c.l.b16 %v1229
        %v1496 = vunpack.c.h.b16 %v1229
        %v1497 = vunpack.c.l.b16 %v1230
        %v1498 = vunpack.c.h.b16 %v1230
        %v1499 = vunpack.c.l.b16 %v1231
        %v1500 = vunpack.c.h.b16 %v1231
        %v1501 = vunpack.c.l.b16 %v1232
        %v1502 = vunpack.c.h.b16 %v1232
        %v1503 = vunpack.c.l.b16 %v1233
        %v1504 = vunpack.c.h.b16 %v1233
        %v1505 = vunpack.c.l.b16 %v1234
        %v1506 = vunpack.c.h.b16 %v1234
        %v1507 = vunpack.c.l.b16 %v1235
        %v1508 = vunpack.c.h.b16 %v1235
        %v1509 = vunpack.c.l.b16 %v1236
        %v1510 = vunpack.c.h.b16 %v1236
        %v1511 = vunpack.c.l.b16 %v1237
        %v1512 = vunpack.c.h.b16 %v1237
        %v1513 = vunpack.c.l.b16 %v1238
        %v1514 = vunpack.c.h.b16 %v1238
        %v1515 = vunpack.c.l.b16 %v1239
        %v1516 = vunpack.c.h.b16 %v1239
        %v1517 = vunpack.c.l.b16 %v1240
        %v1518 = vunpack.c.h.b16 %v1240
        %v1519 = vunpack.c.l.b16 %v1241
        %v1520 = vunpack.c.h.b16 %v1241
        %v1521 = vunpack.c.l.b16 %v1242
        %v1522 = vunpack.c.h.b16 %v1242
        %v1523 = vunpack.c.l.b16 %v1243
        %v1524 = vunpack.c.h.b16 %v1243
        %v1525 = vunpack.c.l.b16 %v1244
        %v1526 = vunpack.c.h.b16 %v1244
        %v1527 = vunpack.c.l.b16 %v1245
        %v1528 = vunpack.c.h.b16 %v1245
        %v1529 = vunpack.c.l.b16 %v1246
        %v1530 = vunpack.c.h.b16 %v1246
        %v1531 = vunpack.c.l.b16 %v1247
        %v1532 = vunpack.c.h.b16 %v1247
        %v1533 = vunpack.c.l.b16 %v1248
        %v1534 = vunpack.c.h.b16 %v1248
        %v1535 = vunpack.c.l.b16 %v1249
        %v1536 = vunpack.c.h.b16 %v1249
        %v1537 = vunpack.c.l.b16 %v1250
        %v1538 = vunpack.c.h.b16 %v1250
        %v1539 = vunpack.c.l.b16 %v1251
        %v1540 = vunpack.c.h.b16 %v1251
        %v1541 = vunpack.c.l.b16 %v1252
        %v1542 = vunpack.c.h.b16 %v1252
        %v1543 = vunpack.c.l.b16 %v1253
        %v1544 = vunpack.c.h.b16 %v1253
        %v1545 = vunpack.c.l.b16 %v1254
        %v1546 = vunpack.c.h.b16 %v1254
        %v1547 = vunpack.c.l.b16 %v1255
        %v1548 = vunpack.c.h.b16 %v1255
        %v1549 = vunpack.c.l.b16 %v1256
        %v1550 = vunpack.c.h.b16 %v1256
        %v1551 = vunpack.c.l.b16 %v1257
        %v1552 = vunpack.c.h.b16 %v1257
        %v1553 = vunpack.c.l.b16 %v1258
        %v1554 = vunpack.c.h.b16 %v1258
        %v1555 = vunpack.c.l.b16 %v1259
        %v1556 = vunpack.c.h.b16 %v1259
        %v1557 = vunpack.c.l.b16 %v1260
        %v1558 = vunpack.c.h.b16 %v1260
        %v1559 = vunpack.c.l.b16 %v1261
        %v1560 = vunpack.c.h.b16 %v1261
        %v1561 = vunpack.c.l.b16 %v1262
        %v1562 = vunpack.c.h.b16 %v1262
        %v1563 = vunpack.c.l.b16 %v1263
        %v1564 = vunpack.c.h.b16 %v1263
        %v1565 = vunpack.c.l.b16 %v1264
        %v1566 = vunpack.c.h.b16 %v1264
        %v1567 = vunpack.c.l.b16 %v1265
        %v1568 = vunpack.c.h.b16 %v1265
        %v1569 = vunpack.c.l.b16 %v1266
        %v1570 = vunpack.c.h.b16 %v1266
        %v1571 = vunpack.c.l.b16 %v1267
        %v1572 = vunpack.c.h.b16 %v1267
        %v1573 = vunpack.c.l.b16 %v1268
        %v1574 = vunpack.c.h.b16 %v1268
        %v1575 = vunpack.c.l.b16 %v1269
        %v1576 = vunpack.c.h.b16 %v1269
        %v1577 = vunpack.c.l.b16 %v1270
        %v1578 = vunpack.c.h.b16 %v1270
        %v1579 = vunpack.c.l.b16 %v1271
        %v1580 = vunpack.c.h.b16 %v1271
        %v1581 = vunpack.c.l.b16 %v1272
        %v1582 = vunpack.c.h.b16 %v1272
        %v1583 = vunpack.c.l.b16 %v1273
        %v1584 = vunpack.c.h.b16 %v1273
        %v1585 = vunpack.c.l.b16 %v1274
        %v1586 = vunpack.c.h.b16 %v1274
        %v1587 = vunpack.c.l.b16 %v1275
        %v1588 = vunpack.c.h.b16 %v1275
        %v1589 = vunpack.c.l.b16 %v1276
        %v1590 = vunpack.c.h.b16 %v1276
        %v1591 = vunpack.c.l.b16 %v1277
        %v1592 = vunpack.c.h.b16 %v1277
        %v1593 = vunpack.c.l.b16 %v1278
        %v1594 = vunpack.c.h.b16 %v1278
        %v1595 = vunpack.c.l.b16 %v1279
        %v1596 = vunpack.c.h.b16 %v1279
        %v1597 = vunpack.c.l.b16 %v1280
        %v1598 = vunpack.c.h.b16 %v1280
        %v1599 = vunpack.c.l.b16 %v1281
        %v1600 = vunpack.c.h.b16 %v1281
        %v1601 = vunpack.c.l.b16 %v1282
        %v1602 = vunpack.c.h.b16 %v1282
        %v1603 = vunpack.c.l.b16 %v1283
        %v1604 = vunpack.c.h.b16 %v1283
        %v1605 = vunpack.c.l.b16 %v1284
        %v1606 = vunpack.c.h.b16 %v1284
        %v1607 = vunpack.c.l.b16 %v1285
        %v1608 = vunpack.c.h.b16 %v1285
        %v1609 = vunpack.c.l.b16 %v1286
        %v1610 = vunpack.c.h.b16 %v1286
        %v1611 = vunpack.c.l.b16 %v1287
        %v1612 = vunpack.c.h.b16 %v1287
        %v1613 = vunpack.c.l.b16 %v1288
        %v1614 = vunpack.c.h.b16 %v1288
        %v1615 = vunpack.c.l.b16 %v1289
        %v1616 = vunpack.c.h.b16 %v1289
        %v1617 = vunpack.c.l.b16 %v1290
        %v1618 = vunpack.c.h.b16 %v1290
        %v1619 = vunpack.c.l.b16 %v1291
        %v1620 = vunpack.c.h.b16 %v1291
        %v1621 = vunpack.c.l.b16 %v1292
        %v1622 = vunpack.c.h.b16 %v1292
        %v1623 = vunpack.c.l.b16 %v1293
        %v1624 = vunpack.c.h.b16 %v1293
        %v1625 = vunpack.c.l.b16 %v1294
        %v1626 = vunpack.c.h.b16 %v1294
        %v1627 = vunpack.c.l.b16 %v1295
        %v1628 = vunpack.c.h.b16 %v1295
        %v1629 = vunpack.c.l.b16 %v1296
        %v1630 = vunpack.c.h.b16 %v1296
        %v1631 = vunpack.c.l.b16 %v1297
        %v1632 = vunpack.c.h.b16 %v1297
        %v1633 = vunpack.c.l.b16 %v1298
        %v1634 = vunpack.c.h.b16 %v1298
        %v1635 = vpack.c.b16 %v1419, %v1411
        %v1636 = vpack.c.b16 %v1420, %v1412
        %v1637 = vpack.c.b16 %v1421, %v1413
        %v1638 = vpack.c.b16 %v1422, %v1414
        %v1639 = vpack.c.b16 %v1423, %v1415
        %v1640 = vpack.c.b16 %v1424, %v1416
        %v1641 = vpack.c.b16 %v1425, %v1417
        %v1642 = vpack.c.b16 %v1426, %v1418
        %v1643 = vpack.c.b16 %v1435, %v1427
        %v1644 = vpack.c.b16 %v1436, %v1428
        %v1645 = vpack.c.b16 %v1437, %v1429
        %v1646 = vpack.c.b16 %v1438, %v1430
        %v1647 = vpack.c.b16 %v1439, %v1431
        %v1648 = vpack.c.b16 %v1440, %v1432
        %v1649 = vpack.c.b16 %v1441, %v1433
        %v1650 = vpack.c.b16 %v1442, %v1434
        %v1651 = vpack.c.b16 %v1451, %v1443
        %v1652 = vpack.c.b16 %v1452, %v1444
        %v1653 = vpack.c.b16 %v1453, %v1445
        %v1654 = vpack.c.b16 %v1454, %v1446
        %v1655 = vpack.c.b16 %v1455, %v1447
        %v1656 = vpack.c.b16 %v1456, %v1448
        %v1657 = vpack.c.b16 %v1457, %v1449
        %v1658 = vpack.c.b16 %v1458, %v1450
        %v1659 = vpack.c.b16 %v1467, %v1459
        %v1660 = vpack.c.b16 %v1468, %v1460
        %v1661 = vpack.c.b16 %v1469, %v1461
        %v1662 = vpack.c.b16 %v1470, %v1462
        %v1663 = vpack.c.b16 %v1471, %v1463
        %v1664 = vpack.c.b16 %v1472, %v1464
        %v1665 = vpack.c.b16 %v1473, %v1465
        %v1666 = vpack.c.b16 %v1474, %v1466
        %v1667 = vpack.c.b16 %v1483, %v1475
        %v1668 = vpack.c.b16 %v1484, %v1476
        %v1669 = vpack.c.b16 %v1485, %v1477
        %v1670 = vpack.c.b16 %v1486, %v1478
        %v1671 = vpack.c.b16 %v1487, %v1479
        %v1672 = vpack.c.b16 %v1488, %v1480
        %v1673 = vpack.c.b16 %v1489, %v1481
        %v1674 = vpack.c.b16 %v1490, %v1482
        %v1675 = vpack.c.b16 %v1499, %v1491
        %v1676 = vpack.c.b16 %v1500, %v1492
        %v1677 = vpack.c.b16 %v1501, %v1493
        %v1678 = vpack.c.b16 %v1502, %v1494
        %v1679 = vpack.c.b16 %v1503, %v1495
        %v1680 = vpack.c.b16 %v1504, %v1496
        %v1681 = vpack.c.b16 %v1505, %v1497
        %v1682 = vpack.c.b16 %v1506, %v1498
        %v1683 = vpack.c.b16 %v1515, %v1507
        %v1684 = vpack.c.b16 %v1516, %v1508
        %v1685 = vpack.c.b16 %v1517, %v1509
        %v1686 = vpack.c.b16 %v1518, %v1510
        %v1687 = vpack.c.b16 %v1519, %v1511
        %v1688 = vpack.c.b16 %v1520, %v1512
        %v1689 = vpack.c.b16 %v1521, %v1513
        %v1690 = vpack.c.b16 %v1522, %v1514
        %v1691 = vpack.c.b16 %v1531, %v1523
        %v1692 = vpack.c.b16 %v1532, %v1524
        %v1693 = vpack.c.b16 %v1533, %v1525
        %v1694 = vpack.c.b16 %v1534, %v1526
        %v1695 = vpack.c.b16 %v1535, %v1527
        %v1696 = vpack.c.b16 %v1536, %v1528
        %v1697 = vpack.c.b16 %v1537, %v1529
        %v1698 = vpack.c.b16 %v1538, %v1530
        %v1699 = vpack.c.b16 %v1547, %v1539
        %v1700 = vpack.c.b16 %v1548, %v1540
        %v1701 = vpack.c.b16 %v1549, %v1541
        %v1702 = vpack.c.b16 %v1550, %v1542
        %v1703 = vpack.c.b16 %v1551, %v1543
        %v1704 = vpack.c.b16 %v1552, %v1544
        %v1705 = vpack.c.b16 %v1553, %v1545
        %v1706 = vpack.c.b16 %v1554, %v1546
        %v1707 = vpack.c.b16 %v1563, %v1555
        %v1708 = vpack.c.b16 %v1564, %v1556
        %v1709 = vpack.c.b16 %v1565, %v1557
        %v1710 = vpack.c.b16 %v1566, %v1558
        %v1711 = vpack.c.b16 %v1567, %v1559
        %v1712 = vpack.c.b16 %v1568, %v1560
        %v1713 = vpack.c.b16 %v1569, %v1561
        %v1714 = vpack.c.b16 %v1570, %v1562
        %v1715 = vpack.c.b16 %v1579, %v1571
        %v1716 = vpack.c.b16 %v1580, %v1572
        %v1717 = vpack.c.b16 %v1581, %v1573
        %v1718 = vpack.c.b16 %v1582, %v1574
        %v1719 = vpack.c.b16 %v1583, %v1575
        %v1720 = vpack.c.b16 %v1584, %v1576
        %v1721 = vpack.c.b16 %v1585, %v1577
        %v1722 = vpack.c.b16 %v1586, %v1578
        %v1723 = vpack.c.b16 %v1595, %v1587
        %v1724 = vpack.c.b16 %v1596, %v1588
        %v1725 = vpack.c.b16 %v1597, %v1589
        %v1726 = vpack.c.b16 %v1598, %v1590
        %v1727 = vpack.c.b16 %v1599, %v1591
        %v1728 = vpack.c.b16 %v1600, %v1592
        %v1729 = vpack.c.b16 %v1601, %v1593
        %v1730 = vpack.c.b16 %v1602, %v1594
        %v1731 = vpack.c.b16 %v1611, %v1603
        %v1732 = vpack.c.b16 %v1612, %v1604
        %v1733 = vpack.c.b16 %v1613, %v1605
        %v1734 = vpack.c.b16 %v1614, %v1606
        %v1735 = vpack.c.b16 %v1615, %v1607
        %v1736 = vpack.c.b16 %v1616, %v1608
        %v1737 = vpack.c.b16 %v1617, %v1609
        %v1738 = vpack.c.b16 %v1618, %v1610
        %v1739 = vpack.c.b16 %v1627, %v1619
        %v1740 = vpack.c.b16 %v1628, %v1620
        %v1741 = vpack.c.b16 %v1629, %v1621
        %v1742 = vpack.c.b16 %v1630, %v1622
        %v1743 = vpack.c.b16 %v1631, %v1623
        %v1744 = vpack.c.b16 %v1632, %v1624
        %v1745 = vpack.c.b16 %v1633, %v1625
        %v1746 = vpack.c.b16 %v1634, %v1626
        %vm1859 = vcmask 785408
        %v1861 = vsel %vm1859, %v1186, 0
        %1863 = vmatpush.bf16.msra.mxu0 %v1691
        %1864 = vmatpush.bf16.msra.mxu0 %v1683
        %1865 = vmatpush.bf16.msra.mxu0 %v1675
        %1866 = vmatpush.bf16.msra.mxu0 %v1667
        %1867 = vmatpush.bf16.msra.mxu0 %v1659
        %1868 = vmatpush.bf16.msra.mxu0 %v1651
        %1869 = vmatpush.bf16.msra.mxu0 %v1643
        %1870 = vmatpush.bf16.msra.mxu0 %v1635
        %1871 = vmatmul.bf16.gmra.mxu0 %v1185
        %v1872 = vpop.f32.mrf.mxu0
        %v1873 = vadd.f32 0.0, %v1872
        %v1874 = vpop.f32.mrf.mxu0
        %v1875 = vadd.f32 0.0, %v1874
        %1876 = vdwg.mxu0
        %1877 = vmatpush.bf16.msra.mxu0 0
        %1878 = vmatpush.bf16.msra.mxu0 0
        %1879 = vmatpush.bf16.msra.mxu0 %v1739
        %1880 = vmatpush.bf16.msra.mxu0 %v1731
        %1881 = vmatpush.bf16.msra.mxu0 %v1723
        %1882 = vmatpush.bf16.msra.mxu0 %v1715
        %1883 = vmatpush.bf16.msra.mxu0 %v1707
        %1884 = vmatpush.bf16.msra.mxu0 %v1699
        %1885 = vmatmul.bf16.gmra.mxu0 %v1861
        %v1886 = vpop.f32.mrf.mxu0
        %v1887 = vadd.f32 %v1873, %v1886
        %v1888 = vpop.f32.mrf.mxu0
        %v1889 = vadd.f32 %v1875, %v1888
        %1890 = vdwg.mxu0
        %1891 = vmatpush.bf16.msra.mxu0 %v1692
        %1892 = vmatpush.bf16.msra.mxu0 %v1684
        %1893 = vmatpush.bf16.msra.mxu0 %v1676
        %1894 = vmatpush.bf16.msra.mxu0 %v1668
        %1895 = vmatpush.bf16.msra.mxu0 %v1660
        %1896 = vmatpush.bf16.msra.mxu0 %v1652
        %1897 = vmatpush.bf16.msra.mxu0 %v1644
        %1898 = vmatpush.bf16.msra.mxu0 %v1636
        %1899 = vmatmul.bf16.gmra.mxu0 %v1185
        %v1900 = vpop.f32.mrf.mxu0
        %v1901 = vadd.f32 0.0, %v1900
        %v1902 = vpop.f32.mrf.mxu0
        %v1903 = vadd.f32 0.0, %v1902
        %1904 = vdwg.mxu0
        %1905 = vmatpush.bf16.msra.mxu0 0
        %1906 = vmatpush.bf16.msra.mxu0 0
        %1907 = vmatpush.bf16.msra.mxu0 %v1740
        %1908 = vmatpush.bf16.msra.mxu0 %v1732
        %1909 = vmatpush.bf16.msra.mxu0 %v1724
        %1910 = vmatpush.bf16.msra.mxu0 %v1716
        %1911 = vmatpush.bf16.msra.mxu0 %v1708
        %1912 = vmatpush.bf16.msra.mxu0 %v1700
        %1913 = vmatmul.bf16.gmra.mxu0 %v1861
        %v1914 = vpop.f32.mrf.mxu0
        %v1915 = vadd.f32 %v1901, %v1914
        %v1916 = vpop.f32.mrf.mxu0
        %v1917 = vadd.f32 %v1903, %v1916
        %1918 = vdwg.mxu0
        %1919 = vmatpush.bf16.msra.mxu0 %v1693
        %1920 = vmatpush.bf16.msra.mxu0 %v1685
        %1921 = vmatpush.bf16.msra.mxu0 %v1677
        %1922 = vmatpush.bf16.msra.mxu0 %v1669
        %1923 = vmatpush.bf16.msra.mxu0 %v1661
        %1924 = vmatpush.bf16.msra.mxu0 %v1653
        %1925 = vmatpush.bf16.msra.mxu0 %v1645
        %1926 = vmatpush.bf16.msra.mxu0 %v1637
        %1927 = vmatmul.bf16.gmra.mxu0 %v1185
        %v1928 = vpop.f32.mrf.mxu0
        %v1929 = vadd.f32 0.0, %v1928
        %v1930 = vpop.f32.mrf.mxu0
        %v1931 = vadd.f32 0.0, %v1930
        %1932 = vdwg.mxu0
        %1933 = vmatpush.bf16.msra.mxu0 0
        %1934 = vmatpush.bf16.msra.mxu0 0
        %1935 = vmatpush.bf16.msra.mxu0 %v1741
        %1936 = vmatpush.bf16.msra.mxu0 %v1733
        %1937 = vmatpush.bf16.msra.mxu0 %v1725
        %1938 = vmatpush.bf16.msra.mxu0 %v1717
        %1939 = vmatpush.bf16.msra.mxu0 %v1709
        %1940 = vmatpush.bf16.msra.mxu0 %v1701
        %1941 = vmatmul.bf16.gmra.mxu0 %v1861
        %v1942 = vpop.f32.mrf.mxu0
        %v1943 = vadd.f32 %v1929, %v1942
        %v1944 = vpop.f32.mrf.mxu0
        %v1945 = vadd.f32 %v1931, %v1944
        %1946 = vdwg.mxu0
        %1947 = vmatpush.bf16.msra.mxu0 %v1694
        %1948 = vmatpush.bf16.msra.mxu0 %v1686
        %1949 = vmatpush.bf16.msra.mxu0 %v1678
        %1950 = vmatpush.bf16.msra.mxu0 %v1670
        %1951 = vmatpush.bf16.msra.mxu0 %v1662
        %1952 = vmatpush.bf16.msra.mxu0 %v1654
        %1953 = vmatpush.bf16.msra.mxu0 %v1646
        %1954 = vmatpush.bf16.msra.mxu0 %v1638
        %1955 = vmatmul.bf16.gmra.mxu0 %v1185
        %v1956 = vpop.f32.mrf.mxu0
        %v1957 = vadd.f32 0.0, %v1956
        %v1958 = vpop.f32.mrf.mxu0
        %v1959 = vadd.f32 0.0, %v1958
        %1960 = vdwg.mxu0
        %1961 = vmatpush.bf16.msra.mxu0 0
        %1962 = vmatpush.bf16.msra.mxu0 0
        %1963 = vmatpush.bf16.msra.mxu0 %v1742
        %1964 = vmatpush.bf16.msra.mxu0 %v1734
        %1965 = vmatpush.bf16.msra.mxu0 %v1726
        %1966 = vmatpush.bf16.msra.mxu0 %v1718
        %1967 = vmatpush.bf16.msra.mxu0 %v1710
        %1968 = vmatpush.bf16.msra.mxu0 %v1702
        %1969 = vmatmul.bf16.gmra.mxu0 %v1861
        %v1970 = vpop.f32.mrf.mxu0
        %v1971 = vadd.f32 %v1957, %v1970
        %v1972 = vpop.f32.mrf.mxu0
        %v1973 = vadd.f32 %v1959, %v1972
        %1974 = vdwg.mxu0
        %1975 = vmatpush.bf16.msra.mxu0 %v1695
        %1976 = vmatpush.bf16.msra.mxu0 %v1687
        %1977 = vmatpush.bf16.msra.mxu0 %v1679
        %1978 = vmatpush.bf16.msra.mxu0 %v1671
        %1979 = vmatpush.bf16.msra.mxu0 %v1663
        %1980 = vmatpush.bf16.msra.mxu0 %v1655
        %1981 = vmatpush.bf16.msra.mxu0 %v1647
        %1982 = vmatpush.bf16.msra.mxu0 %v1639
        %1983 = vmatmul.bf16.gmra.mxu0 %v1185
        %v1984 = vpop.f32.mrf.mxu0
        %v1985 = vadd.f32 0.0, %v1984
        %v1986 = vpop.f32.mrf.mxu0
        %v1987 = vadd.f32 0.0, %v1986
        %1988 = vdwg.mxu0
        %1989 = vmatpush.bf16.msra.mxu0 0
        %1990 = vmatpush.bf16.msra.mxu0 0
        %1991 = vmatpush.bf16.msra.mxu0 %v1743
        %1992 = vmatpush.bf16.msra.mxu0 %v1735
        %1993 = vmatpush.bf16.msra.mxu0 %v1727
        %1994 = vmatpush.bf16.msra.mxu0 %v1719
        %1995 = vmatpush.bf16.msra.mxu0 %v1711
        %1996 = vmatpush.bf16.msra.mxu0 %v1703
        %1997 = vmatmul.bf16.gmra.mxu0 %v1861
        %v1998 = vpop.f32.mrf.mxu0
        %v1999 = vadd.f32 %v1985, %v1998
        %v2000 = vpop.f32.mrf.mxu0
        %v2001 = vadd.f32 %v1987, %v2000
        %2002 = vdwg.mxu0
        %2003 = vmatpush.bf16.msra.mxu0 %v1696
        %2004 = vmatpush.bf16.msra.mxu0 %v1688
        %2005 = vmatpush.bf16.msra.mxu0 %v1680
        %2006 = vmatpush.bf16.msra.mxu0 %v1672
        %2007 = vmatpush.bf16.msra.mxu0 %v1664
        %2008 = vmatpush.bf16.msra.mxu0 %v1656
        %2009 = vmatpush.bf16.msra.mxu0 %v1648
        %2010 = vmatpush.bf16.msra.mxu0 %v1640
        %2011 = vmatmul.bf16.gmra.mxu0 %v1185
        %v2012 = vpop.f32.mrf.mxu0
        %v2013 = vadd.f32 0.0, %v2012
        %v2014 = vpop.f32.mrf.mxu0
        %v2015 = vadd.f32 0.0, %v2014
        %2016 = vdwg.mxu0
        %2017 = vmatpush.bf16.msra.mxu0 0
        %2018 = vmatpush.bf16.msra.mxu0 0
        %2019 = vmatpush.bf16.msra.mxu0 %v1744
        %2020 = vmatpush.bf16.msra.mxu0 %v1736
        %2021 = vmatpush.bf16.msra.mxu0 %v1728
        %2022 = vmatpush.bf16.msra.mxu0 %v1720
        %2023 = vmatpush.bf16.msra.mxu0 %v1712
        %2024 = vmatpush.bf16.msra.mxu0 %v1704
        %2025 = vmatmul.bf16.gmra.mxu0 %v1861
        %v2026 = vpop.f32.mrf.mxu0
        %v2027 = vadd.f32 %v2013, %v2026
        %v2028 = vpop.f32.mrf.mxu0
        %v2029 = vadd.f32 %v2015, %v2028
        %2030 = vdwg.mxu0
        %2031 = vmatpush.bf16.msra.mxu0 %v1697
        %2032 = vmatpush.bf16.msra.mxu0 %v1689
        %2033 = vmatpush.bf16.msra.mxu0 %v1681
        %2034 = vmatpush.bf16.msra.mxu0 %v1673
        %2035 = vmatpush.bf16.msra.mxu0 %v1665
        %2036 = vmatpush.bf16.msra.mxu0 %v1657
        %2037 = vmatpush.bf16.msra.mxu0 %v1649
        %2038 = vmatpush.bf16.msra.mxu0 %v1641
        %2039 = vmatmul.bf16.gmra.mxu0 %v1185
        %v2040 = vpop.f32.mrf.mxu0
        %v2041 = vadd.f32 0.0, %v2040
        %v2042 = vpop.f32.mrf.mxu0
        %v2043 = vadd.f32 0.0, %v2042
        %2044 = vdwg.mxu0
        %2045 = vmatpush.bf16.msra.mxu0 0
        %2046 = vmatpush.bf16.msra.mxu0 0
        %2047 = vmatpush.bf16.msra.mxu0 %v1745
        %2048 = vmatpush.bf16.msra.mxu0 %v1737
        %2049 = vmatpush.bf16.msra.mxu0 %v1729
        %2050 = vmatpush.bf16.msra.mxu0 %v1721
        %2051 = vmatpush.bf16.msra.mxu0 %v1713
        %2052 = vmatpush.bf16.msra.mxu0 %v1705
        %2053 = vmatmul.bf16.gmra.mxu0 %v1861
        %v2054 = vpop.f32.mrf.mxu0
        %v2055 = vadd.f32 %v2041, %v2054
        %v2056 = vpop.f32.mrf.mxu0
        %v2057 = vadd.f32 %v2043, %v2056
        %2058 = vdwg.mxu0
        %2059 = vmatpush.bf16.msra.mxu0 %v1698
        %2060 = vmatpush.bf16.msra.mxu0 %v1690
        %2061 = vmatpush.bf16.msra.mxu0 %v1682
        %2062 = vmatpush.bf16.msra.mxu0 %v1674
        %2063 = vmatpush.bf16.msra.mxu0 %v1666
        %2064 = vmatpush.bf16.msra.mxu0 %v1658
        %2065 = vmatpush.bf16.msra.mxu0 %v1650
        %2066 = vmatpush.bf16.msra.mxu0 %v1642
        %2067 = vmatmul.bf16.gmra.mxu0 %v1185
        %v2068 = vpop.f32.mrf.mxu0
        %v2069 = vadd.f32 0.0, %v2068
        %v2070 = vpop.f32.mrf.mxu0
        %v2071 = vadd.f32 0.0, %v2070
        %2072 = vdwg.mxu0
        %2073 = vmatpush.bf16.msra.mxu0 0
        %2074 = vmatpush.bf16.msra.mxu0 0
        %2075 = vmatpush.bf16.msra.mxu0 %v1746
        %2076 = vmatpush.bf16.msra.mxu0 %v1738
        %2077 = vmatpush.bf16.msra.mxu0 %v1730
        %2078 = vmatpush.bf16.msra.mxu0 %v1722
        %2079 = vmatpush.bf16.msra.mxu0 %v1714
        %2080 = vmatpush.bf16.msra.mxu0 %v1706
        %2081 = vmatmul.bf16.gmra.mxu0 %v1861
        %v2082 = vpop.f32.mrf.mxu0
        %v2083 = vadd.f32 %v2069, %v2082
        %v2084 = vpop.f32.mrf.mxu0
        %v2085 = vadd.f32 %v2071, %v2084
        %2086 = vdwg.mxu0
        %v2087 = vpack.c.bf16 %v1915, %v1887
        %v2088 = vpack.c.bf16 %v1971, %v1943
        %v2089 = vpack.c.bf16 %v2027, %v1999
        %v2090 = vpack.c.bf16 %v2083, %v2055
        %v2091 = vpack.c.bf16 %v1917, %v1889
        %v2092 = vpack.c.bf16 %v1973, %v1945
        %v2093 = vpack.c.bf16 %v2029, %v2001
        %v2094 = vpack.c.bf16 %v2085, %v2057
        %2095 = vst [vmem:[#allocation3] sm:$0xff] %v2087
        %2096 = vst [vmem:[#allocation3 + $0x8] sm:$0xff] %v2088
        %2097 = vst [vmem:[#allocation3 + $0x10] sm:$0xff] %v2089
        %vm2098 = vcmask 1043456
        %vm2099 = vcmask 556036
        %vm2100 = vmor %vm2099, %vm2098
        %2101 = vst.msk [vmem:[#allocation3 + $0x18] sm:$0xff] %vm2100, %v2090
        %2102 = vst [vmem:[#allocation3 + $0x20] sm:$0xff] %v2091
        %2103 = vst [vmem:[#allocation3 + $0x28] sm:$0xff] %v2092
        %2104 = vst [vmem:[#allocation3 + $0x30] sm:$0xff] %v2093
        %2105 = vst.msk [vmem:[#allocation3 + $0x38] sm:$0xff] %vm2100, %v2094
        %v2106 = vld [vmem:[#allocation10] sm:$0xf]
        %v2107 = vld [vmem:[#allocation3] sm:$0xff]
        %v2108 = vld [vmem:[#allocation3 + $0x8] sm:$0xff]
        %v2109 = vld [vmem:[#allocation3 + $0x10] sm:$0xff]
        %v2110 = vld [vmem:[#allocation3 + $0x18] sm:$0xff]
        %v2111 = vld [vmem:[#allocation3 + $0x20] sm:$0xff]
        %v2112 = vld [vmem:[#allocation3 + $0x28] sm:$0xff]
        %v2113 = vld [vmem:[#allocation3 + $0x30] sm:$0xff]
        %v2114 = vld [vmem:[#allocation3 + $0x38] sm:$0xff]
        %s2115 = scalar_lea.vmem [#allocation10], 4
        %v2116 = vld [vmem:[%s2115] sm:$0xf]
        %v2125 = vunpack.c.l.b16 %v2107
        %v2126 = vunpack.c.h.b16 %v2107
        %v2127 = vunpack.c.l.b16 %v2108
        %v2128 = vunpack.c.h.b16 %v2108
        %v2129 = vunpack.c.l.b16 %v2109
        %v2130 = vunpack.c.h.b16 %v2109
        %v2131 = vunpack.c.l.b16 %v2110
        %v2132 = vunpack.c.h.b16 %v2110
        %v2133 = vunpack.c.l.b16 %v2111
        %v2134 = vunpack.c.h.b16 %v2111
        %v2135 = vunpack.c.l.b16 %v2112
        %v2136 = vunpack.c.h.b16 %v2112
        %v2137 = vunpack.c.l.b16 %v2113
        %v2138 = vunpack.c.h.b16 %v2113
        %v2139 = vunpack.c.l.b16 %v2114
        %v2140 = vunpack.c.h.b16 %v2114
        %v2141 = vpack.c.b16 %v2133, %v2125
        %v2142 = vpack.c.b16 %v2134, %v2126
        %v2143 = vpack.c.b16 %v2135, %v2127
        %v2144 = vpack.c.b16 %v2136, %v2128
        %v2145 = vpack.c.b16 %v2137, %v2129
        %v2146 = vpack.c.b16 %v2138, %v2130
        %v2147 = vpack.c.b16 %v2139, %v2131
        %v2148 = vpack.c.b16 %v2140, %v2132
        %2149 = vrot.lane.b32.xlu0 %v2141, 127
        %v2150 = vpop.permute.xlu0 %2149
        %2151 = vrot.lane.b32.xlu0 %v2142, 127
        %v2152 = vpop.permute.xlu0 %2151
        %2153 = vrot.lane.b32.xlu0 %v2143, 127
        %v2154 = vpop.permute.xlu0 %2153
        %2155 = vrot.lane.b32.xlu0 %v2144, 127
        %v2156 = vpop.permute.xlu0 %2155
        %2157 = vrot.lane.b32.xlu0 %v2145, 127
        %v2158 = vpop.permute.xlu0 %2157
        %2159 = vrot.lane.b32.xlu0 %v2146, 127
        %v2160 = vpop.permute.xlu0 %2159
        %2161 = vrot.lane.b32.xlu0 %v2147, 127
        %v2162 = vpop.permute.xlu0 %2161
        %2163 = vrot.lane.b32.xlu0 %v2148, 127
        %v2164 = vpop.permute.xlu0 %2163
        %v2165 = vsel %vm626, %v2150, %v2152
        %v2166 = vsel %vm626, %v2152, %v2154
        %v2167 = vsel %vm626, %v2154, %v2156
        %v2168 = vsel %vm626, %v2156, %v2158
        %v2169 = vsel %vm626, %v2158, %v2160
        %v2170 = vsel %vm626, %v2160, %v2162
        %v2171 = vsel %vm626, %v2162, %v2164
        %vm2180 = vcmask 130048
        %v2182 = vsel %vm2180, %v2116, 0
        %2184 = vmatpush.bf16.msra.mxu0 0
        %2185 = vmatpush.bf16.msra.mxu0 0
        %2186 = vmatpush.bf16.msra.mxu0 0
        %2187 = vmatpush.bf16.msra.mxu0 0
        %2188 = vmatpush.bf16.msra.mxu0 0
        %2189 = vmatpush.bf16.msra.mxu0 0
        %2190 = vmatpush.bf16.msra.mxu0 0
        %2191 = vmatpush.bf16.msra.mxu0 %v2165
        %2192 = vmatmul.bf16.gmra.mxu0 %v2182
        %v2193 = vpop.f32.mrf.mxu0
        %v2194 = vadd.f32 0.0, %v2193
        %v2195 = vpop.f32.mrf.mxu0
        %2196 = vdwg.mxu0
        %2197 = vmatpush.bf16.msra.mxu0 0
        %2198 = vmatpush.bf16.msra.mxu0 0
        %2199 = vmatpush.bf16.msra.mxu0 0
        %2200 = vmatpush.bf16.msra.mxu0 0
        %2201 = vmatpush.bf16.msra.mxu0 0
        %2202 = vmatpush.bf16.msra.mxu0 0
        %2203 = vmatpush.bf16.msra.mxu0 0
        %2204 = vmatpush.bf16.msra.mxu0 %v2166
        %2205 = vmatmul.bf16.gmra.mxu0 %v2182
        %v2206 = vpop.f32.mrf.mxu0
        %v2207 = vadd.f32 0.0, %v2206
        %v2208 = vpop.f32.mrf.mxu0
        %2209 = vdwg.mxu0
        %2210 = vmatpush.bf16.msra.mxu0 0
        %2211 = vmatpush.bf16.msra.mxu0 0
        %2212 = vmatpush.bf16.msra.mxu0 0
        %2213 = vmatpush.bf16.msra.mxu0 0
        %2214 = vmatpush.bf16.msra.mxu0 0
        %2215 = vmatpush.bf16.msra.mxu0 0
        %2216 = vmatpush.bf16.msra.mxu0 0
        %2217 = vmatpush.bf16.msra.mxu0 %v2167
        %2218 = vmatmul.bf16.gmra.mxu0 %v2182
        %v2219 = vpop.f32.mrf.mxu0
        %v2220 = vadd.f32 0.0, %v2219
        %v2221 = vpop.f32.mrf.mxu0
        %2222 = vdwg.mxu0
        %2223 = vmatpush.bf16.msra.mxu0 0
        %2224 = vmatpush.bf16.msra.mxu0 0
        %2225 = vmatpush.bf16.msra.mxu0 0
        %2226 = vmatpush.bf16.msra.mxu0 0
        %2227 = vmatpush.bf16.msra.mxu0 0
        %2228 = vmatpush.bf16.msra.mxu0 0
        %2229 = vmatpush.bf16.msra.mxu0 0
        %2230 = vmatpush.bf16.msra.mxu0 %v2168
        %2231 = vmatmul.bf16.gmra.mxu0 %v2182
        %v2232 = vpop.f32.mrf.mxu0
        %v2233 = vadd.f32 0.0, %v2232
        %v2234 = vpop.f32.mrf.mxu0
        %2235 = vdwg.mxu0
        %2236 = vmatpush.bf16.msra.mxu0 0
        %2237 = vmatpush.bf16.msra.mxu0 0
        %2238 = vmatpush.bf16.msra.mxu0 0
        %2239 = vmatpush.bf16.msra.mxu0 0
        %2240 = vmatpush.bf16.msra.mxu0 0
        %2241 = vmatpush.bf16.msra.mxu0 0
        %2242 = vmatpush.bf16.msra.mxu0 0
        %2243 = vmatpush.bf16.msra.mxu0 %v2169
        %2244 = vmatmul.bf16.gmra.mxu0 %v2182
        %v2245 = vpop.f32.mrf.mxu0
        %v2246 = vadd.f32 0.0, %v2245
        %v2247 = vpop.f32.mrf.mxu0
        %2248 = vdwg.mxu0
        %2249 = vmatpush.bf16.msra.mxu0 0
        %2250 = vmatpush.bf16.msra.mxu0 0
        %2251 = vmatpush.bf16.msra.mxu0 0
        %2252 = vmatpush.bf16.msra.mxu0 0
        %2253 = vmatpush.bf16.msra.mxu0 0
        %2254 = vmatpush.bf16.msra.mxu0 0
        %2255 = vmatpush.bf16.msra.mxu0 0
        %2256 = vmatpush.bf16.msra.mxu0 %v2170
        %2257 = vmatmul.bf16.gmra.mxu0 %v2182
        %v2258 = vpop.f32.mrf.mxu0
        %v2259 = vadd.f32 0.0, %v2258
        %v2260 = vpop.f32.mrf.mxu0
        %2261 = vdwg.mxu0
        %2262 = vmatpush.bf16.msra.mxu0 0
        %2263 = vmatpush.bf16.msra.mxu0 0
        %2264 = vmatpush.bf16.msra.mxu0 0
        %2265 = vmatpush.bf16.msra.mxu0 0
        %2266 = vmatpush.bf16.msra.mxu0 0
        %2267 = vmatpush.bf16.msra.mxu0 0
        %2268 = vmatpush.bf16.msra.mxu0 0
        %2269 = vmatpush.bf16.msra.mxu0 %v2171
        %2270 = vmatmul.bf16.gmra.mxu0 %v2182
        %v2271 = vpop.f32.mrf.mxu0
        %v2272 = vadd.f32 0.0, %v2271
        %v2273 = vpop.f32.mrf.mxu0
        %2274 = vdwg.mxu0
        %2275 = vmatpush.bf16.msra.mxu0 0
        %2276 = vmatpush.bf16.msra.mxu0 0
        %2277 = vmatpush.bf16.msra.mxu0 0
        %2278 = vmatpush.bf16.msra.mxu0 0
        %2279 = vmatpush.bf16.msra.mxu0 0
        %2280 = vmatpush.bf16.msra.mxu0 0
        %2281 = vmatpush.bf16.msra.mxu0 0
        %2282 = vmatpush.bf16.msra.mxu0 %v2164
        %2283 = vmatmul.bf16.gmra.mxu0 %v2182
        %v2284 = vpop.f32.mrf.mxu0
        %v2285 = vadd.f32 0.0, %v2284
        %v2286 = vpop.f32.mrf.mxu0
        %2287 = vdwg.mxu0
        %v2297 = vsel %vm2180, %v2106, 0
        %2299 = vmatpush.bf16.msra.mxu0 0
        %2300 = vmatpush.bf16.msra.mxu0 0
        %2301 = vmatpush.bf16.msra.mxu0 0
        %2302 = vmatpush.bf16.msra.mxu0 0
        %2303 = vmatpush.bf16.msra.mxu0 0
        %2304 = vmatpush.bf16.msra.mxu0 0
        %2305 = vmatpush.bf16.msra.mxu0 0
        %2306 = vmatpush.bf16.msra.mxu0 %v2141
        %2307 = vmatmul.bf16.gmra.mxu0 %v2297
        %v2308 = vpop.f32.mrf.mxu0
        %v2309 = vadd.f32 %v2194, %v2308
        %v2310 = vpop.f32.mrf.mxu0
        %2311 = vdwg.mxu0
        %2312 = vmatpush.bf16.msra.mxu0 0
        %2313 = vmatpush.bf16.msra.mxu0 0
        %2314 = vmatpush.bf16.msra.mxu0 0
        %2315 = vmatpush.bf16.msra.mxu0 0
        %2316 = vmatpush.bf16.msra.mxu0 0
        %2317 = vmatpush.bf16.msra.mxu0 0
        %2318 = vmatpush.bf16.msra.mxu0 0
        %2319 = vmatpush.bf16.msra.mxu0 %v2142
        %2320 = vmatmul.bf16.gmra.mxu0 %v2297
        %v2321 = vpop.f32.mrf.mxu0
        %v2322 = vadd.f32 %v2207, %v2321
        %v2323 = vpop.f32.mrf.mxu0
        %2324 = vdwg.mxu0
        %2325 = vmatpush.bf16.msra.mxu0 0
        %2326 = vmatpush.bf16.msra.mxu0 0
        %2327 = vmatpush.bf16.msra.mxu0 0
        %2328 = vmatpush.bf16.msra.mxu0 0
        %2329 = vmatpush.bf16.msra.mxu0 0
        %2330 = vmatpush.bf16.msra.mxu0 0
        %2331 = vmatpush.bf16.msra.mxu0 0
        %2332 = vmatpush.bf16.msra.mxu0 %v2143
        %2333 = vmatmul.bf16.gmra.mxu0 %v2297
        %v2334 = vpop.f32.mrf.mxu0
        %v2335 = vadd.f32 %v2220, %v2334
        %v2336 = vpop.f32.mrf.mxu0
        %2337 = vdwg.mxu0
        %2338 = vmatpush.bf16.msra.mxu0 0
        %2339 = vmatpush.bf16.msra.mxu0 0
        %2340 = vmatpush.bf16.msra.mxu0 0
        %2341 = vmatpush.bf16.msra.mxu0 0
        %2342 = vmatpush.bf16.msra.mxu0 0
        %2343 = vmatpush.bf16.msra.mxu0 0
        %2344 = vmatpush.bf16.msra.mxu0 0
        %2345 = vmatpush.bf16.msra.mxu0 %v2144
        %2346 = vmatmul.bf16.gmra.mxu0 %v2297
        %v2347 = vpop.f32.mrf.mxu0
        %v2348 = vadd.f32 %v2233, %v2347
        %v2349 = vpop.f32.mrf.mxu0
        %2350 = vdwg.mxu0
        %2351 = vmatpush.bf16.msra.mxu0 0
        %2352 = vmatpush.bf16.msra.mxu0 0
        %2353 = vmatpush.bf16.msra.mxu0 0
        %2354 = vmatpush.bf16.msra.mxu0 0
        %2355 = vmatpush.bf16.msra.mxu0 0
        %2356 = vmatpush.bf16.msra.mxu0 0
        %2357 = vmatpush.bf16.msra.mxu0 0
        %2358 = vmatpush.bf16.msra.mxu0 %v2145
        %2359 = vmatmul.bf16.gmra.mxu0 %v2297
        %v2360 = vpop.f32.mrf.mxu0
        %v2361 = vadd.f32 %v2246, %v2360
        %v2362 = vpop.f32.mrf.mxu0
        %2363 = vdwg.mxu0
        %2364 = vmatpush.bf16.msra.mxu0 0
        %2365 = vmatpush.bf16.msra.mxu0 0
        %2366 = vmatpush.bf16.msra.mxu0 0
        %2367 = vmatpush.bf16.msra.mxu0 0
        %2368 = vmatpush.bf16.msra.mxu0 0
        %2369 = vmatpush.bf16.msra.mxu0 0
        %2370 = vmatpush.bf16.msra.mxu0 0
        %2371 = vmatpush.bf16.msra.mxu0 %v2146
        %2372 = vmatmul.bf16.gmra.mxu0 %v2297
        %v2373 = vpop.f32.mrf.mxu0
        %v2374 = vadd.f32 %v2259, %v2373
        %v2375 = vpop.f32.mrf.mxu0
        %2376 = vdwg.mxu0
        %2377 = vmatpush.bf16.msra.mxu0 0
        %2378 = vmatpush.bf16.msra.mxu0 0
        %2379 = vmatpush.bf16.msra.mxu0 0
        %2380 = vmatpush.bf16.msra.mxu0 0
        %2381 = vmatpush.bf16.msra.mxu0 0
        %2382 = vmatpush.bf16.msra.mxu0 0
        %2383 = vmatpush.bf16.msra.mxu0 0
        %2384 = vmatpush.bf16.msra.mxu0 %v2147
        %2385 = vmatmul.bf16.gmra.mxu0 %v2297
        %v2386 = vpop.f32.mrf.mxu0
        %v2387 = vadd.f32 %v2272, %v2386
        %v2388 = vpop.f32.mrf.mxu0
        %2389 = vdwg.mxu0
        %2390 = vmatpush.bf16.msra.mxu0 0
        %2391 = vmatpush.bf16.msra.mxu0 0
        %2392 = vmatpush.bf16.msra.mxu0 0
        %2393 = vmatpush.bf16.msra.mxu0 0
        %2394 = vmatpush.bf16.msra.mxu0 0
        %2395 = vmatpush.bf16.msra.mxu0 0
        %2396 = vmatpush.bf16.msra.mxu0 0
        %2397 = vmatpush.bf16.msra.mxu0 %v2148
        %2398 = vmatmul.bf16.gmra.mxu0 %v2297
        %v2399 = vpop.f32.mrf.mxu0
        %v2400 = vadd.f32 %v2285, %v2399
        %v2401 = vpop.f32.mrf.mxu0
        %2402 = vdwg.mxu0
        %s2403 = scalar_lea.vmem [#allocation10], 8
        %v2404 = vld [vmem:[%s2403] sm:$0xf]
        %2405 = vrot.lane.b32.xlu0 %v2141, 126
        %v2406 = vpop.permute.xlu0 %2405
        %2407 = vrot.lane.b32.xlu0 %v2142, 126
        %v2408 = vpop.permute.xlu0 %2407
        %2409 = vrot.lane.b32.xlu0 %v2143, 126
        %v2410 = vpop.permute.xlu0 %2409
        %2411 = vrot.lane.b32.xlu0 %v2144, 126
        %v2412 = vpop.permute.xlu0 %2411
        %2413 = vrot.lane.b32.xlu0 %v2145, 126
        %v2414 = vpop.permute.xlu0 %2413
        %2415 = vrot.lane.b32.xlu0 %v2146, 126
        %v2416 = vpop.permute.xlu0 %2415
        %2417 = vrot.lane.b32.xlu0 %v2147, 126
        %v2418 = vpop.permute.xlu0 %2417
        %2419 = vrot.lane.b32.xlu0 %v2148, 126
        %v2420 = vpop.permute.xlu0 %2419
        %v2421 = vsel %vm721, %v2406, %v2408
        %v2422 = vsel %vm721, %v2408, %v2410
        %v2423 = vsel %vm721, %v2410, %v2412
        %v2424 = vsel %vm721, %v2412, %v2414
        %v2425 = vsel %vm721, %v2414, %v2416
        %v2426 = vsel %vm721, %v2416, %v2418
        %v2427 = vsel %vm721, %v2418, %v2420
        %v2437 = vsel %vm2180, %v2404, 0
        %2439 = vmatpush.bf16.msra.mxu0 0
        %2440 = vmatpush.bf16.msra.mxu0 0
        %2441 = vmatpush.bf16.msra.mxu0 0
        %2442 = vmatpush.bf16.msra.mxu0 0
        %2443 = vmatpush.bf16.msra.mxu0 0
        %2444 = vmatpush.bf16.msra.mxu0 0
        %2445 = vmatpush.bf16.msra.mxu0 0
        %2446 = vmatpush.bf16.msra.mxu0 %v2421
        %2447 = vmatmul.bf16.gmra.mxu0 %v2437
        %v2448 = vpop.f32.mrf.mxu0
        %v2449 = vadd.f32 0.0, %v2448
        %v2450 = vpop.f32.mrf.mxu0
        %2451 = vdwg.mxu0
        %2452 = vmatpush.bf16.msra.mxu0 0
        %2453 = vmatpush.bf16.msra.mxu0 0
        %2454 = vmatpush.bf16.msra.mxu0 0
        %2455 = vmatpush.bf16.msra.mxu0 0
        %2456 = vmatpush.bf16.msra.mxu0 0
        %2457 = vmatpush.bf16.msra.mxu0 0
        %2458 = vmatpush.bf16.msra.mxu0 0
        %2459 = vmatpush.bf16.msra.mxu0 %v2422
        %2460 = vmatmul.bf16.gmra.mxu0 %v2437
        %v2461 = vpop.f32.mrf.mxu0
        %v2462 = vadd.f32 0.0, %v2461
        %v2463 = vpop.f32.mrf.mxu0
        %2464 = vdwg.mxu0
        %2465 = vmatpush.bf16.msra.mxu0 0
        %2466 = vmatpush.bf16.msra.mxu0 0
        %2467 = vmatpush.bf16.msra.mxu0 0
        %2468 = vmatpush.bf16.msra.mxu0 0
        %2469 = vmatpush.bf16.msra.mxu0 0
        %2470 = vmatpush.bf16.msra.mxu0 0
        %2471 = vmatpush.bf16.msra.mxu0 0
        %2472 = vmatpush.bf16.msra.mxu0 %v2423
        %2473 = vmatmul.bf16.gmra.mxu0 %v2437
        %v2474 = vpop.f32.mrf.mxu0
        %v2475 = vadd.f32 0.0, %v2474
        %v2476 = vpop.f32.mrf.mxu0
        %2477 = vdwg.mxu0
        %2478 = vmatpush.bf16.msra.mxu0 0
        %2479 = vmatpush.bf16.msra.mxu0 0
        %2480 = vmatpush.bf16.msra.mxu0 0
        %2481 = vmatpush.bf16.msra.mxu0 0
        %2482 = vmatpush.bf16.msra.mxu0 0
        %2483 = vmatpush.bf16.msra.mxu0 0
        %2484 = vmatpush.bf16.msra.mxu0 0
        %2485 = vmatpush.bf16.msra.mxu0 %v2424
        %2486 = vmatmul.bf16.gmra.mxu0 %v2437
        %v2487 = vpop.f32.mrf.mxu0
        %v2488 = vadd.f32 0.0, %v2487
        %v2489 = vpop.f32.mrf.mxu0
        %2490 = vdwg.mxu0
        %2491 = vmatpush.bf16.msra.mxu0 0
        %2492 = vmatpush.bf16.msra.mxu0 0
        %2493 = vmatpush.bf16.msra.mxu0 0
        %2494 = vmatpush.bf16.msra.mxu0 0
        %2495 = vmatpush.bf16.msra.mxu0 0
        %2496 = vmatpush.bf16.msra.mxu0 0
        %2497 = vmatpush.bf16.msra.mxu0 0
        %2498 = vmatpush.bf16.msra.mxu0 %v2425
        %2499 = vmatmul.bf16.gmra.mxu0 %v2437
        %v2500 = vpop.f32.mrf.mxu0
        %v2501 = vadd.f32 0.0, %v2500
        %v2502 = vpop.f32.mrf.mxu0
        %2503 = vdwg.mxu0
        %2504 = vmatpush.bf16.msra.mxu0 0
        %2505 = vmatpush.bf16.msra.mxu0 0
        %2506 = vmatpush.bf16.msra.mxu0 0
        %2507 = vmatpush.bf16.msra.mxu0 0
        %2508 = vmatpush.bf16.msra.mxu0 0
        %2509 = vmatpush.bf16.msra.mxu0 0
        %2510 = vmatpush.bf16.msra.mxu0 0
        %2511 = vmatpush.bf16.msra.mxu0 %v2426
        %2512 = vmatmul.bf16.gmra.mxu0 %v2437
        %v2513 = vpop.f32.mrf.mxu0
        %v2514 = vadd.f32 0.0, %v2513
        %v2515 = vpop.f32.mrf.mxu0
        %2516 = vdwg.mxu0
        %2517 = vmatpush.bf16.msra.mxu0 0
        %2518 = vmatpush.bf16.msra.mxu0 0
        %2519 = vmatpush.bf16.msra.mxu0 0
        %2520 = vmatpush.bf16.msra.mxu0 0
        %2521 = vmatpush.bf16.msra.mxu0 0
        %2522 = vmatpush.bf16.msra.mxu0 0
        %2523 = vmatpush.bf16.msra.mxu0 0
        %2524 = vmatpush.bf16.msra.mxu0 %v2427
        %2525 = vmatmul.bf16.gmra.mxu0 %v2437
        %v2526 = vpop.f32.mrf.mxu0
        %v2527 = vadd.f32 0.0, %v2526
        %v2528 = vpop.f32.mrf.mxu0
        %2529 = vdwg.mxu0
        %2530 = vmatpush.bf16.msra.mxu0 0
        %2531 = vmatpush.bf16.msra.mxu0 0
        %2532 = vmatpush.bf16.msra.mxu0 0
        %2533 = vmatpush.bf16.msra.mxu0 0
        %2534 = vmatpush.bf16.msra.mxu0 0
        %2535 = vmatpush.bf16.msra.mxu0 0
        %2536 = vmatpush.bf16.msra.mxu0 0
        %2537 = vmatpush.bf16.msra.mxu0 %v2420
        %2538 = vmatmul.bf16.gmra.mxu0 %v2437
        %v2539 = vpop.f32.mrf.mxu0
        %v2540 = vadd.f32 0.0, %v2539
        %v2541 = vpop.f32.mrf.mxu0
        %2542 = vdwg.mxu0
        %v2543 = vadd.f32 %v2309, %v2449
        %v2544 = vadd.f32 %v2322, %v2462
        %v2545 = vadd.f32 %v2335, %v2475
        %v2546 = vadd.f32 %v2348, %v2488
        %v2547 = vadd.f32 %v2361, %v2501
        %v2548 = vadd.f32 %v2374, %v2514
        %v2549 = vadd.f32 %v2387, %v2527
        %v2550 = vadd.f32 %v2400, %v2540
        %s2551 = scalar_lea.vmem [#allocation10], 12
        %v2552 = vld [vmem:[%s2551] sm:$0xf]
        %2553 = vrot.lane.b32.xlu0 %v2141, 98
        %v2554 = vpop.permute.xlu0 %2553
        %2555 = vrot.lane.b32.xlu0 %v2142, 98
        %v2556 = vpop.permute.xlu0 %2555
        %2557 = vrot.lane.b32.xlu0 %v2143, 98
        %v2558 = vpop.permute.xlu0 %2557
        %2559 = vrot.lane.b32.xlu0 %v2144, 98
        %v2560 = vpop.permute.xlu0 %2559
        %2561 = vrot.lane.b32.xlu0 %v2145, 98
        %v2562 = vpop.permute.xlu0 %2561
        %2563 = vrot.lane.b32.xlu0 %v2146, 98
        %v2564 = vpop.permute.xlu0 %2563
        %2565 = vrot.lane.b32.xlu0 %v2147, 98
        %v2566 = vpop.permute.xlu0 %2565
        %2567 = vrot.lane.b32.xlu0 %v2148, 98
        %v2568 = vpop.permute.xlu0 %2567
        %vm2569 = vcmask 801792
        %v2570 = vsel %vm2569, %v2554, %v2556
        %v2571 = vsel %vm2569, %v2556, %v2558
        %v2572 = vsel %vm2569, %v2558, %v2560
        %v2573 = vsel %vm2569, %v2560, %v2562
        %v2574 = vsel %vm2569, %v2562, %v2564
        %v2575 = vsel %vm2569, %v2564, %v2566
        %v2576 = vsel %vm2569, %v2566, %v2568
        %v2586 = vsel %vm2180, %v2552, 0
        %2588 = vmatpush.bf16.msra.mxu0 0
        %2589 = vmatpush.bf16.msra.mxu0 0
        %2590 = vmatpush.bf16.msra.mxu0 0
        %2591 = vmatpush.bf16.msra.mxu0 0
        %2592 = vmatpush.bf16.msra.mxu0 0
        %2593 = vmatpush.bf16.msra.mxu0 0
        %2594 = vmatpush.bf16.msra.mxu0 0
        %2595 = vmatpush.bf16.msra.mxu0 %v2570
        %2596 = vmatmul.bf16.gmra.mxu0 %v2586
        %v2597 = vpop.f32.mrf.mxu0
        %v2598 = vadd.f32 0.0, %v2597
        %v2599 = vpop.f32.mrf.mxu0
        %2600 = vdwg.mxu0
        %2601 = vmatpush.bf16.msra.mxu0 0
        %2602 = vmatpush.bf16.msra.mxu0 0
        %2603 = vmatpush.bf16.msra.mxu0 0
        %2604 = vmatpush.bf16.msra.mxu0 0
        %2605 = vmatpush.bf16.msra.mxu0 0
        %2606 = vmatpush.bf16.msra.mxu0 0
        %2607 = vmatpush.bf16.msra.mxu0 0
        %2608 = vmatpush.bf16.msra.mxu0 %v2571
        %2609 = vmatmul.bf16.gmra.mxu0 %v2586
        %v2610 = vpop.f32.mrf.mxu0
        %v2611 = vadd.f32 0.0, %v2610
        %v2612 = vpop.f32.mrf.mxu0
        %2613 = vdwg.mxu0
        %2614 = vmatpush.bf16.msra.mxu0 0
        %2615 = vmatpush.bf16.msra.mxu0 0
        %2616 = vmatpush.bf16.msra.mxu0 0
        %2617 = vmatpush.bf16.msra.mxu0 0
        %2618 = vmatpush.bf16.msra.mxu0 0
        %2619 = vmatpush.bf16.msra.mxu0 0
        %2620 = vmatpush.bf16.msra.mxu0 0
        %2621 = vmatpush.bf16.msra.mxu0 %v2572
        %2622 = vmatmul.bf16.gmra.mxu0 %v2586
        %v2623 = vpop.f32.mrf.mxu0
        %v2624 = vadd.f32 0.0, %v2623
        %v2625 = vpop.f32.mrf.mxu0
        %2626 = vdwg.mxu0
        %2627 = vmatpush.bf16.msra.mxu0 0
        %2628 = vmatpush.bf16.msra.mxu0 0
        %2629 = vmatpush.bf16.msra.mxu0 0
        %2630 = vmatpush.bf16.msra.mxu0 0
        %2631 = vmatpush.bf16.msra.mxu0 0
        %2632 = vmatpush.bf16.msra.mxu0 0
        %2633 = vmatpush.bf16.msra.mxu0 0
        %2634 = vmatpush.bf16.msra.mxu0 %v2573
        %2635 = vmatmul.bf16.gmra.mxu0 %v2586
        %v2636 = vpop.f32.mrf.mxu0
        %v2637 = vadd.f32 0.0, %v2636
        %v2638 = vpop.f32.mrf.mxu0
        %2639 = vdwg.mxu0
        %2640 = vmatpush.bf16.msra.mxu0 0
        %2641 = vmatpush.bf16.msra.mxu0 0
        %2642 = vmatpush.bf16.msra.mxu0 0
        %2643 = vmatpush.bf16.msra.mxu0 0
        %2644 = vmatpush.bf16.msra.mxu0 0
        %2645 = vmatpush.bf16.msra.mxu0 0
        %2646 = vmatpush.bf16.msra.mxu0 0
        %2647 = vmatpush.bf16.msra.mxu0 %v2574
        %2648 = vmatmul.bf16.gmra.mxu0 %v2586
        %v2649 = vpop.f32.mrf.mxu0
        %v2650 = vadd.f32 0.0, %v2649
        %v2651 = vpop.f32.mrf.mxu0
        %2652 = vdwg.mxu0
        %2653 = vmatpush.bf16.msra.mxu0 0
        %2654 = vmatpush.bf16.msra.mxu0 0
        %2655 = vmatpush.bf16.msra.mxu0 0
        %2656 = vmatpush.bf16.msra.mxu0 0
        %2657 = vmatpush.bf16.msra.mxu0 0
        %2658 = vmatpush.bf16.msra.mxu0 0
        %2659 = vmatpush.bf16.msra.mxu0 0
        %2660 = vmatpush.bf16.msra.mxu0 %v2575
        %2661 = vmatmul.bf16.gmra.mxu0 %v2586
        %v2662 = vpop.f32.mrf.mxu0
        %v2663 = vadd.f32 0.0, %v2662
        %v2664 = vpop.f32.mrf.mxu0
        %2665 = vdwg.mxu0
        %2666 = vmatpush.bf16.msra.mxu0 0
        %2667 = vmatpush.bf16.msra.mxu0 0
        %2668 = vmatpush.bf16.msra.mxu0 0
        %2669 = vmatpush.bf16.msra.mxu0 0
        %2670 = vmatpush.bf16.msra.mxu0 0
        %2671 = vmatpush.bf16.msra.mxu0 0
        %2672 = vmatpush.bf16.msra.mxu0 0
        %2673 = vmatpush.bf16.msra.mxu0 %v2576
        %2674 = vmatmul.bf16.gmra.mxu0 %v2586
        %v2675 = vpop.f32.mrf.mxu0
        %v2676 = vadd.f32 0.0, %v2675
        %v2677 = vpop.f32.mrf.mxu0
        %2678 = vdwg.mxu0
        %2679 = vmatpush.bf16.msra.mxu0 0
        %2680 = vmatpush.bf16.msra.mxu0 0
        %2681 = vmatpush.bf16.msra.mxu0 0
        %2682 = vmatpush.bf16.msra.mxu0 0
        %2683 = vmatpush.bf16.msra.mxu0 0
        %2684 = vmatpush.bf16.msra.mxu0 0
        %2685 = vmatpush.bf16.msra.mxu0 0
        %2686 = vmatpush.bf16.msra.mxu0 %v2568
        %2687 = vmatmul.bf16.gmra.mxu0 %v2586
        %v2688 = vpop.f32.mrf.mxu0
        %v2689 = vadd.f32 0.0, %v2688
        %v2690 = vpop.f32.mrf.mxu0
        %2691 = vdwg.mxu0
        %v2692 = vadd.f32 %v2543, %v2598
        %v2693 = vadd.f32 %v2544, %v2611
        %v2694 = vadd.f32 %v2545, %v2624
        %v2695 = vadd.f32 %v2546, %v2637
        %v2696 = vadd.f32 %v2547, %v2650
        %v2697 = vadd.f32 %v2548, %v2663
        %v2698 = vadd.f32 %v2549, %v2676
        %v2699 = vadd.f32 %v2550, %v2689
        %s2700 = scalar_lea.vmem [#allocation10], 16
        %v2701 = vld [vmem:[%s2700] sm:$0xf]
        %2702 = vrot.lane.b32.xlu0 %v2141, 97
        %v2703 = vpop.permute.xlu0 %2702
        %2704 = vrot.lane.b32.xlu0 %v2142, 97
        %v2705 = vpop.permute.xlu0 %2704
        %2706 = vrot.lane.b32.xlu0 %v2143, 97
        %v2707 = vpop.permute.xlu0 %2706
        %2708 = vrot.lane.b32.xlu0 %v2144, 97
        %v2709 = vpop.permute.xlu0 %2708
        %2710 = vrot.lane.b32.xlu0 %v2145, 97
        %v2711 = vpop.permute.xlu0 %2710
        %2712 = vrot.lane.b32.xlu0 %v2146, 97
        %v2713 = vpop.permute.xlu0 %2712
        %2714 = vrot.lane.b32.xlu0 %v2147, 97
        %v2715 = vpop.permute.xlu0 %2714
        %2716 = vrot.lane.b32.xlu0 %v2148, 97
        %v2717 = vpop.permute.xlu0 %2716
        %vm2718 = vcmask 793600
        %v2719 = vsel %vm2718, %v2703, %v2705
        %v2720 = vsel %vm2718, %v2705, %v2707
        %v2721 = vsel %vm2718, %v2707, %v2709
        %v2722 = vsel %vm2718, %v2709, %v2711
        %v2723 = vsel %vm2718, %v2711, %v2713
        %v2724 = vsel %vm2718, %v2713, %v2715
        %v2725 = vsel %vm2718, %v2715, %v2717
        %v2735 = vsel %vm2180, %v2701, 0
        %2737 = vmatpush.bf16.msra.mxu0 0
        %2738 = vmatpush.bf16.msra.mxu0 0
        %2739 = vmatpush.bf16.msra.mxu0 0
        %2740 = vmatpush.bf16.msra.mxu0 0
        %2741 = vmatpush.bf16.msra.mxu0 0
        %2742 = vmatpush.bf16.msra.mxu0 0
        %2743 = vmatpush.bf16.msra.mxu0 0
        %2744 = vmatpush.bf16.msra.mxu0 %v2719
        %2745 = vmatmul.bf16.gmra.mxu0 %v2735
        %v2746 = vpop.f32.mrf.mxu0
        %v2747 = vadd.f32 0.0, %v2746
        %v2748 = vpop.f32.mrf.mxu0
        %2749 = vdwg.mxu0
        %2750 = vmatpush.bf16.msra.mxu0 0
        %2751 = vmatpush.bf16.msra.mxu0 0
        %2752 = vmatpush.bf16.msra.mxu0 0
        %2753 = vmatpush.bf16.msra.mxu0 0
        %2754 = vmatpush.bf16.msra.mxu0 0
        %2755 = vmatpush.bf16.msra.mxu0 0
        %2756 = vmatpush.bf16.msra.mxu0 0
        %2757 = vmatpush.bf16.msra.mxu0 %v2720
        %2758 = vmatmul.bf16.gmra.mxu0 %v2735
        %v2759 = vpop.f32.mrf.mxu0
        %v2760 = vadd.f32 0.0, %v2759
        %v2761 = vpop.f32.mrf.mxu0
        %2762 = vdwg.mxu0
        %2763 = vmatpush.bf16.msra.mxu0 0
        %2764 = vmatpush.bf16.msra.mxu0 0
        %2765 = vmatpush.bf16.msra.mxu0 0
        %2766 = vmatpush.bf16.msra.mxu0 0
        %2767 = vmatpush.bf16.msra.mxu0 0
        %2768 = vmatpush.bf16.msra.mxu0 0
        %2769 = vmatpush.bf16.msra.mxu0 0
        %2770 = vmatpush.bf16.msra.mxu0 %v2721
        %2771 = vmatmul.bf16.gmra.mxu0 %v2735
        %v2772 = vpop.f32.mrf.mxu0
        %v2773 = vadd.f32 0.0, %v2772
        %v2774 = vpop.f32.mrf.mxu0
        %2775 = vdwg.mxu0
        %2776 = vmatpush.bf16.msra.mxu0 0
        %2777 = vmatpush.bf16.msra.mxu0 0
        %2778 = vmatpush.bf16.msra.mxu0 0
        %2779 = vmatpush.bf16.msra.mxu0 0
        %2780 = vmatpush.bf16.msra.mxu0 0
        %2781 = vmatpush.bf16.msra.mxu0 0
        %2782 = vmatpush.bf16.msra.mxu0 0
        %2783 = vmatpush.bf16.msra.mxu0 %v2722
        %2784 = vmatmul.bf16.gmra.mxu0 %v2735
        %v2785 = vpop.f32.mrf.mxu0
        %v2786 = vadd.f32 0.0, %v2785
        %v2787 = vpop.f32.mrf.mxu0
        %2788 = vdwg.mxu0
        %2789 = vmatpush.bf16.msra.mxu0 0
        %2790 = vmatpush.bf16.msra.mxu0 0
        %2791 = vmatpush.bf16.msra.mxu0 0
        %2792 = vmatpush.bf16.msra.mxu0 0
        %2793 = vmatpush.bf16.msra.mxu0 0
        %2794 = vmatpush.bf16.msra.mxu0 0
        %2795 = vmatpush.bf16.msra.mxu0 0
        %2796 = vmatpush.bf16.msra.mxu0 %v2723
        %2797 = vmatmul.bf16.gmra.mxu0 %v2735
        %v2798 = vpop.f32.mrf.mxu0
        %v2799 = vadd.f32 0.0, %v2798
        %v2800 = vpop.f32.mrf.mxu0
        %2801 = vdwg.mxu0
        %2802 = vmatpush.bf16.msra.mxu0 0
        %2803 = vmatpush.bf16.msra.mxu0 0
        %2804 = vmatpush.bf16.msra.mxu0 0
        %2805 = vmatpush.bf16.msra.mxu0 0
        %2806 = vmatpush.bf16.msra.mxu0 0
        %2807 = vmatpush.bf16.msra.mxu0 0
        %2808 = vmatpush.bf16.msra.mxu0 0
        %2809 = vmatpush.bf16.msra.mxu0 %v2724
        %2810 = vmatmul.bf16.gmra.mxu0 %v2735
        %v2811 = vpop.f32.mrf.mxu0
        %v2812 = vadd.f32 0.0, %v2811
        %v2813 = vpop.f32.mrf.mxu0
        %2814 = vdwg.mxu0
        %2815 = vmatpush.bf16.msra.mxu0 0
        %2816 = vmatpush.bf16.msra.mxu0 0
        %2817 = vmatpush.bf16.msra.mxu0 0
        %2818 = vmatpush.bf16.msra.mxu0 0
        %2819 = vmatpush.bf16.msra.mxu0 0
        %2820 = vmatpush.bf16.msra.mxu0 0
        %2821 = vmatpush.bf16.msra.mxu0 0
        %2822 = vmatpush.bf16.msra.mxu0 %v2725
        %2823 = vmatmul.bf16.gmra.mxu0 %v2735
        %v2824 = vpop.f32.mrf.mxu0
        %v2825 = vadd.f32 0.0, %v2824
        %v2826 = vpop.f32.mrf.mxu0
        %2827 = vdwg.mxu0
        %2828 = vmatpush.bf16.msra.mxu0 0
        %2829 = vmatpush.bf16.msra.mxu0 0
        %2830 = vmatpush.bf16.msra.mxu0 0
        %2831 = vmatpush.bf16.msra.mxu0 0
        %2832 = vmatpush.bf16.msra.mxu0 0
        %2833 = vmatpush.bf16.msra.mxu0 0
        %2834 = vmatpush.bf16.msra.mxu0 0
        %2835 = vmatpush.bf16.msra.mxu0 %v2717
        %2836 = vmatmul.bf16.gmra.mxu0 %v2735
        %v2837 = vpop.f32.mrf.mxu0
        %v2838 = vadd.f32 0.0, %v2837
        %v2839 = vpop.f32.mrf.mxu0
        %2840 = vdwg.mxu0
        %v2841 = vadd.f32 %v2692, %v2747
        %v2842 = vadd.f32 %v2693, %v2760
        %v2843 = vadd.f32 %v2694, %v2773
        %v2844 = vadd.f32 %v2695, %v2786
        %v2845 = vadd.f32 %v2696, %v2799
        %v2846 = vadd.f32 %v2697, %v2812
        %v2847 = vadd.f32 %v2698, %v2825
        %v2848 = vadd.f32 %v2699, %v2838
        %s2849 = scalar_lea.vmem [#allocation10], 20
        %v2850 = vld [vmem:[%s2849] sm:$0xf]
        %2851 = vrot.lane.b32.xlu0 %v2141, 96
        %v2852 = vpop.permute.xlu0 %2851
        %2853 = vrot.lane.b32.xlu0 %v2142, 96
        %v2854 = vpop.permute.xlu0 %2853
        %2855 = vrot.lane.b32.xlu0 %v2143, 96
        %v2856 = vpop.permute.xlu0 %2855
        %2857 = vrot.lane.b32.xlu0 %v2144, 96
        %v2858 = vpop.permute.xlu0 %2857
        %2859 = vrot.lane.b32.xlu0 %v2145, 96
        %v2860 = vpop.permute.xlu0 %2859
        %2861 = vrot.lane.b32.xlu0 %v2146, 96
        %v2862 = vpop.permute.xlu0 %2861
        %2863 = vrot.lane.b32.xlu0 %v2147, 96
        %v2864 = vpop.permute.xlu0 %2863
        %2865 = vrot.lane.b32.xlu0 %v2148, 96
        %v2866 = vpop.permute.xlu0 %2865
        %v2867 = vsel %vm953, %v2852, %v2854
        %v2868 = vsel %vm953, %v2854, %v2856
        %v2869 = vsel %vm953, %v2856, %v2858
        %v2870 = vsel %vm953, %v2858, %v2860
        %v2871 = vsel %vm953, %v2860, %v2862
        %v2872 = vsel %vm953, %v2862, %v2864
        %v2873 = vsel %vm953, %v2864, %v2866
        %v2883 = vsel %vm2180, %v2850, 0
        %2885 = vmatpush.bf16.msra.mxu0 0
        %2886 = vmatpush.bf16.msra.mxu0 0
        %2887 = vmatpush.bf16.msra.mxu0 0
        %2888 = vmatpush.bf16.msra.mxu0 0
        %2889 = vmatpush.bf16.msra.mxu0 0
        %2890 = vmatpush.bf16.msra.mxu0 0
        %2891 = vmatpush.bf16.msra.mxu0 0
        %2892 = vmatpush.bf16.msra.mxu0 %v2867
        %2893 = vmatmul.bf16.gmra.mxu0 %v2883
        %v2894 = vpop.f32.mrf.mxu0
        %v2895 = vadd.f32 0.0, %v2894
        %v2896 = vpop.f32.mrf.mxu0
        %2897 = vdwg.mxu0
        %2898 = vmatpush.bf16.msra.mxu0 0
        %2899 = vmatpush.bf16.msra.mxu0 0
        %2900 = vmatpush.bf16.msra.mxu0 0
        %2901 = vmatpush.bf16.msra.mxu0 0
        %2902 = vmatpush.bf16.msra.mxu0 0
        %2903 = vmatpush.bf16.msra.mxu0 0
        %2904 = vmatpush.bf16.msra.mxu0 0
        %2905 = vmatpush.bf16.msra.mxu0 %v2868
        %2906 = vmatmul.bf16.gmra.mxu0 %v2883
        %v2907 = vpop.f32.mrf.mxu0
        %v2908 = vadd.f32 0.0, %v2907
        %v2909 = vpop.f32.mrf.mxu0
        %2910 = vdwg.mxu0
        %2911 = vmatpush.bf16.msra.mxu0 0
        %2912 = vmatpush.bf16.msra.mxu0 0
        %2913 = vmatpush.bf16.msra.mxu0 0
        %2914 = vmatpush.bf16.msra.mxu0 0
        %2915 = vmatpush.bf16.msra.mxu0 0
        %2916 = vmatpush.bf16.msra.mxu0 0
        %2917 = vmatpush.bf16.msra.mxu0 0
        %2918 = vmatpush.bf16.msra.mxu0 %v2869
        %2919 = vmatmul.bf16.gmra.mxu0 %v2883
        %v2920 = vpop.f32.mrf.mxu0
        %v2921 = vadd.f32 0.0, %v2920
        %v2922 = vpop.f32.mrf.mxu0
        %2923 = vdwg.mxu0
        %2924 = vmatpush.bf16.msra.mxu0 0
        %2925 = vmatpush.bf16.msra.mxu0 0
        %2926 = vmatpush.bf16.msra.mxu0 0
        %2927 = vmatpush.bf16.msra.mxu0 0
        %2928 = vmatpush.bf16.msra.mxu0 0
        %2929 = vmatpush.bf16.msra.mxu0 0
        %2930 = vmatpush.bf16.msra.mxu0 0
        %2931 = vmatpush.bf16.msra.mxu0 %v2870
        %2932 = vmatmul.bf16.gmra.mxu0 %v2883
        %v2933 = vpop.f32.mrf.mxu0
        %v2934 = vadd.f32 0.0, %v2933
        %v2935 = vpop.f32.mrf.mxu0
        %2936 = vdwg.mxu0
        %2937 = vmatpush.bf16.msra.mxu0 0
        %2938 = vmatpush.bf16.msra.mxu0 0
        %2939 = vmatpush.bf16.msra.mxu0 0
        %2940 = vmatpush.bf16.msra.mxu0 0
        %2941 = vmatpush.bf16.msra.mxu0 0
        %2942 = vmatpush.bf16.msra.mxu0 0
        %2943 = vmatpush.bf16.msra.mxu0 0
        %2944 = vmatpush.bf16.msra.mxu0 %v2871
        %2945 = vmatmul.bf16.gmra.mxu0 %v2883
        %v2946 = vpop.f32.mrf.mxu0
        %v2947 = vadd.f32 0.0, %v2946
        %v2948 = vpop.f32.mrf.mxu0
        %2949 = vdwg.mxu0
        %2950 = vmatpush.bf16.msra.mxu0 0
        %2951 = vmatpush.bf16.msra.mxu0 0
        %2952 = vmatpush.bf16.msra.mxu0 0
        %2953 = vmatpush.bf16.msra.mxu0 0
        %2954 = vmatpush.bf16.msra.mxu0 0
        %2955 = vmatpush.bf16.msra.mxu0 0
        %2956 = vmatpush.bf16.msra.mxu0 0
        %2957 = vmatpush.bf16.msra.mxu0 %v2872
        %2958 = vmatmul.bf16.gmra.mxu0 %v2883
        %v2959 = vpop.f32.mrf.mxu0
        %v2960 = vadd.f32 0.0, %v2959
        %v2961 = vpop.f32.mrf.mxu0
        %2962 = vdwg.mxu0
        %2963 = vmatpush.bf16.msra.mxu0 0
        %2964 = vmatpush.bf16.msra.mxu0 0
        %2965 = vmatpush.bf16.msra.mxu0 0
        %2966 = vmatpush.bf16.msra.mxu0 0
        %2967 = vmatpush.bf16.msra.mxu0 0
        %2968 = vmatpush.bf16.msra.mxu0 0
        %2969 = vmatpush.bf16.msra.mxu0 0
        %2970 = vmatpush.bf16.msra.mxu0 %v2873
        %2971 = vmatmul.bf16.gmra.mxu0 %v2883
        %v2972 = vpop.f32.mrf.mxu0
        %v2973 = vadd.f32 0.0, %v2972
        %v2974 = vpop.f32.mrf.mxu0
        %2975 = vdwg.mxu0
        %2976 = vmatpush.bf16.msra.mxu0 0
        %2977 = vmatpush.bf16.msra.mxu0 0
        %2978 = vmatpush.bf16.msra.mxu0 0
        %2979 = vmatpush.bf16.msra.mxu0 0
        %2980 = vmatpush.bf16.msra.mxu0 0
        %2981 = vmatpush.bf16.msra.mxu0 0
        %2982 = vmatpush.bf16.msra.mxu0 0
        %2983 = vmatpush.bf16.msra.mxu0 %v2866
        %2984 = vmatmul.bf16.gmra.mxu0 %v2883
        %v2985 = vpop.f32.mrf.mxu0
        %v2986 = vadd.f32 0.0, %v2985
        %v2987 = vpop.f32.mrf.mxu0
        %2988 = vdwg.mxu0
        %v2989 = vadd.f32 %v2841, %v2895
        %v2990 = vadd.f32 %v2842, %v2908
        %v2991 = vadd.f32 %v2843, %v2921
        %v2992 = vadd.f32 %v2844, %v2934
        %v2993 = vadd.f32 %v2845, %v2947
        %v2994 = vadd.f32 %v2846, %v2960
        %v2995 = vadd.f32 %v2847, %v2973
        %v2996 = vadd.f32 %v2848, %v2986
        %s2997 = scalar_lea.vmem [#allocation10], 24
        %v2998 = vld [vmem:[%s2997] sm:$0xf]
        %2999 = vrot.lane.b32.xlu0 %v2141, 68
        %v3000 = vpop.permute.xlu0 %2999
        %3001 = vrot.lane.b32.xlu0 %v2142, 68
        %v3002 = vpop.permute.xlu0 %3001
        %3003 = vrot.lane.b32.xlu0 %v2143, 68
        %v3004 = vpop.permute.xlu0 %3003
        %3005 = vrot.lane.b32.xlu0 %v2144, 68
        %v3006 = vpop.permute.xlu0 %3005
        %3007 = vrot.lane.b32.xlu0 %v2145, 68
        %v3008 = vpop.permute.xlu0 %3007
        %3009 = vrot.lane.b32.xlu0 %v2146, 68
        %v3010 = vpop.permute.xlu0 %3009
        %3011 = vrot.lane.b32.xlu0 %v2147, 68
        %v3012 = vpop.permute.xlu0 %3011
        %3013 = vrot.lane.b32.xlu0 %v2148, 68
        %v3014 = vpop.permute.xlu0 %3013
        %vm3015 = vcmask 556032
        %v3016 = vsel %vm3015, %v3000, %v3002
        %v3017 = vsel %vm3015, %v3002, %v3004
        %v3018 = vsel %vm3015, %v3004, %v3006
        %v3019 = vsel %vm3015, %v3006, %v3008
        %v3020 = vsel %vm3015, %v3008, %v3010
        %v3021 = vsel %vm3015, %v3010, %v3012
        %v3022 = vsel %vm3015, %v3012, %v3014
        %v3032 = vsel %vm2180, %v2998, 0
        %3034 = vmatpush.bf16.msra.mxu0 0
        %3035 = vmatpush.bf16.msra.mxu0 0
        %3036 = vmatpush.bf16.msra.mxu0 0
        %3037 = vmatpush.bf16.msra.mxu0 0
        %3038 = vmatpush.bf16.msra.mxu0 0
        %3039 = vmatpush.bf16.msra.mxu0 0
        %3040 = vmatpush.bf16.msra.mxu0 0
        %3041 = vmatpush.bf16.msra.mxu0 %v3016
        %3042 = vmatmul.bf16.gmra.mxu0 %v3032
        %v3043 = vpop.f32.mrf.mxu0
        %v3044 = vadd.f32 0.0, %v3043
        %v3045 = vpop.f32.mrf.mxu0
        %3046 = vdwg.mxu0
        %3047 = vmatpush.bf16.msra.mxu0 0
        %3048 = vmatpush.bf16.msra.mxu0 0
        %3049 = vmatpush.bf16.msra.mxu0 0
        %3050 = vmatpush.bf16.msra.mxu0 0
        %3051 = vmatpush.bf16.msra.mxu0 0
        %3052 = vmatpush.bf16.msra.mxu0 0
        %3053 = vmatpush.bf16.msra.mxu0 0
        %3054 = vmatpush.bf16.msra.mxu0 %v3017
        %3055 = vmatmul.bf16.gmra.mxu0 %v3032
        %v3056 = vpop.f32.mrf.mxu0
        %v3057 = vadd.f32 0.0, %v3056
        %v3058 = vpop.f32.mrf.mxu0
        %3059 = vdwg.mxu0
        %3060 = vmatpush.bf16.msra.mxu0 0
        %3061 = vmatpush.bf16.msra.mxu0 0
        %3062 = vmatpush.bf16.msra.mxu0 0
        %3063 = vmatpush.bf16.msra.mxu0 0
        %3064 = vmatpush.bf16.msra.mxu0 0
        %3065 = vmatpush.bf16.msra.mxu0 0
        %3066 = vmatpush.bf16.msra.mxu0 0
        %3067 = vmatpush.bf16.msra.mxu0 %v3018
        %3068 = vmatmul.bf16.gmra.mxu0 %v3032
        %v3069 = vpop.f32.mrf.mxu0
        %v3070 = vadd.f32 0.0, %v3069
        %v3071 = vpop.f32.mrf.mxu0
        %3072 = vdwg.mxu0
        %3073 = vmatpush.bf16.msra.mxu0 0
        %3074 = vmatpush.bf16.msra.mxu0 0
        %3075 = vmatpush.bf16.msra.mxu0 0
        %3076 = vmatpush.bf16.msra.mxu0 0
        %3077 = vmatpush.bf16.msra.mxu0 0
        %3078 = vmatpush.bf16.msra.mxu0 0
        %3079 = vmatpush.bf16.msra.mxu0 0
        %3080 = vmatpush.bf16.msra.mxu0 %v3019
        %3081 = vmatmul.bf16.gmra.mxu0 %v3032
        %v3082 = vpop.f32.mrf.mxu0
        %v3083 = vadd.f32 0.0, %v3082
        %v3084 = vpop.f32.mrf.mxu0
        %3085 = vdwg.mxu0
        %3086 = vmatpush.bf16.msra.mxu0 0
        %3087 = vmatpush.bf16.msra.mxu0 0
        %3088 = vmatpush.bf16.msra.mxu0 0
        %3089 = vmatpush.bf16.msra.mxu0 0
        %3090 = vmatpush.bf16.msra.mxu0 0
        %3091 = vmatpush.bf16.msra.mxu0 0
        %3092 = vmatpush.bf16.msra.mxu0 0
        %3093 = vmatpush.bf16.msra.mxu0 %v3020
        %3094 = vmatmul.bf16.gmra.mxu0 %v3032
        %v3095 = vpop.f32.mrf.mxu0
        %v3096 = vadd.f32 0.0, %v3095
        %v3097 = vpop.f32.mrf.mxu0
        %3098 = vdwg.mxu0
        %3099 = vmatpush.bf16.msra.mxu0 0
        %3100 = vmatpush.bf16.msra.mxu0 0
        %3101 = vmatpush.bf16.msra.mxu0 0
        %3102 = vmatpush.bf16.msra.mxu0 0
        %3103 = vmatpush.bf16.msra.mxu0 0
        %3104 = vmatpush.bf16.msra.mxu0 0
        %3105 = vmatpush.bf16.msra.mxu0 0
        %3106 = vmatpush.bf16.msra.mxu0 %v3021
        %3107 = vmatmul.bf16.gmra.mxu0 %v3032
        %v3108 = vpop.f32.mrf.mxu0
        %v3109 = vadd.f32 0.0, %v3108
        %v3110 = vpop.f32.mrf.mxu0
        %3111 = vdwg.mxu0
        %3112 = vmatpush.bf16.msra.mxu0 0
        %3113 = vmatpush.bf16.msra.mxu0 0
        %3114 = vmatpush.bf16.msra.mxu0 0
        %3115 = vmatpush.bf16.msra.mxu0 0
        %3116 = vmatpush.bf16.msra.mxu0 0
        %3117 = vmatpush.bf16.msra.mxu0 0
        %3118 = vmatpush.bf16.msra.mxu0 0
        %3119 = vmatpush.bf16.msra.mxu0 %v3022
        %3120 = vmatmul.bf16.gmra.mxu0 %v3032
        %v3121 = vpop.f32.mrf.mxu0
        %v3122 = vadd.f32 0.0, %v3121
        %v3123 = vpop.f32.mrf.mxu0
        %3124 = vdwg.mxu0
        %3125 = vmatpush.bf16.msra.mxu0 0
        %3126 = vmatpush.bf16.msra.mxu0 0
        %3127 = vmatpush.bf16.msra.mxu0 0
        %3128 = vmatpush.bf16.msra.mxu0 0
        %3129 = vmatpush.bf16.msra.mxu0 0
        %3130 = vmatpush.bf16.msra.mxu0 0
        %3131 = vmatpush.bf16.msra.mxu0 0
        %3132 = vmatpush.bf16.msra.mxu0 %v3014
        %3133 = vmatmul.bf16.gmra.mxu0 %v3032
        %v3134 = vpop.f32.mrf.mxu0
        %v3135 = vadd.f32 0.0, %v3134
        %v3136 = vpop.f32.mrf.mxu0
        %3137 = vdwg.mxu0
        %v3138 = vadd.f32 %v2989, %v3044
        %v3139 = vadd.f32 %v2990, %v3057
        %v3140 = vadd.f32 %v2991, %v3070
        %v3141 = vadd.f32 %v2992, %v3083
        %v3142 = vadd.f32 %v2993, %v3096
        %v3143 = vadd.f32 %v2994, %v3109
        %v3144 = vadd.f32 %v2995, %v3122
        %v3145 = vadd.f32 %v2996, %v3135
        %s3146 = scalar_lea.vmem [#allocation10], 28
        %v3147 = vld [vmem:[%s3146] sm:$0xf]
        %3148 = vrot.lane.b32.xlu0 %v2141, 67
        %v3149 = vpop.permute.xlu0 %3148
        %3150 = vrot.lane.b32.xlu0 %v2142, 67
        %v3151 = vpop.permute.xlu0 %3150
        %3152 = vrot.lane.b32.xlu0 %v2143, 67
        %v3153 = vpop.permute.xlu0 %3152
        %3154 = vrot.lane.b32.xlu0 %v2144, 67
        %v3155 = vpop.permute.xlu0 %3154
        %3156 = vrot.lane.b32.xlu0 %v2145, 67
        %v3157 = vpop.permute.xlu0 %3156
        %3158 = vrot.lane.b32.xlu0 %v2146, 67
        %v3159 = vpop.permute.xlu0 %3158
        %3160 = vrot.lane.b32.xlu0 %v2147, 67
        %v3161 = vpop.permute.xlu0 %3160
        %3162 = vrot.lane.b32.xlu0 %v2148, 67
        %v3163 = vpop.permute.xlu0 %3162
        %vm3164 = vcmask 547840
        %v3165 = vsel %vm3164, %v3149, %v3151
        %v3166 = vsel %vm3164, %v3151, %v3153
        %v3167 = vsel %vm3164, %v3153, %v3155
        %v3168 = vsel %vm3164, %v3155, %v3157
        %v3169 = vsel %vm3164, %v3157, %v3159
        %v3170 = vsel %vm3164, %v3159, %v3161
        %v3171 = vsel %vm3164, %v3161, %v3163
        %v3181 = vsel %vm2180, %v3147, 0
        %3183 = vmatpush.bf16.msra.mxu0 0
        %3184 = vmatpush.bf16.msra.mxu0 0
        %3185 = vmatpush.bf16.msra.mxu0 0
        %3186 = vmatpush.bf16.msra.mxu0 0
        %3187 = vmatpush.bf16.msra.mxu0 0
        %3188 = vmatpush.bf16.msra.mxu0 0
        %3189 = vmatpush.bf16.msra.mxu0 0
        %3190 = vmatpush.bf16.msra.mxu0 %v3165
        %3191 = vmatmul.bf16.gmra.mxu0 %v3181
        %v3192 = vpop.f32.mrf.mxu0
        %v3193 = vadd.f32 0.0, %v3192
        %v3194 = vpop.f32.mrf.mxu0
        %3195 = vdwg.mxu0
        %3196 = vmatpush.bf16.msra.mxu0 0
        %3197 = vmatpush.bf16.msra.mxu0 0
        %3198 = vmatpush.bf16.msra.mxu0 0
        %3199 = vmatpush.bf16.msra.mxu0 0
        %3200 = vmatpush.bf16.msra.mxu0 0
        %3201 = vmatpush.bf16.msra.mxu0 0
        %3202 = vmatpush.bf16.msra.mxu0 0
        %3203 = vmatpush.bf16.msra.mxu0 %v3166
        %3204 = vmatmul.bf16.gmra.mxu0 %v3181
        %v3205 = vpop.f32.mrf.mxu0
        %v3206 = vadd.f32 0.0, %v3205
        %v3207 = vpop.f32.mrf.mxu0
        %3208 = vdwg.mxu0
        %3209 = vmatpush.bf16.msra.mxu0 0
        %3210 = vmatpush.bf16.msra.mxu0 0
        %3211 = vmatpush.bf16.msra.mxu0 0
        %3212 = vmatpush.bf16.msra.mxu0 0
        %3213 = vmatpush.bf16.msra.mxu0 0
        %3214 = vmatpush.bf16.msra.mxu0 0
        %3215 = vmatpush.bf16.msra.mxu0 0
        %3216 = vmatpush.bf16.msra.mxu0 %v3167
        %3217 = vmatmul.bf16.gmra.mxu0 %v3181
        %v3218 = vpop.f32.mrf.mxu0
        %v3219 = vadd.f32 0.0, %v3218
        %v3220 = vpop.f32.mrf.mxu0
        %3221 = vdwg.mxu0
        %3222 = vmatpush.bf16.msra.mxu0 0
        %3223 = vmatpush.bf16.msra.mxu0 0
        %3224 = vmatpush.bf16.msra.mxu0 0
        %3225 = vmatpush.bf16.msra.mxu0 0
        %3226 = vmatpush.bf16.msra.mxu0 0
        %3227 = vmatpush.bf16.msra.mxu0 0
        %3228 = vmatpush.bf16.msra.mxu0 0
        %3229 = vmatpush.bf16.msra.mxu0 %v3168
        %3230 = vmatmul.bf16.gmra.mxu0 %v3181
        %v3231 = vpop.f32.mrf.mxu0
        %v3232 = vadd.f32 0.0, %v3231
        %v3233 = vpop.f32.mrf.mxu0
        %3234 = vdwg.mxu0
        %3235 = vmatpush.bf16.msra.mxu0 0
        %3236 = vmatpush.bf16.msra.mxu0 0
        %3237 = vmatpush.bf16.msra.mxu0 0
        %3238 = vmatpush.bf16.msra.mxu0 0
        %3239 = vmatpush.bf16.msra.mxu0 0
        %3240 = vmatpush.bf16.msra.mxu0 0
        %3241 = vmatpush.bf16.msra.mxu0 0
        %3242 = vmatpush.bf16.msra.mxu0 %v3169
        %3243 = vmatmul.bf16.gmra.mxu0 %v3181
        %v3244 = vpop.f32.mrf.mxu0
        %v3245 = vadd.f32 0.0, %v3244
        %v3246 = vpop.f32.mrf.mxu0
        %3247 = vdwg.mxu0
        %3248 = vmatpush.bf16.msra.mxu0 0
        %3249 = vmatpush.bf16.msra.mxu0 0
        %3250 = vmatpush.bf16.msra.mxu0 0
        %3251 = vmatpush.bf16.msra.mxu0 0
        %3252 = vmatpush.bf16.msra.mxu0 0
        %3253 = vmatpush.bf16.msra.mxu0 0
        %3254 = vmatpush.bf16.msra.mxu0 0
        %3255 = vmatpush.bf16.msra.mxu0 %v3170
        %3256 = vmatmul.bf16.gmra.mxu0 %v3181
        %v3257 = vpop.f32.mrf.mxu0
        %v3258 = vadd.f32 0.0, %v3257
        %v3259 = vpop.f32.mrf.mxu0
        %3260 = vdwg.mxu0
        %3261 = vmatpush.bf16.msra.mxu0 0
        %3262 = vmatpush.bf16.msra.mxu0 0
        %3263 = vmatpush.bf16.msra.mxu0 0
        %3264 = vmatpush.bf16.msra.mxu0 0
        %3265 = vmatpush.bf16.msra.mxu0 0
        %3266 = vmatpush.bf16.msra.mxu0 0
        %3267 = vmatpush.bf16.msra.mxu0 0
        %3268 = vmatpush.bf16.msra.mxu0 %v3171
        %3269 = vmatmul.bf16.gmra.mxu0 %v3181
        %v3270 = vpop.f32.mrf.mxu0
        %v3271 = vadd.f32 0.0, %v3270
        %v3272 = vpop.f32.mrf.mxu0
        %3273 = vdwg.mxu0
        %3274 = vmatpush.bf16.msra.mxu0 0
        %3275 = vmatpush.bf16.msra.mxu0 0
        %3276 = vmatpush.bf16.msra.mxu0 0
        %3277 = vmatpush.bf16.msra.mxu0 0
        %3278 = vmatpush.bf16.msra.mxu0 0
        %3279 = vmatpush.bf16.msra.mxu0 0
        %3280 = vmatpush.bf16.msra.mxu0 0
        %3281 = vmatpush.bf16.msra.mxu0 %v3163
        %3282 = vmatmul.bf16.gmra.mxu0 %v3181
        %v3283 = vpop.f32.mrf.mxu0
        %v3284 = vadd.f32 0.0, %v3283
        %v3285 = vpop.f32.mrf.mxu0
        %3286 = vdwg.mxu0
        %v3287 = vadd.f32 %v3138, %v3193
        %v3288 = vadd.f32 %v3139, %v3206
        %v3289 = vadd.f32 %v3140, %v3219
        %v3290 = vadd.f32 %v3141, %v3232
        %v3291 = vadd.f32 %v3142, %v3245
        %v3292 = vadd.f32 %v3143, %v3258
        %v3293 = vadd.f32 %v3144, %v3271
        %v3294 = vadd.f32 %v3145, %v3284
        %s3295 = scalar_lea.vmem [#allocation10], 32
        %v3296 = vld [vmem:[%s3295] sm:$0xf]
        %3297 = vrot.lane.b32.xlu0 %v2141, 66
        %v3298 = vpop.permute.xlu0 %3297
        %3299 = vrot.lane.b32.xlu0 %v2142, 66
        %v3300 = vpop.permute.xlu0 %3299
        %3301 = vrot.lane.b32.xlu0 %v2143, 66
        %v3302 = vpop.permute.xlu0 %3301
        %3303 = vrot.lane.b32.xlu0 %v2144, 66
        %v3304 = vpop.permute.xlu0 %3303
        %3305 = vrot.lane.b32.xlu0 %v2145, 66
        %v3306 = vpop.permute.xlu0 %3305
        %3307 = vrot.lane.b32.xlu0 %v2146, 66
        %v3308 = vpop.permute.xlu0 %3307
        %3309 = vrot.lane.b32.xlu0 %v2147, 66
        %v3310 = vpop.permute.xlu0 %3309
        %3311 = vrot.lane.b32.xlu0 %v2148, 66
        %v3312 = vpop.permute.xlu0 %3311
        %vm3313 = vcmask 539648
        %v3314 = vsel %vm3313, %v3298, %v3300
        %v3315 = vsel %vm3313, %v3300, %v3302
        %v3316 = vsel %vm3313, %v3302, %v3304
        %v3317 = vsel %vm3313, %v3304, %v3306
        %v3318 = vsel %vm3313, %v3306, %v3308
        %v3319 = vsel %vm3313, %v3308, %v3310
        %v3320 = vsel %vm3313, %v3310, %v3312
        %v3330 = vsel %vm2180, %v3296, 0
        %3332 = vmatpush.bf16.msra.mxu0 0
        %3333 = vmatpush.bf16.msra.mxu0 0
        %3334 = vmatpush.bf16.msra.mxu0 0
        %3335 = vmatpush.bf16.msra.mxu0 0
        %3336 = vmatpush.bf16.msra.mxu0 0
        %3337 = vmatpush.bf16.msra.mxu0 0
        %3338 = vmatpush.bf16.msra.mxu0 0
        %3339 = vmatpush.bf16.msra.mxu0 %v3314
        %3340 = vmatmul.bf16.gmra.mxu0 %v3330
        %v3341 = vpop.f32.mrf.mxu0
        %v3342 = vadd.f32 0.0, %v3341
        %v3343 = vpop.f32.mrf.mxu0
        %3344 = vdwg.mxu0
        %3345 = vmatpush.bf16.msra.mxu0 0
        %3346 = vmatpush.bf16.msra.mxu0 0
        %3347 = vmatpush.bf16.msra.mxu0 0
        %3348 = vmatpush.bf16.msra.mxu0 0
        %3349 = vmatpush.bf16.msra.mxu0 0
        %3350 = vmatpush.bf16.msra.mxu0 0
        %3351 = vmatpush.bf16.msra.mxu0 0
        %3352 = vmatpush.bf16.msra.mxu0 %v3315
        %3353 = vmatmul.bf16.gmra.mxu0 %v3330
        %v3354 = vpop.f32.mrf.mxu0
        %v3355 = vadd.f32 0.0, %v3354
        %v3356 = vpop.f32.mrf.mxu0
        %3357 = vdwg.mxu0
        %3358 = vmatpush.bf16.msra.mxu0 0
        %3359 = vmatpush.bf16.msra.mxu0 0
        %3360 = vmatpush.bf16.msra.mxu0 0
        %3361 = vmatpush.bf16.msra.mxu0 0
        %3362 = vmatpush.bf16.msra.mxu0 0
        %3363 = vmatpush.bf16.msra.mxu0 0
        %3364 = vmatpush.bf16.msra.mxu0 0
        %3365 = vmatpush.bf16.msra.mxu0 %v3316
        %3366 = vmatmul.bf16.gmra.mxu0 %v3330
        %v3367 = vpop.f32.mrf.mxu0
        %v3368 = vadd.f32 0.0, %v3367
        %v3369 = vpop.f32.mrf.mxu0
        %3370 = vdwg.mxu0
        %3371 = vmatpush.bf16.msra.mxu0 0
        %3372 = vmatpush.bf16.msra.mxu0 0
        %3373 = vmatpush.bf16.msra.mxu0 0
        %3374 = vmatpush.bf16.msra.mxu0 0
        %3375 = vmatpush.bf16.msra.mxu0 0
        %3376 = vmatpush.bf16.msra.mxu0 0
        %3377 = vmatpush.bf16.msra.mxu0 0
        %3378 = vmatpush.bf16.msra.mxu0 %v3317
        %3379 = vmatmul.bf16.gmra.mxu0 %v3330
        %v3380 = vpop.f32.mrf.mxu0
        %v3381 = vadd.f32 0.0, %v3380
        %v3382 = vpop.f32.mrf.mxu0
        %3383 = vdwg.mxu0
        %3384 = vmatpush.bf16.msra.mxu0 0
        %3385 = vmatpush.bf16.msra.mxu0 0
        %3386 = vmatpush.bf16.msra.mxu0 0
        %3387 = vmatpush.bf16.msra.mxu0 0
        %3388 = vmatpush.bf16.msra.mxu0 0
        %3389 = vmatpush.bf16.msra.mxu0 0
        %3390 = vmatpush.bf16.msra.mxu0 0
        %3391 = vmatpush.bf16.msra.mxu0 %v3318
        %3392 = vmatmul.bf16.gmra.mxu0 %v3330
        %v3393 = vpop.f32.mrf.mxu0
        %v3394 = vadd.f32 0.0, %v3393
        %v3395 = vpop.f32.mrf.mxu0
        %3396 = vdwg.mxu0
        %3397 = vmatpush.bf16.msra.mxu0 0
        %3398 = vmatpush.bf16.msra.mxu0 0
        %3399 = vmatpush.bf16.msra.mxu0 0
        %3400 = vmatpush.bf16.msra.mxu0 0
        %3401 = vmatpush.bf16.msra.mxu0 0
        %3402 = vmatpush.bf16.msra.mxu0 0
        %3403 = vmatpush.bf16.msra.mxu0 0
        %3404 = vmatpush.bf16.msra.mxu0 %v3319
        %3405 = vmatmul.bf16.gmra.mxu0 %v3330
        %v3406 = vpop.f32.mrf.mxu0
        %v3407 = vadd.f32 0.0, %v3406
        %v3408 = vpop.f32.mrf.mxu0
        %3409 = vdwg.mxu0
        %3410 = vmatpush.bf16.msra.mxu0 0
        %3411 = vmatpush.bf16.msra.mxu0 0
        %3412 = vmatpush.bf16.msra.mxu0 0
        %3413 = vmatpush.bf16.msra.mxu0 0
        %3414 = vmatpush.bf16.msra.mxu0 0
        %3415 = vmatpush.bf16.msra.mxu0 0
        %3416 = vmatpush.bf16.msra.mxu0 0
        %3417 = vmatpush.bf16.msra.mxu0 %v3320
        %3418 = vmatmul.bf16.gmra.mxu0 %v3330
        %v3419 = vpop.f32.mrf.mxu0
        %v3420 = vadd.f32 0.0, %v3419
        %v3421 = vpop.f32.mrf.mxu0
        %3422 = vdwg.mxu0
        %3423 = vmatpush.bf16.msra.mxu0 0
        %3424 = vmatpush.bf16.msra.mxu0 0
        %3425 = vmatpush.bf16.msra.mxu0 0
        %3426 = vmatpush.bf16.msra.mxu0 0
        %3427 = vmatpush.bf16.msra.mxu0 0
        %3428 = vmatpush.bf16.msra.mxu0 0
        %3429 = vmatpush.bf16.msra.mxu0 0
        %3430 = vmatpush.bf16.msra.mxu0 %v3312
        %3431 = vmatmul.bf16.gmra.mxu0 %v3330
        %v3432 = vpop.f32.mrf.mxu0
        %v3433 = vadd.f32 0.0, %v3432
        %v3434 = vpop.f32.mrf.mxu0
        %3435 = vdwg.mxu0
        %v3436 = vadd.f32 %v3287, %v3342
        %v3437 = vadd.f32 %v3288, %v3355
        %v3438 = vadd.f32 %v3289, %v3368
        %v3439 = vadd.f32 %v3290, %v3381
        %v3440 = vadd.f32 %v3291, %v3394
        %v3441 = vadd.f32 %v3292, %v3407
        %v3442 = vadd.f32 %v3293, %v3420
        %v3443 = vadd.f32 %v3294, %v3433
        %v3444 = vld [vmem:[%s7] sm:$0xff]
        %3446 = vset.pattern.permute.xlu0 0
        %3447 = vperm.xlu0 %3446, %v3444
        %v3448 = vpop.permute.xlu0 %3447
        %v3450 = vadd.f32 %v3436, %v3448
        %v3451 = vadd.f32 %v3437, %v3448
        %v3452 = vadd.f32 %v3438, %v3448
        %v3453 = vadd.f32 %v3439, %v3448
        %v3454 = vadd.f32 %v3440, %v3448
        %v3455 = vadd.f32 %v3441, %v3448
        %v3456 = vadd.f32 %v3442, %v3448
        %v3457 = vadd.f32 %v3443, %v3448
        %vm3458 = vcmp.gt.f32.partialorder %v3450, 0.0
        %vm3459 = vcmp.gt.f32.partialorder %v3451, 0.0
        %vm3460 = vcmp.gt.f32.partialorder %v3452, 0.0
        %vm3461 = vcmp.gt.f32.partialorder %v3453, 0.0
        %vm3462 = vcmp.gt.f32.partialorder %v3454, 0.0
        %vm3463 = vcmp.gt.f32.partialorder %v3455, 0.0
        %vm3464 = vcmp.gt.f32.partialorder %v3456, 0.0
        %vm3465 = vcmp.gt.f32.partialorder %v3457, 0.0
        %v3466 = vmul.f32 %v3450, 0.2
        %v3467 = vmul.f32 %v3451, 0.2
        %v3468 = vmul.f32 %v3452, 0.2
        %v3469 = vmul.f32 %v3453, 0.2
        %v3470 = vmul.f32 %v3454, 0.2
        %v3471 = vmul.f32 %v3455, 0.2
        %v3472 = vmul.f32 %v3456, 0.2
        %v3473 = vmul.f32 %v3457, 0.2
        %v3474 = vsel %vm3458, %v3450, %v3466
        %v3475 = vsel %vm3459, %v3451, %v3467
        %v3476 = vsel %vm3460, %v3452, %v3468
        %v3477 = vsel %vm3461, %v3453, %v3469
        %v3478 = vsel %vm3462, %v3454, %v3470
        %v3479 = vsel %vm3463, %v3455, %v3471
        %v3480 = vsel %vm3464, %v3456, %v3472
        %v3481 = vsel %vm3465, %v3457, %v3473
        %v3482 = vld [vmem:[%s9] sm:$0xff]
        %v3484 = vperm.slane %v3482, 0
        %v3485 = vperm.slane %v3482, 1
        %v3486 = vperm.slane %v3482, 2
        %v3487 = vperm.slane %v3482, 3
        %v3488 = vperm.slane %v3482, 4
        %v3489 = vperm.slane %v3482, 5
        %v3490 = vperm.slane %v3482, 6
        %v3491 = vperm.slane %v3482, 7
        %v3500 = vmul.f32 %v3474, %v3484
        %v3501 = vmul.f32 %v3475, %v3485
        %v3502 = vmul.f32 %v3476, %v3486
        %v3503 = vmul.f32 %v3477, %v3487
        %v3504 = vmul.f32 %v3478, %v3488
        %v3505 = vmul.f32 %v3479, %v3489
        %v3506 = vmul.f32 %v3480, %v3490
        %v3507 = vmul.f32 %v3481, %v3491
        %v3508 = vpack.c.bf16 %v3501, %v3500
        %v3509 = vpack.c.bf16 %v3503, %v3502
        %v3510 = vpack.c.bf16 %v3505, %v3504
        %v3511 = vpack.c.bf16 %v3507, %v3506
        %3512 = vst [vmem:[#allocation4] sm:$0xff] %v3508
        %3513 = vst [vmem:[#allocation4 + $0x8] sm:$0xff] %v3509
        %3514 = vst [vmem:[#allocation4 + $0x10] sm:$0xff] %v3510
        %vm3515 = vcmask 48132
        %vm3516 = vmor %vm3515, %vm2098
        %3517 = vst.msk [vmem:[#allocation4 + $0x18] sm:$0xff] %vm3516, %v3511
        %v3518 = vld [vmem:[%s5] sm:$0x1]
        %v3519 = vld [vmem:[#allocation4] sm:$0xff]
        %v3520 = vld [vmem:[#allocation4 + $0x8] sm:$0xff]
        %v3521 = vld [vmem:[#allocation4 + $0x10] sm:$0xff]
        %v3522 = vld [vmem:[#allocation4 + $0x18] sm:$0xf]
        %s3523 = scalar_lea.vmem %s5, 1
        %v3524 = vld [vmem:[%s3523] sm:$0x1]
        %v3529 = vunpack.c.l.b16 %v3519
        %v3530 = vunpack.c.h.b16 %v3519
        %v3531 = vunpack.c.l.b16 %v3520
        %v3532 = vunpack.c.h.b16 %v3520
        %v3533 = vunpack.c.l.b16 %v3521
        %v3534 = vunpack.c.h.b16 %v3521
        %v3535 = vunpack.c.l.b16 %v3522
        %v3536 = vpack.c.b16 %v3529, %v3529
        %v3537 = vpack.c.b16 %v3530, %v3530
        %v3538 = vpack.c.b16 %v3531, %v3531
        %v3539 = vpack.c.b16 %v3532, %v3532
        %v3540 = vpack.c.b16 %v3533, %v3533
        %v3541 = vpack.c.b16 %v3534, %v3534
        %v3542 = vpack.c.b16 %v3535, %v3535
        %3543 = vrot.lane.b32.xlu0 %v3536, 127
        %v3544 = vpop.permute.xlu0 %3543
        %3545 = vrot.lane.b32.xlu0 %v3537, 127
        %v3546 = vpop.permute.xlu0 %3545
        %3547 = vrot.lane.b32.xlu0 %v3538, 127
        %v3548 = vpop.permute.xlu0 %3547
        %3549 = vrot.lane.b32.xlu0 %v3539, 127
        %v3550 = vpop.permute.xlu0 %3549
        %3551 = vrot.lane.b32.xlu0 %v3540, 127
        %v3552 = vpop.permute.xlu0 %3551
        %3553 = vrot.lane.b32.xlu0 %v3541, 127
        %v3554 = vpop.permute.xlu0 %3553
        %3555 = vrot.lane.b32.xlu0 %v3542, 127
        %v3556 = vpop.permute.xlu0 %3555
        %v3557 = vsel %vm626, %v3544, %v3546
        %v3558 = vsel %vm626, %v3546, %v3548
        %v3559 = vsel %vm626, %v3548, %v3550
        %v3560 = vsel %vm626, %v3550, %v3552
        %v3561 = vsel %vm626, %v3552, %v3554
        %v3562 = vsel %vm626, %v3554, %v3556
        %vm3563 = vcmask 64512
        %v3565 = vsel %vm3563, %v3524, 0
        %v3568 = vsel %vm2098, %v3557, 0
        %v3571 = vsel %vm2098, %v3558, 0
        %v3574 = vsel %vm2098, %v3559, 0
        %v3577 = vsel %vm2098, %v3560, 0
        %v3580 = vsel %vm2098, %v3561, 0
        %v3583 = vsel %vm2098, %v3562, 0
        %v3586 = vsel %vm2098, %v3556, 0
        %3588 = vmatpush.bf16.msra.mxu0 0
        %3589 = vmatpush.bf16.msra.mxu0 0
        %3590 = vmatpush.bf16.msra.mxu0 0
        %3591 = vmatpush.bf16.msra.mxu0 0
        %3592 = vmatpush.bf16.msra.mxu0 0
        %3593 = vmatpush.bf16.msra.mxu0 0
        %3594 = vmatpush.bf16.msra.mxu0 0
        %3595 = vmatpush.bf16.msra.mxu0 %v3568
        %3596 = vmatmul.bf16.gmra.mxu0 %v3565
        %v3597 = vpop.f32.mrf.mxu0
        %v3598 = vadd.f32 0.0, %v3597
        %v3599 = vpop.f32.mrf.mxu0
        %3600 = vdwg.mxu0
        %3601 = vmatpush.bf16.msra.mxu0 0
        %3602 = vmatpush.bf16.msra.mxu0 0
        %3603 = vmatpush.bf16.msra.mxu0 0
        %3604 = vmatpush.bf16.msra.mxu0 0
        %3605 = vmatpush.bf16.msra.mxu0 0
        %3606 = vmatpush.bf16.msra.mxu0 0
        %3607 = vmatpush.bf16.msra.mxu0 0
        %3608 = vmatpush.bf16.msra.mxu0 %v3571
        %3609 = vmatmul.bf16.gmra.mxu0 %v3565
        %v3610 = vpop.f32.mrf.mxu0
        %v3611 = vadd.f32 0.0, %v3610
        %v3612 = vpop.f32.mrf.mxu0
        %3613 = vdwg.mxu0
        %3614 = vmatpush.bf16.msra.mxu0 0
        %3615 = vmatpush.bf16.msra.mxu0 0
        %3616 = vmatpush.bf16.msra.mxu0 0
        %3617 = vmatpush.bf16.msra.mxu0 0
        %3618 = vmatpush.bf16.msra.mxu0 0
        %3619 = vmatpush.bf16.msra.mxu0 0
        %3620 = vmatpush.bf16.msra.mxu0 0
        %3621 = vmatpush.bf16.msra.mxu0 %v3574
        %3622 = vmatmul.bf16.gmra.mxu0 %v3565
        %v3623 = vpop.f32.mrf.mxu0
        %v3624 = vadd.f32 0.0, %v3623
        %v3625 = vpop.f32.mrf.mxu0
        %3626 = vdwg.mxu0
        %3627 = vmatpush.bf16.msra.mxu0 0
        %3628 = vmatpush.bf16.msra.mxu0 0
        %3629 = vmatpush.bf16.msra.mxu0 0
        %3630 = vmatpush.bf16.msra.mxu0 0
        %3631 = vmatpush.bf16.msra.mxu0 0
        %3632 = vmatpush.bf16.msra.mxu0 0
        %3633 = vmatpush.bf16.msra.mxu0 0
        %3634 = vmatpush.bf16.msra.mxu0 %v3577
        %3635 = vmatmul.bf16.gmra.mxu0 %v3565
        %v3636 = vpop.f32.mrf.mxu0
        %v3637 = vadd.f32 0.0, %v3636
        %v3638 = vpop.f32.mrf.mxu0
        %3639 = vdwg.mxu0
        %3640 = vmatpush.bf16.msra.mxu0 0
        %3641 = vmatpush.bf16.msra.mxu0 0
        %3642 = vmatpush.bf16.msra.mxu0 0
        %3643 = vmatpush.bf16.msra.mxu0 0
        %3644 = vmatpush.bf16.msra.mxu0 0
        %3645 = vmatpush.bf16.msra.mxu0 0
        %3646 = vmatpush.bf16.msra.mxu0 0
        %3647 = vmatpush.bf16.msra.mxu0 %v3580
        %3648 = vmatmul.bf16.gmra.mxu0 %v3565
        %v3649 = vpop.f32.mrf.mxu0
        %v3650 = vadd.f32 0.0, %v3649
        %v3651 = vpop.f32.mrf.mxu0
        %3652 = vdwg.mxu0
        %3653 = vmatpush.bf16.msra.mxu0 0
        %3654 = vmatpush.bf16.msra.mxu0 0
        %3655 = vmatpush.bf16.msra.mxu0 0
        %3656 = vmatpush.bf16.msra.mxu0 0
        %3657 = vmatpush.bf16.msra.mxu0 0
        %3658 = vmatpush.bf16.msra.mxu0 0
        %3659 = vmatpush.bf16.msra.mxu0 0
        %3660 = vmatpush.bf16.msra.mxu0 %v3583
        %3661 = vmatmul.bf16.gmra.mxu0 %v3565
        %v3662 = vpop.f32.mrf.mxu0
        %v3663 = vadd.f32 0.0, %v3662
        %v3664 = vpop.f32.mrf.mxu0
        %3665 = vdwg.mxu0
        %3666 = vmatpush.bf16.msra.mxu0 0
        %3667 = vmatpush.bf16.msra.mxu0 0
        %3668 = vmatpush.bf16.msra.mxu0 0
        %3669 = vmatpush.bf16.msra.mxu0 0
        %3670 = vmatpush.bf16.msra.mxu0 0
        %3671 = vmatpush.bf16.msra.mxu0 0
        %3672 = vmatpush.bf16.msra.mxu0 0
        %3673 = vmatpush.bf16.msra.mxu0 %v3586
        %3674 = vmatmul.bf16.gmra.mxu0 %v3565
        %v3675 = vpop.f32.mrf.mxu0
        %v3676 = vadd.f32 0.0, %v3675
        %v3677 = vpop.f32.mrf.mxu0
        %3678 = vdwg.mxu0
        %v3680 = vsel %vm3563, %v3518, 0
        %v3683 = vsel %vm2098, %v3536, 0
        %v3686 = vsel %vm2098, %v3537, 0
        %v3689 = vsel %vm2098, %v3538, 0
        %v3692 = vsel %vm2098, %v3539, 0
        %v3695 = vsel %vm2098, %v3540, 0
        %v3698 = vsel %vm2098, %v3541, 0
        %v3701 = vsel %vm2098, %v3542, 0
        %3703 = vmatpush.bf16.msra.mxu0 0
        %3704 = vmatpush.bf16.msra.mxu0 0
        %3705 = vmatpush.bf16.msra.mxu0 0
        %3706 = vmatpush.bf16.msra.mxu0 0
        %3707 = vmatpush.bf16.msra.mxu0 0
        %3708 = vmatpush.bf16.msra.mxu0 0
        %3709 = vmatpush.bf16.msra.mxu0 0
        %3710 = vmatpush.bf16.msra.mxu0 %v3683
        %3711 = vmatmul.bf16.gmra.mxu0 %v3680
        %v3712 = vpop.f32.mrf.mxu0
        %v3713 = vadd.f32 %v3598, %v3712
        %v3714 = vpop.f32.mrf.mxu0
        %3715 = vdwg.mxu0
        %3716 = vmatpush.bf16.msra.mxu0 0
        %3717 = vmatpush.bf16.msra.mxu0 0
        %3718 = vmatpush.bf16.msra.mxu0 0
        %3719 = vmatpush.bf16.msra.mxu0 0
        %3720 = vmatpush.bf16.msra.mxu0 0
        %3721 = vmatpush.bf16.msra.mxu0 0
        %3722 = vmatpush.bf16.msra.mxu0 0
        %3723 = vmatpush.bf16.msra.mxu0 %v3686
        %3724 = vmatmul.bf16.gmra.mxu0 %v3680
        %v3725 = vpop.f32.mrf.mxu0
        %v3726 = vadd.f32 %v3611, %v3725
        %v3727 = vpop.f32.mrf.mxu0
        %3728 = vdwg.mxu0
        %3729 = vmatpush.bf16.msra.mxu0 0
        %3730 = vmatpush.bf16.msra.mxu0 0
        %3731 = vmatpush.bf16.msra.mxu0 0
        %3732 = vmatpush.bf16.msra.mxu0 0
        %3733 = vmatpush.bf16.msra.mxu0 0
        %3734 = vmatpush.bf16.msra.mxu0 0
        %3735 = vmatpush.bf16.msra.mxu0 0
        %3736 = vmatpush.bf16.msra.mxu0 %v3689
        %3737 = vmatmul.bf16.gmra.mxu0 %v3680
        %v3738 = vpop.f32.mrf.mxu0
        %v3739 = vadd.f32 %v3624, %v3738
        %v3740 = vpop.f32.mrf.mxu0
        %3741 = vdwg.mxu0
        %3742 = vmatpush.bf16.msra.mxu0 0
        %3743 = vmatpush.bf16.msra.mxu0 0
        %3744 = vmatpush.bf16.msra.mxu0 0
        %3745 = vmatpush.bf16.msra.mxu0 0
        %3746 = vmatpush.bf16.msra.mxu0 0
        %3747 = vmatpush.bf16.msra.mxu0 0
        %3748 = vmatpush.bf16.msra.mxu0 0
        %3749 = vmatpush.bf16.msra.mxu0 %v3692
        %3750 = vmatmul.bf16.gmra.mxu0 %v3680
        %v3751 = vpop.f32.mrf.mxu0
        %v3752 = vadd.f32 %v3637, %v3751
        %v3753 = vpop.f32.mrf.mxu0
        %3754 = vdwg.mxu0
        %3755 = vmatpush.bf16.msra.mxu0 0
        %3756 = vmatpush.bf16.msra.mxu0 0
        %3757 = vmatpush.bf16.msra.mxu0 0
        %3758 = vmatpush.bf16.msra.mxu0 0
        %3759 = vmatpush.bf16.msra.mxu0 0
        %3760 = vmatpush.bf16.msra.mxu0 0
        %3761 = vmatpush.bf16.msra.mxu0 0
        %3762 = vmatpush.bf16.msra.mxu0 %v3695
        %3763 = vmatmul.bf16.gmra.mxu0 %v3680
        %v3764 = vpop.f32.mrf.mxu0
        %v3765 = vadd.f32 %v3650, %v3764
        %v3766 = vpop.f32.mrf.mxu0
        %3767 = vdwg.mxu0
        %3768 = vmatpush.bf16.msra.mxu0 0
        %3769 = vmatpush.bf16.msra.mxu0 0
        %3770 = vmatpush.bf16.msra.mxu0 0
        %3771 = vmatpush.bf16.msra.mxu0 0
        %3772 = vmatpush.bf16.msra.mxu0 0
        %3773 = vmatpush.bf16.msra.mxu0 0
        %3774 = vmatpush.bf16.msra.mxu0 0
        %3775 = vmatpush.bf16.msra.mxu0 %v3698
        %3776 = vmatmul.bf16.gmra.mxu0 %v3680
        %v3777 = vpop.f32.mrf.mxu0
        %v3778 = vadd.f32 %v3663, %v3777
        %v3779 = vpop.f32.mrf.mxu0
        %3780 = vdwg.mxu0
        %3781 = vmatpush.bf16.msra.mxu0 0
        %3782 = vmatpush.bf16.msra.mxu0 0
        %3783 = vmatpush.bf16.msra.mxu0 0
        %3784 = vmatpush.bf16.msra.mxu0 0
        %3785 = vmatpush.bf16.msra.mxu0 0
        %3786 = vmatpush.bf16.msra.mxu0 0
        %3787 = vmatpush.bf16.msra.mxu0 0
        %3788 = vmatpush.bf16.msra.mxu0 %v3701
        %3789 = vmatmul.bf16.gmra.mxu0 %v3680
        %v3790 = vpop.f32.mrf.mxu0
        %v3791 = vadd.f32 %v3676, %v3790
        %v3792 = vpop.f32.mrf.mxu0
        %3793 = vdwg.mxu0
        %s3794 = scalar_lea.vmem %s5, 2
        %v3795 = vld [vmem:[%s3794] sm:$0x1]
        %3796 = vrot.lane.b32.xlu0 %v3536, 126
        %v3797 = vpop.permute.xlu0 %3796
        %3798 = vrot.lane.b32.xlu0 %v3537, 126
        %v3799 = vpop.permute.xlu0 %3798
        %3800 = vrot.lane.b32.xlu0 %v3538, 126
        %v3801 = vpop.permute.xlu0 %3800
        %3802 = vrot.lane.b32.xlu0 %v3539, 126
        %v3803 = vpop.permute.xlu0 %3802
        %3804 = vrot.lane.b32.xlu0 %v3540, 126
        %v3805 = vpop.permute.xlu0 %3804
        %3806 = vrot.lane.b32.xlu0 %v3541, 126
        %v3807 = vpop.permute.xlu0 %3806
        %3808 = vrot.lane.b32.xlu0 %v3542, 126
        %v3809 = vpop.permute.xlu0 %3808
        %v3810 = vsel %vm721, %v3797, %v3799
        %v3811 = vsel %vm721, %v3799, %v3801
        %v3812 = vsel %vm721, %v3801, %v3803
        %v3813 = vsel %vm721, %v3803, %v3805
        %v3814 = vsel %vm721, %v3805, %v3807
        %v3815 = vsel %vm721, %v3807, %v3809
        %v3817 = vsel %vm3563, %v3795, 0
        %v3820 = vsel %vm2098, %v3810, 0
        %v3823 = vsel %vm2098, %v3811, 0
        %v3826 = vsel %vm2098, %v3812, 0
        %v3829 = vsel %vm2098, %v3813, 0
        %v3832 = vsel %vm2098, %v3814, 0
        %v3835 = vsel %vm2098, %v3815, 0
        %v3838 = vsel %vm2098, %v3809, 0
        %3840 = vmatpush.bf16.msra.mxu0 0
        %3841 = vmatpush.bf16.msra.mxu0 0
        %3842 = vmatpush.bf16.msra.mxu0 0
        %3843 = vmatpush.bf16.msra.mxu0 0
        %3844 = vmatpush.bf16.msra.mxu0 0
        %3845 = vmatpush.bf16.msra.mxu0 0
        %3846 = vmatpush.bf16.msra.mxu0 0
        %3847 = vmatpush.bf16.msra.mxu0 %v3820
        %3848 = vmatmul.bf16.gmra.mxu0 %v3817
        %v3849 = vpop.f32.mrf.mxu0
        %v3850 = vadd.f32 0.0, %v3849
        %v3851 = vpop.f32.mrf.mxu0
        %3852 = vdwg.mxu0
        %3853 = vmatpush.bf16.msra.mxu0 0
        %3854 = vmatpush.bf16.msra.mxu0 0
        %3855 = vmatpush.bf16.msra.mxu0 0
        %3856 = vmatpush.bf16.msra.mxu0 0
        %3857 = vmatpush.bf16.msra.mxu0 0
        %3858 = vmatpush.bf16.msra.mxu0 0
        %3859 = vmatpush.bf16.msra.mxu0 0
        %3860 = vmatpush.bf16.msra.mxu0 %v3823
        %3861 = vmatmul.bf16.gmra.mxu0 %v3817
        %v3862 = vpop.f32.mrf.mxu0
        %v3863 = vadd.f32 0.0, %v3862
        %v3864 = vpop.f32.mrf.mxu0
        %3865 = vdwg.mxu0
        %3866 = vmatpush.bf16.msra.mxu0 0
        %3867 = vmatpush.bf16.msra.mxu0 0
        %3868 = vmatpush.bf16.msra.mxu0 0
        %3869 = vmatpush.bf16.msra.mxu0 0
        %3870 = vmatpush.bf16.msra.mxu0 0
        %3871 = vmatpush.bf16.msra.mxu0 0
        %3872 = vmatpush.bf16.msra.mxu0 0
        %3873 = vmatpush.bf16.msra.mxu0 %v3826
        %3874 = vmatmul.bf16.gmra.mxu0 %v3817
        %v3875 = vpop.f32.mrf.mxu0
        %v3876 = vadd.f32 0.0, %v3875
        %v3877 = vpop.f32.mrf.mxu0
        %3878 = vdwg.mxu0
        %3879 = vmatpush.bf16.msra.mxu0 0
        %3880 = vmatpush.bf16.msra.mxu0 0
        %3881 = vmatpush.bf16.msra.mxu0 0
        %3882 = vmatpush.bf16.msra.mxu0 0
        %3883 = vmatpush.bf16.msra.mxu0 0
        %3884 = vmatpush.bf16.msra.mxu0 0
        %3885 = vmatpush.bf16.msra.mxu0 0
        %3886 = vmatpush.bf16.msra.mxu0 %v3829
        %3887 = vmatmul.bf16.gmra.mxu0 %v3817
        %v3888 = vpop.f32.mrf.mxu0
        %v3889 = vadd.f32 0.0, %v3888
        %v3890 = vpop.f32.mrf.mxu0
        %3891 = vdwg.mxu0
        %3892 = vmatpush.bf16.msra.mxu0 0
        %3893 = vmatpush.bf16.msra.mxu0 0
        %3894 = vmatpush.bf16.msra.mxu0 0
        %3895 = vmatpush.bf16.msra.mxu0 0
        %3896 = vmatpush.bf16.msra.mxu0 0
        %3897 = vmatpush.bf16.msra.mxu0 0
        %3898 = vmatpush.bf16.msra.mxu0 0
        %3899 = vmatpush.bf16.msra.mxu0 %v3832
        %3900 = vmatmul.bf16.gmra.mxu0 %v3817
        %v3901 = vpop.f32.mrf.mxu0
        %v3902 = vadd.f32 0.0, %v3901
        %v3903 = vpop.f32.mrf.mxu0
        %3904 = vdwg.mxu0
        %3905 = vmatpush.bf16.msra.mxu0 0
        %3906 = vmatpush.bf16.msra.mxu0 0
        %3907 = vmatpush.bf16.msra.mxu0 0
        %3908 = vmatpush.bf16.msra.mxu0 0
        %3909 = vmatpush.bf16.msra.mxu0 0
        %3910 = vmatpush.bf16.msra.mxu0 0
        %3911 = vmatpush.bf16.msra.mxu0 0
        %3912 = vmatpush.bf16.msra.mxu0 %v3835
        %3913 = vmatmul.bf16.gmra.mxu0 %v3817
        %v3914 = vpop.f32.mrf.mxu0
        %v3915 = vadd.f32 0.0, %v3914
        %v3916 = vpop.f32.mrf.mxu0
        %3917 = vdwg.mxu0
        %3918 = vmatpush.bf16.msra.mxu0 0
        %3919 = vmatpush.bf16.msra.mxu0 0
        %3920 = vmatpush.bf16.msra.mxu0 0
        %3921 = vmatpush.bf16.msra.mxu0 0
        %3922 = vmatpush.bf16.msra.mxu0 0
        %3923 = vmatpush.bf16.msra.mxu0 0
        %3924 = vmatpush.bf16.msra.mxu0 0
        %3925 = vmatpush.bf16.msra.mxu0 %v3838
        %3926 = vmatmul.bf16.gmra.mxu0 %v3817
        %v3927 = vpop.f32.mrf.mxu0
        %v3928 = vadd.f32 0.0, %v3927
        %v3929 = vpop.f32.mrf.mxu0
        %3930 = vdwg.mxu0
        %v3931 = vadd.f32 %v3713, %v3850
        %v3932 = vadd.f32 %v3726, %v3863
        %v3933 = vadd.f32 %v3739, %v3876
        %v3934 = vadd.f32 %v3752, %v3889
        %v3935 = vadd.f32 %v3765, %v3902
        %v3936 = vadd.f32 %v3778, %v3915
        %v3937 = vadd.f32 %v3791, %v3928
        %s3938 = scalar_lea.vmem %s5, 3
        %v3939 = vld [vmem:[%s3938] sm:$0x1]
        %3940 = vrot.lane.b32.xlu0 %v3536, 98
        %v3941 = vpop.permute.xlu0 %3940
        %3942 = vrot.lane.b32.xlu0 %v3537, 98
        %v3943 = vpop.permute.xlu0 %3942
        %3944 = vrot.lane.b32.xlu0 %v3538, 98
        %v3945 = vpop.permute.xlu0 %3944
        %3946 = vrot.lane.b32.xlu0 %v3539, 98
        %v3947 = vpop.permute.xlu0 %3946
        %3948 = vrot.lane.b32.xlu0 %v3540, 98
        %v3949 = vpop.permute.xlu0 %3948
        %3950 = vrot.lane.b32.xlu0 %v3541, 98
        %v3951 = vpop.permute.xlu0 %3950
        %3952 = vrot.lane.b32.xlu0 %v3542, 98
        %v3953 = vpop.permute.xlu0 %3952
        %v3954 = vsel %vm2569, %v3941, %v3943
        %v3955 = vsel %vm2569, %v3943, %v3945
        %v3956 = vsel %vm2569, %v3945, %v3947
        %v3957 = vsel %vm2569, %v3947, %v3949
        %v3958 = vsel %vm2569, %v3949, %v3951
        %v3959 = vsel %vm2569, %v3951, %v3953
        %v3961 = vsel %vm3563, %v3939, 0
        %v3964 = vsel %vm2098, %v3954, 0
        %v3967 = vsel %vm2098, %v3955, 0
        %v3970 = vsel %vm2098, %v3956, 0
        %v3973 = vsel %vm2098, %v3957, 0
        %v3976 = vsel %vm2098, %v3958, 0
        %v3979 = vsel %vm2098, %v3959, 0
        %v3982 = vsel %vm2098, %v3953, 0
        %3984 = vmatpush.bf16.msra.mxu0 0
        %3985 = vmatpush.bf16.msra.mxu0 0
        %3986 = vmatpush.bf16.msra.mxu0 0
        %3987 = vmatpush.bf16.msra.mxu0 0
        %3988 = vmatpush.bf16.msra.mxu0 0
        %3989 = vmatpush.bf16.msra.mxu0 0
        %3990 = vmatpush.bf16.msra.mxu0 0
        %3991 = vmatpush.bf16.msra.mxu0 %v3964
        %3992 = vmatmul.bf16.gmra.mxu0 %v3961
        %v3993 = vpop.f32.mrf.mxu0
        %v3994 = vadd.f32 0.0, %v3993
        %v3995 = vpop.f32.mrf.mxu0
        %3996 = vdwg.mxu0
        %3997 = vmatpush.bf16.msra.mxu0 0
        %3998 = vmatpush.bf16.msra.mxu0 0
        %3999 = vmatpush.bf16.msra.mxu0 0
        %4000 = vmatpush.bf16.msra.mxu0 0
        %4001 = vmatpush.bf16.msra.mxu0 0
        %4002 = vmatpush.bf16.msra.mxu0 0
        %4003 = vmatpush.bf16.msra.mxu0 0
        %4004 = vmatpush.bf16.msra.mxu0 %v3967
        %4005 = vmatmul.bf16.gmra.mxu0 %v3961
        %v4006 = vpop.f32.mrf.mxu0
        %v4007 = vadd.f32 0.0, %v4006
        %v4008 = vpop.f32.mrf.mxu0
        %4009 = vdwg.mxu0
        %4010 = vmatpush.bf16.msra.mxu0 0
        %4011 = vmatpush.bf16.msra.mxu0 0
        %4012 = vmatpush.bf16.msra.mxu0 0
        %4013 = vmatpush.bf16.msra.mxu0 0
        %4014 = vmatpush.bf16.msra.mxu0 0
        %4015 = vmatpush.bf16.msra.mxu0 0
        %4016 = vmatpush.bf16.msra.mxu0 0
        %4017 = vmatpush.bf16.msra.mxu0 %v3970
        %4018 = vmatmul.bf16.gmra.mxu0 %v3961
        %v4019 = vpop.f32.mrf.mxu0
        %v4020 = vadd.f32 0.0, %v4019
        %v4021 = vpop.f32.mrf.mxu0
        %4022 = vdwg.mxu0
        %4023 = vmatpush.bf16.msra.mxu0 0
        %4024 = vmatpush.bf16.msra.mxu0 0
        %4025 = vmatpush.bf16.msra.mxu0 0
        %4026 = vmatpush.bf16.msra.mxu0 0
        %4027 = vmatpush.bf16.msra.mxu0 0
        %4028 = vmatpush.bf16.msra.mxu0 0
        %4029 = vmatpush.bf16.msra.mxu0 0
        %4030 = vmatpush.bf16.msra.mxu0 %v3973
        %4031 = vmatmul.bf16.gmra.mxu0 %v3961
        %v4032 = vpop.f32.mrf.mxu0
        %v4033 = vadd.f32 0.0, %v4032
        %v4034 = vpop.f32.mrf.mxu0
        %4035 = vdwg.mxu0
        %4036 = vmatpush.bf16.msra.mxu0 0
        %4037 = vmatpush.bf16.msra.mxu0 0
        %4038 = vmatpush.bf16.msra.mxu0 0
        %4039 = vmatpush.bf16.msra.mxu0 0
        %4040 = vmatpush.bf16.msra.mxu0 0
        %4041 = vmatpush.bf16.msra.mxu0 0
        %4042 = vmatpush.bf16.msra.mxu0 0
        %4043 = vmatpush.bf16.msra.mxu0 %v3976
        %4044 = vmatmul.bf16.gmra.mxu0 %v3961
        %v4045 = vpop.f32.mrf.mxu0
        %v4046 = vadd.f32 0.0, %v4045
        %v4047 = vpop.f32.mrf.mxu0
        %4048 = vdwg.mxu0
        %4049 = vmatpush.bf16.msra.mxu0 0
        %4050 = vmatpush.bf16.msra.mxu0 0
        %4051 = vmatpush.bf16.msra.mxu0 0
        %4052 = vmatpush.bf16.msra.mxu0 0
        %4053 = vmatpush.bf16.msra.mxu0 0
        %4054 = vmatpush.bf16.msra.mxu0 0
        %4055 = vmatpush.bf16.msra.mxu0 0
        %4056 = vmatpush.bf16.msra.mxu0 %v3979
        %4057 = vmatmul.bf16.gmra.mxu0 %v3961
        %v4058 = vpop.f32.mrf.mxu0
        %v4059 = vadd.f32 0.0, %v4058
        %v4060 = vpop.f32.mrf.mxu0
        %4061 = vdwg.mxu0
        %4062 = vmatpush.bf16.msra.mxu0 0
        %4063 = vmatpush.bf16.msra.mxu0 0
        %4064 = vmatpush.bf16.msra.mxu0 0
        %4065 = vmatpush.bf16.msra.mxu0 0
        %4066 = vmatpush.bf16.msra.mxu0 0
        %4067 = vmatpush.bf16.msra.mxu0 0
        %4068 = vmatpush.bf16.msra.mxu0 0
        %4069 = vmatpush.bf16.msra.mxu0 %v3982
        %4070 = vmatmul.bf16.gmra.mxu0 %v3961
        %v4071 = vpop.f32.mrf.mxu0
        %v4072 = vadd.f32 0.0, %v4071
        %v4073 = vpop.f32.mrf.mxu0
        %4074 = vdwg.mxu0
        %v4075 = vadd.f32 %v3931, %v3994
        %v4076 = vadd.f32 %v3932, %v4007
        %v4077 = vadd.f32 %v3933, %v4020
        %v4078 = vadd.f32 %v3934, %v4033
        %v4079 = vadd.f32 %v3935, %v4046
        %v4080 = vadd.f32 %v3936, %v4059
        %v4081 = vadd.f32 %v3937, %v4072
        %s4082 = scalar_lea.vmem %s5, 4
        %v4083 = vld [vmem:[%s4082] sm:$0x1]
        %4084 = vrot.lane.b32.xlu0 %v3536, 97
        %v4085 = vpop.permute.xlu0 %4084
        %4086 = vrot.lane.b32.xlu0 %v3537, 97
        %v4087 = vpop.permute.xlu0 %4086
        %4088 = vrot.lane.b32.xlu0 %v3538, 97
        %v4089 = vpop.permute.xlu0 %4088
        %4090 = vrot.lane.b32.xlu0 %v3539, 97
        %v4091 = vpop.permute.xlu0 %4090
        %4092 = vrot.lane.b32.xlu0 %v3540, 97
        %v4093 = vpop.permute.xlu0 %4092
        %4094 = vrot.lane.b32.xlu0 %v3541, 97
        %v4095 = vpop.permute.xlu0 %4094
        %4096 = vrot.lane.b32.xlu0 %v3542, 97
        %v4097 = vpop.permute.xlu0 %4096
        %v4098 = vsel %vm2718, %v4085, %v4087
        %v4099 = vsel %vm2718, %v4087, %v4089
        %v4100 = vsel %vm2718, %v4089, %v4091
        %v4101 = vsel %vm2718, %v4091, %v4093
        %v4102 = vsel %vm2718, %v4093, %v4095
        %v4103 = vsel %vm2718, %v4095, %v4097
        %v4105 = vsel %vm3563, %v4083, 0
        %v4108 = vsel %vm2098, %v4098, 0
        %v4111 = vsel %vm2098, %v4099, 0
        %v4114 = vsel %vm2098, %v4100, 0
        %v4117 = vsel %vm2098, %v4101, 0
        %v4120 = vsel %vm2098, %v4102, 0
        %v4123 = vsel %vm2098, %v4103, 0
        %v4126 = vsel %vm2098, %v4097, 0
        %4128 = vmatpush.bf16.msra.mxu0 0
        %4129 = vmatpush.bf16.msra.mxu0 0
        %4130 = vmatpush.bf16.msra.mxu0 0
        %4131 = vmatpush.bf16.msra.mxu0 0
        %4132 = vmatpush.bf16.msra.mxu0 0
        %4133 = vmatpush.bf16.msra.mxu0 0
        %4134 = vmatpush.bf16.msra.mxu0 0
        %4135 = vmatpush.bf16.msra.mxu0 %v4108
        %4136 = vmatmul.bf16.gmra.mxu0 %v4105
        %v4137 = vpop.f32.mrf.mxu0
        %v4138 = vadd.f32 0.0, %v4137
        %v4139 = vpop.f32.mrf.mxu0
        %4140 = vdwg.mxu0
        %4141 = vmatpush.bf16.msra.mxu0 0
        %4142 = vmatpush.bf16.msra.mxu0 0
        %4143 = vmatpush.bf16.msra.mxu0 0
        %4144 = vmatpush.bf16.msra.mxu0 0
        %4145 = vmatpush.bf16.msra.mxu0 0
        %4146 = vmatpush.bf16.msra.mxu0 0
        %4147 = vmatpush.bf16.msra.mxu0 0
        %4148 = vmatpush.bf16.msra.mxu0 %v4111
        %4149 = vmatmul.bf16.gmra.mxu0 %v4105
        %v4150 = vpop.f32.mrf.mxu0
        %v4151 = vadd.f32 0.0, %v4150
        %v4152 = vpop.f32.mrf.mxu0
        %4153 = vdwg.mxu0
        %4154 = vmatpush.bf16.msra.mxu0 0
        %4155 = vmatpush.bf16.msra.mxu0 0
        %4156 = vmatpush.bf16.msra.mxu0 0
        %4157 = vmatpush.bf16.msra.mxu0 0
        %4158 = vmatpush.bf16.msra.mxu0 0
        %4159 = vmatpush.bf16.msra.mxu0 0
        %4160 = vmatpush.bf16.msra.mxu0 0
        %4161 = vmatpush.bf16.msra.mxu0 %v4114
        %4162 = vmatmul.bf16.gmra.mxu0 %v4105
        %v4163 = vpop.f32.mrf.mxu0
        %v4164 = vadd.f32 0.0, %v4163
        %v4165 = vpop.f32.mrf.mxu0
        %4166 = vdwg.mxu0
        %4167 = vmatpush.bf16.msra.mxu0 0
        %4168 = vmatpush.bf16.msra.mxu0 0
        %4169 = vmatpush.bf16.msra.mxu0 0
        %4170 = vmatpush.bf16.msra.mxu0 0
        %4171 = vmatpush.bf16.msra.mxu0 0
        %4172 = vmatpush.bf16.msra.mxu0 0
        %4173 = vmatpush.bf16.msra.mxu0 0
        %4174 = vmatpush.bf16.msra.mxu0 %v4117
        %4175 = vmatmul.bf16.gmra.mxu0 %v4105
        %v4176 = vpop.f32.mrf.mxu0
        %v4177 = vadd.f32 0.0, %v4176
        %v4178 = vpop.f32.mrf.mxu0
        %4179 = vdwg.mxu0
        %4180 = vmatpush.bf16.msra.mxu0 0
        %4181 = vmatpush.bf16.msra.mxu0 0
        %4182 = vmatpush.bf16.msra.mxu0 0
        %4183 = vmatpush.bf16.msra.mxu0 0
        %4184 = vmatpush.bf16.msra.mxu0 0
        %4185 = vmatpush.bf16.msra.mxu0 0
        %4186 = vmatpush.bf16.msra.mxu0 0
        %4187 = vmatpush.bf16.msra.mxu0 %v4120
        %4188 = vmatmul.bf16.gmra.mxu0 %v4105
        %v4189 = vpop.f32.mrf.mxu0
        %v4190 = vadd.f32 0.0, %v4189
        %v4191 = vpop.f32.mrf.mxu0
        %4192 = vdwg.mxu0
        %4193 = vmatpush.bf16.msra.mxu0 0
        %4194 = vmatpush.bf16.msra.mxu0 0
        %4195 = vmatpush.bf16.msra.mxu0 0
        %4196 = vmatpush.bf16.msra.mxu0 0
        %4197 = vmatpush.bf16.msra.mxu0 0
        %4198 = vmatpush.bf16.msra.mxu0 0
        %4199 = vmatpush.bf16.msra.mxu0 0
        %4200 = vmatpush.bf16.msra.mxu0 %v4123
        %4201 = vmatmul.bf16.gmra.mxu0 %v4105
        %v4202 = vpop.f32.mrf.mxu0
        %v4203 = vadd.f32 0.0, %v4202
        %v4204 = vpop.f32.mrf.mxu0
        %4205 = vdwg.mxu0
        %4206 = vmatpush.bf16.msra.mxu0 0
        %4207 = vmatpush.bf16.msra.mxu0 0
        %4208 = vmatpush.bf16.msra.mxu0 0
        %4209 = vmatpush.bf16.msra.mxu0 0
        %4210 = vmatpush.bf16.msra.mxu0 0
        %4211 = vmatpush.bf16.msra.mxu0 0
        %4212 = vmatpush.bf16.msra.mxu0 0
        %4213 = vmatpush.bf16.msra.mxu0 %v4126
        %4214 = vmatmul.bf16.gmra.mxu0 %v4105
        %v4215 = vpop.f32.mrf.mxu0
        %v4216 = vadd.f32 0.0, %v4215
        %v4217 = vpop.f32.mrf.mxu0
        %4218 = vdwg.mxu0
        %v4219 = vadd.f32 %v4075, %v4138
        %v4220 = vadd.f32 %v4076, %v4151
        %v4221 = vadd.f32 %v4077, %v4164
        %v4222 = vadd.f32 %v4078, %v4177
        %v4223 = vadd.f32 %v4079, %v4190
        %v4224 = vadd.f32 %v4080, %v4203
        %v4225 = vadd.f32 %v4081, %v4216
        %s4226 = scalar_lea.vmem %s5, 5
        %v4227 = vld [vmem:[%s4226] sm:$0x1]
        %4228 = vrot.lane.b32.xlu0 %v3536, 96
        %v4229 = vpop.permute.xlu0 %4228
        %4230 = vrot.lane.b32.xlu0 %v3537, 96
        %v4231 = vpop.permute.xlu0 %4230
        %4232 = vrot.lane.b32.xlu0 %v3538, 96
        %v4233 = vpop.permute.xlu0 %4232
        %4234 = vrot.lane.b32.xlu0 %v3539, 96
        %v4235 = vpop.permute.xlu0 %4234
        %4236 = vrot.lane.b32.xlu0 %v3540, 96
        %v4237 = vpop.permute.xlu0 %4236
        %4238 = vrot.lane.b32.xlu0 %v3541, 96
        %v4239 = vpop.permute.xlu0 %4238
        %4240 = vrot.lane.b32.xlu0 %v3542, 96
        %v4241 = vpop.permute.xlu0 %4240
        %v4242 = vsel %vm953, %v4229, %v4231
        %v4243 = vsel %vm953, %v4231, %v4233
        %v4244 = vsel %vm953, %v4233, %v4235
        %v4245 = vsel %vm953, %v4235, %v4237
        %v4246 = vsel %vm953, %v4237, %v4239
        %v4247 = vsel %vm953, %v4239, %v4241
        %v4249 = vsel %vm3563, %v4227, 0
        %v4252 = vsel %vm2098, %v4242, 0
        %v4255 = vsel %vm2098, %v4243, 0
        %v4258 = vsel %vm2098, %v4244, 0
        %v4261 = vsel %vm2098, %v4245, 0
        %v4264 = vsel %vm2098, %v4246, 0
        %v4267 = vsel %vm2098, %v4247, 0
        %v4270 = vsel %vm2098, %v4241, 0
        %4272 = vmatpush.bf16.msra.mxu0 0
        %4273 = vmatpush.bf16.msra.mxu0 0
        %4274 = vmatpush.bf16.msra.mxu0 0
        %4275 = vmatpush.bf16.msra.mxu0 0
        %4276 = vmatpush.bf16.msra.mxu0 0
        %4277 = vmatpush.bf16.msra.mxu0 0
        %4278 = vmatpush.bf16.msra.mxu0 0
        %4279 = vmatpush.bf16.msra.mxu0 %v4252
        %4280 = vmatmul.bf16.gmra.mxu0 %v4249
        %v4281 = vpop.f32.mrf.mxu0
        %v4282 = vadd.f32 0.0, %v4281
        %v4283 = vpop.f32.mrf.mxu0
        %4284 = vdwg.mxu0
        %4285 = vmatpush.bf16.msra.mxu0 0
        %4286 = vmatpush.bf16.msra.mxu0 0
        %4287 = vmatpush.bf16.msra.mxu0 0
        %4288 = vmatpush.bf16.msra.mxu0 0
        %4289 = vmatpush.bf16.msra.mxu0 0
        %4290 = vmatpush.bf16.msra.mxu0 0
        %4291 = vmatpush.bf16.msra.mxu0 0
        %4292 = vmatpush.bf16.msra.mxu0 %v4255
        %4293 = vmatmul.bf16.gmra.mxu0 %v4249
        %v4294 = vpop.f32.mrf.mxu0
        %v4295 = vadd.f32 0.0, %v4294
        %v4296 = vpop.f32.mrf.mxu0
        %4297 = vdwg.mxu0
        %4298 = vmatpush.bf16.msra.mxu0 0
        %4299 = vmatpush.bf16.msra.mxu0 0
        %4300 = vmatpush.bf16.msra.mxu0 0
        %4301 = vmatpush.bf16.msra.mxu0 0
        %4302 = vmatpush.bf16.msra.mxu0 0
        %4303 = vmatpush.bf16.msra.mxu0 0
        %4304 = vmatpush.bf16.msra.mxu0 0
        %4305 = vmatpush.bf16.msra.mxu0 %v4258
        %4306 = vmatmul.bf16.gmra.mxu0 %v4249
        %v4307 = vpop.f32.mrf.mxu0
        %v4308 = vadd.f32 0.0, %v4307
        %v4309 = vpop.f32.mrf.mxu0
        %4310 = vdwg.mxu0
        %4311 = vmatpush.bf16.msra.mxu0 0
        %4312 = vmatpush.bf16.msra.mxu0 0
        %4313 = vmatpush.bf16.msra.mxu0 0
        %4314 = vmatpush.bf16.msra.mxu0 0
        %4315 = vmatpush.bf16.msra.mxu0 0
        %4316 = vmatpush.bf16.msra.mxu0 0
        %4317 = vmatpush.bf16.msra.mxu0 0
        %4318 = vmatpush.bf16.msra.mxu0 %v4261
        %4319 = vmatmul.bf16.gmra.mxu0 %v4249
        %v4320 = vpop.f32.mrf.mxu0
        %v4321 = vadd.f32 0.0, %v4320
        %v4322 = vpop.f32.mrf.mxu0
        %4323 = vdwg.mxu0
        %4324 = vmatpush.bf16.msra.mxu0 0
        %4325 = vmatpush.bf16.msra.mxu0 0
        %4326 = vmatpush.bf16.msra.mxu0 0
        %4327 = vmatpush.bf16.msra.mxu0 0
        %4328 = vmatpush.bf16.msra.mxu0 0
        %4329 = vmatpush.bf16.msra.mxu0 0
        %4330 = vmatpush.bf16.msra.mxu0 0
        %4331 = vmatpush.bf16.msra.mxu0 %v4264
        %4332 = vmatmul.bf16.gmra.mxu0 %v4249
        %v4333 = vpop.f32.mrf.mxu0
        %v4334 = vadd.f32 0.0, %v4333
        %v4335 = vpop.f32.mrf.mxu0
        %4336 = vdwg.mxu0
        %4337 = vmatpush.bf16.msra.mxu0 0
        %4338 = vmatpush.bf16.msra.mxu0 0
        %4339 = vmatpush.bf16.msra.mxu0 0
        %4340 = vmatpush.bf16.msra.mxu0 0
        %4341 = vmatpush.bf16.msra.mxu0 0
        %4342 = vmatpush.bf16.msra.mxu0 0
        %4343 = vmatpush.bf16.msra.mxu0 0
        %4344 = vmatpush.bf16.msra.mxu0 %v4267
        %4345 = vmatmul.bf16.gmra.mxu0 %v4249
        %v4346 = vpop.f32.mrf.mxu0
        %v4347 = vadd.f32 0.0, %v4346
        %v4348 = vpop.f32.mrf.mxu0
        %4349 = vdwg.mxu0
        %4350 = vmatpush.bf16.msra.mxu0 0
        %4351 = vmatpush.bf16.msra.mxu0 0
        %4352 = vmatpush.bf16.msra.mxu0 0
        %4353 = vmatpush.bf16.msra.mxu0 0
        %4354 = vmatpush.bf16.msra.mxu0 0
        %4355 = vmatpush.bf16.msra.mxu0 0
        %4356 = vmatpush.bf16.msra.mxu0 0
        %4357 = vmatpush.bf16.msra.mxu0 %v4270
        %4358 = vmatmul.bf16.gmra.mxu0 %v4249
        %v4359 = vpop.f32.mrf.mxu0
        %v4360 = vadd.f32 0.0, %v4359
        %v4361 = vpop.f32.mrf.mxu0
        %4362 = vdwg.mxu0
        %v4363 = vadd.f32 %v4219, %v4282
        %v4364 = vadd.f32 %v4220, %v4295
        %v4365 = vadd.f32 %v4221, %v4308
        %v4366 = vadd.f32 %v4222, %v4321
        %v4367 = vadd.f32 %v4223, %v4334
        %v4368 = vadd.f32 %v4224, %v4347
        %v4369 = vadd.f32 %v4225, %v4360
        %s4370 = scalar_lea.vmem %s5, 6
        %v4371 = vld [vmem:[%s4370] sm:$0x1]
        %v4372 = vld [vmem:[#allocation4] sm:$0xff]
        %v4373 = vld [vmem:[#allocation4 + $0x8] sm:$0xff]
        %v4374 = vld [vmem:[#allocation4 + $0x10] sm:$0xff]
        %v4375 = vld [vmem:[#allocation4 + $0x18] sm:$0xff]
        %v4380 = vunpack.c.l.b16 %v4372
        %v4381 = vunpack.c.h.b16 %v4372
        %v4382 = vunpack.c.l.b16 %v4373
        %v4383 = vunpack.c.h.b16 %v4373
        %v4384 = vunpack.c.l.b16 %v4374
        %v4385 = vunpack.c.h.b16 %v4374
        %v4386 = vunpack.c.l.b16 %v4375
        %v4387 = vunpack.c.h.b16 %v4375
        %v4388 = vpack.c.b16 %v4380, %v4380
        %v4389 = vpack.c.b16 %v4381, %v4381
        %v4390 = vpack.c.b16 %v4382, %v4382
        %v4391 = vpack.c.b16 %v4383, %v4383
        %v4392 = vpack.c.b16 %v4384, %v4384
        %v4393 = vpack.c.b16 %v4385, %v4385
        %v4394 = vpack.c.b16 %v4386, %v4386
        %v4395 = vpack.c.b16 %v4387, %v4387
        %4396 = vrot.lane.b32.xlu0 %v4388, 68
        %v4397 = vpop.permute.xlu0 %4396
        %4398 = vrot.lane.b32.xlu0 %v4389, 68
        %v4399 = vpop.permute.xlu0 %4398
        %4400 = vrot.lane.b32.xlu0 %v4390, 68
        %v4401 = vpop.permute.xlu0 %4400
        %4402 = vrot.lane.b32.xlu0 %v4391, 68
        %v4403 = vpop.permute.xlu0 %4402
        %4404 = vrot.lane.b32.xlu0 %v4392, 68
        %v4405 = vpop.permute.xlu0 %4404
        %4406 = vrot.lane.b32.xlu0 %v4393, 68
        %v4407 = vpop.permute.xlu0 %4406
        %4408 = vrot.lane.b32.xlu0 %v4394, 68
        %v4409 = vpop.permute.xlu0 %4408
        %4410 = vrot.lane.b32.xlu0 %v4395, 68
        %v4411 = vpop.permute.xlu0 %4410
        %v4412 = vsel %vm3015, %v4397, %v4399
        %v4413 = vsel %vm3015, %v4399, %v4401
        %v4414 = vsel %vm3015, %v4401, %v4403
        %v4415 = vsel %vm3015, %v4403, %v4405
        %v4416 = vsel %vm3015, %v4405, %v4407
        %v4417 = vsel %vm3015, %v4407, %v4409
        %v4418 = vsel %vm3015, %v4409, %v4411
        %v4420 = vsel %vm3563, %v4371, 0
        %v4423 = vsel %vm2098, %v4412, 0
        %v4426 = vsel %vm2098, %v4413, 0
        %v4429 = vsel %vm2098, %v4414, 0
        %v4432 = vsel %vm2098, %v4415, 0
        %v4435 = vsel %vm2098, %v4416, 0
        %v4438 = vsel %vm2098, %v4417, 0
        %v4441 = vsel %vm2098, %v4418, 0
        %4443 = vmatpush.bf16.msra.mxu0 0
        %4444 = vmatpush.bf16.msra.mxu0 0
        %4445 = vmatpush.bf16.msra.mxu0 0
        %4446 = vmatpush.bf16.msra.mxu0 0
        %4447 = vmatpush.bf16.msra.mxu0 0
        %4448 = vmatpush.bf16.msra.mxu0 0
        %4449 = vmatpush.bf16.msra.mxu0 0
        %4450 = vmatpush.bf16.msra.mxu0 %v4423
        %4451 = vmatmul.bf16.gmra.mxu0 %v4420
        %v4452 = vpop.f32.mrf.mxu0
        %v4453 = vadd.f32 0.0, %v4452
        %v4454 = vpop.f32.mrf.mxu0
        %4455 = vdwg.mxu0
        %4456 = vmatpush.bf16.msra.mxu0 0
        %4457 = vmatpush.bf16.msra.mxu0 0
        %4458 = vmatpush.bf16.msra.mxu0 0
        %4459 = vmatpush.bf16.msra.mxu0 0
        %4460 = vmatpush.bf16.msra.mxu0 0
        %4461 = vmatpush.bf16.msra.mxu0 0
        %4462 = vmatpush.bf16.msra.mxu0 0
        %4463 = vmatpush.bf16.msra.mxu0 %v4426
        %4464 = vmatmul.bf16.gmra.mxu0 %v4420
        %v4465 = vpop.f32.mrf.mxu0
        %v4466 = vadd.f32 0.0, %v4465
        %v4467 = vpop.f32.mrf.mxu0
        %4468 = vdwg.mxu0
        %4469 = vmatpush.bf16.msra.mxu0 0
        %4470 = vmatpush.bf16.msra.mxu0 0
        %4471 = vmatpush.bf16.msra.mxu0 0
        %4472 = vmatpush.bf16.msra.mxu0 0
        %4473 = vmatpush.bf16.msra.mxu0 0
        %4474 = vmatpush.bf16.msra.mxu0 0
        %4475 = vmatpush.bf16.msra.mxu0 0
        %4476 = vmatpush.bf16.msra.mxu0 %v4429
        %4477 = vmatmul.bf16.gmra.mxu0 %v4420
        %v4478 = vpop.f32.mrf.mxu0
        %v4479 = vadd.f32 0.0, %v4478
        %v4480 = vpop.f32.mrf.mxu0
        %4481 = vdwg.mxu0
        %4482 = vmatpush.bf16.msra.mxu0 0
        %4483 = vmatpush.bf16.msra.mxu0 0
        %4484 = vmatpush.bf16.msra.mxu0 0
        %4485 = vmatpush.bf16.msra.mxu0 0
        %4486 = vmatpush.bf16.msra.mxu0 0
        %4487 = vmatpush.bf16.msra.mxu0 0
        %4488 = vmatpush.bf16.msra.mxu0 0
        %4489 = vmatpush.bf16.msra.mxu0 %v4432
        %4490 = vmatmul.bf16.gmra.mxu0 %v4420
        %v4491 = vpop.f32.mrf.mxu0
        %v4492 = vadd.f32 0.0, %v4491
        %v4493 = vpop.f32.mrf.mxu0
        %4494 = vdwg.mxu0
        %4495 = vmatpush.bf16.msra.mxu0 0
        %4496 = vmatpush.bf16.msra.mxu0 0
        %4497 = vmatpush.bf16.msra.mxu0 0
        %4498 = vmatpush.bf16.msra.mxu0 0
        %4499 = vmatpush.bf16.msra.mxu0 0
        %4500 = vmatpush.bf16.msra.mxu0 0
        %4501 = vmatpush.bf16.msra.mxu0 0
        %4502 = vmatpush.bf16.msra.mxu0 %v4435
        %4503 = vmatmul.bf16.gmra.mxu0 %v4420
        %v4504 = vpop.f32.mrf.mxu0
        %v4505 = vadd.f32 0.0, %v4504
        %v4506 = vpop.f32.mrf.mxu0
        %4507 = vdwg.mxu0
        %4508 = vmatpush.bf16.msra.mxu0 0
        %4509 = vmatpush.bf16.msra.mxu0 0
        %4510 = vmatpush.bf16.msra.mxu0 0
        %4511 = vmatpush.bf16.msra.mxu0 0
        %4512 = vmatpush.bf16.msra.mxu0 0
        %4513 = vmatpush.bf16.msra.mxu0 0
        %4514 = vmatpush.bf16.msra.mxu0 0
        %4515 = vmatpush.bf16.msra.mxu0 %v4438
        %4516 = vmatmul.bf16.gmra.mxu0 %v4420
        %v4517 = vpop.f32.mrf.mxu0
        %v4518 = vadd.f32 0.0, %v4517
        %v4519 = vpop.f32.mrf.mxu0
        %4520 = vdwg.mxu0
        %4521 = vmatpush.bf16.msra.mxu0 0
        %4522 = vmatpush.bf16.msra.mxu0 0
        %4523 = vmatpush.bf16.msra.mxu0 0
        %4524 = vmatpush.bf16.msra.mxu0 0
        %4525 = vmatpush.bf16.msra.mxu0 0
        %4526 = vmatpush.bf16.msra.mxu0 0
        %4527 = vmatpush.bf16.msra.mxu0 0
        %4528 = vmatpush.bf16.msra.mxu0 %v4441
        %4529 = vmatmul.bf16.gmra.mxu0 %v4420
        %v4530 = vpop.f32.mrf.mxu0
        %v4531 = vadd.f32 0.0, %v4530
        %v4532 = vpop.f32.mrf.mxu0
        %4533 = vdwg.mxu0
        %v4534 = vadd.f32 %v4363, %v4453
        %v4535 = vadd.f32 %v4364, %v4466
        %v4536 = vadd.f32 %v4365, %v4479
        %v4537 = vadd.f32 %v4366, %v4492
        %v4538 = vadd.f32 %v4367, %v4505
        %v4539 = vadd.f32 %v4368, %v4518
        %v4540 = vadd.f32 %v4369, %v4531
        %s4541 = scalar_lea.vmem %s5, 7
        %v4542 = vld [vmem:[%s4541] sm:$0x1]
        %4543 = vrot.lane.b32.xlu0 %v4388, 67
        %v4544 = vpop.permute.xlu0 %4543
        %4545 = vrot.lane.b32.xlu0 %v4389, 67
        %v4546 = vpop.permute.xlu0 %4545
        %4547 = vrot.lane.b32.xlu0 %v4390, 67
        %v4548 = vpop.permute.xlu0 %4547
        %4549 = vrot.lane.b32.xlu0 %v4391, 67
        %v4550 = vpop.permute.xlu0 %4549
        %4551 = vrot.lane.b32.xlu0 %v4392, 67
        %v4552 = vpop.permute.xlu0 %4551
        %4553 = vrot.lane.b32.xlu0 %v4393, 67
        %v4554 = vpop.permute.xlu0 %4553
        %4555 = vrot.lane.b32.xlu0 %v4394, 67
        %v4556 = vpop.permute.xlu0 %4555
        %4557 = vrot.lane.b32.xlu0 %v4395, 67
        %v4558 = vpop.permute.xlu0 %4557
        %v4559 = vsel %vm3164, %v4544, %v4546
        %v4560 = vsel %vm3164, %v4546, %v4548
        %v4561 = vsel %vm3164, %v4548, %v4550
        %v4562 = vsel %vm3164, %v4550, %v4552
        %v4563 = vsel %vm3164, %v4552, %v4554
        %v4564 = vsel %vm3164, %v4554, %v4556
        %v4565 = vsel %vm3164, %v4556, %v4558
        %v4567 = vsel %vm3563, %v4542, 0
        %v4570 = vsel %vm2098, %v4559, 0
        %v4573 = vsel %vm2098, %v4560, 0
        %v4576 = vsel %vm2098, %v4561, 0
        %v4579 = vsel %vm2098, %v4562, 0
        %v4582 = vsel %vm2098, %v4563, 0
        %v4585 = vsel %vm2098, %v4564, 0
        %v4588 = vsel %vm2098, %v4565, 0
        %4590 = vmatpush.bf16.msra.mxu0 0
        %4591 = vmatpush.bf16.msra.mxu0 0
        %4592 = vmatpush.bf16.msra.mxu0 0
        %4593 = vmatpush.bf16.msra.mxu0 0
        %4594 = vmatpush.bf16.msra.mxu0 0
        %4595 = vmatpush.bf16.msra.mxu0 0
        %4596 = vmatpush.bf16.msra.mxu0 0
        %4597 = vmatpush.bf16.msra.mxu0 %v4570
        %4598 = vmatmul.bf16.gmra.mxu0 %v4567
        %v4599 = vpop.f32.mrf.mxu0
        %v4600 = vadd.f32 0.0, %v4599
        %v4601 = vpop.f32.mrf.mxu0
        %4602 = vdwg.mxu0
        %4603 = vmatpush.bf16.msra.mxu0 0
        %4604 = vmatpush.bf16.msra.mxu0 0
        %4605 = vmatpush.bf16.msra.mxu0 0
        %4606 = vmatpush.bf16.msra.mxu0 0
        %4607 = vmatpush.bf16.msra.mxu0 0
        %4608 = vmatpush.bf16.msra.mxu0 0
        %4609 = vmatpush.bf16.msra.mxu0 0
        %4610 = vmatpush.bf16.msra.mxu0 %v4573
        %4611 = vmatmul.bf16.gmra.mxu0 %v4567
        %v4612 = vpop.f32.mrf.mxu0
        %v4613 = vadd.f32 0.0, %v4612
        %v4614 = vpop.f32.mrf.mxu0
        %4615 = vdwg.mxu0
        %4616 = vmatpush.bf16.msra.mxu0 0
        %4617 = vmatpush.bf16.msra.mxu0 0
        %4618 = vmatpush.bf16.msra.mxu0 0
        %4619 = vmatpush.bf16.msra.mxu0 0
        %4620 = vmatpush.bf16.msra.mxu0 0
        %4621 = vmatpush.bf16.msra.mxu0 0
        %4622 = vmatpush.bf16.msra.mxu0 0
        %4623 = vmatpush.bf16.msra.mxu0 %v4576
        %4624 = vmatmul.bf16.gmra.mxu0 %v4567
        %v4625 = vpop.f32.mrf.mxu0
        %v4626 = vadd.f32 0.0, %v4625
        %v4627 = vpop.f32.mrf.mxu0
        %4628 = vdwg.mxu0
        %4629 = vmatpush.bf16.msra.mxu0 0
        %4630 = vmatpush.bf16.msra.mxu0 0
        %4631 = vmatpush.bf16.msra.mxu0 0
        %4632 = vmatpush.bf16.msra.mxu0 0
        %4633 = vmatpush.bf16.msra.mxu0 0
        %4634 = vmatpush.bf16.msra.mxu0 0
        %4635 = vmatpush.bf16.msra.mxu0 0
        %4636 = vmatpush.bf16.msra.mxu0 %v4579
        %4637 = vmatmul.bf16.gmra.mxu0 %v4567
        %v4638 = vpop.f32.mrf.mxu0
        %v4639 = vadd.f32 0.0, %v4638
        %v4640 = vpop.f32.mrf.mxu0
        %4641 = vdwg.mxu0
        %4642 = vmatpush.bf16.msra.mxu0 0
        %4643 = vmatpush.bf16.msra.mxu0 0
        %4644 = vmatpush.bf16.msra.mxu0 0
        %4645 = vmatpush.bf16.msra.mxu0 0
        %4646 = vmatpush.bf16.msra.mxu0 0
        %4647 = vmatpush.bf16.msra.mxu0 0
        %4648 = vmatpush.bf16.msra.mxu0 0
        %4649 = vmatpush.bf16.msra.mxu0 %v4582
        %4650 = vmatmul.bf16.gmra.mxu0 %v4567
        %v4651 = vpop.f32.mrf.mxu0
        %v4652 = vadd.f32 0.0, %v4651
        %v4653 = vpop.f32.mrf.mxu0
        %4654 = vdwg.mxu0
        %4655 = vmatpush.bf16.msra.mxu0 0
        %4656 = vmatpush.bf16.msra.mxu0 0
        %4657 = vmatpush.bf16.msra.mxu0 0
        %4658 = vmatpush.bf16.msra.mxu0 0
        %4659 = vmatpush.bf16.msra.mxu0 0
        %4660 = vmatpush.bf16.msra.mxu0 0
        %4661 = vmatpush.bf16.msra.mxu0 0
        %4662 = vmatpush.bf16.msra.mxu0 %v4585
        %4663 = vmatmul.bf16.gmra.mxu0 %v4567
        %v4664 = vpop.f32.mrf.mxu0
        %v4665 = vadd.f32 0.0, %v4664
        %v4666 = vpop.f32.mrf.mxu0
        %4667 = vdwg.mxu0
        %4668 = vmatpush.bf16.msra.mxu0 0
        %4669 = vmatpush.bf16.msra.mxu0 0
        %4670 = vmatpush.bf16.msra.mxu0 0
        %4671 = vmatpush.bf16.msra.mxu0 0
        %4672 = vmatpush.bf16.msra.mxu0 0
        %4673 = vmatpush.bf16.msra.mxu0 0
        %4674 = vmatpush.bf16.msra.mxu0 0
        %4675 = vmatpush.bf16.msra.mxu0 %v4588
        %4676 = vmatmul.bf16.gmra.mxu0 %v4567
        %v4677 = vpop.f32.mrf.mxu0
        %v4678 = vadd.f32 0.0, %v4677
        %v4679 = vpop.f32.mrf.mxu0
        %4680 = vdwg.mxu0
        %v4681 = vadd.f32 %v4534, %v4600
        %v4682 = vadd.f32 %v4535, %v4613
        %v4683 = vadd.f32 %v4536, %v4626
        %v4684 = vadd.f32 %v4537, %v4639
        %v4685 = vadd.f32 %v4538, %v4652
        %v4686 = vadd.f32 %v4539, %v4665
        %v4687 = vadd.f32 %v4540, %v4678
        %s4688 = scalar_lea.vmem %s5, 8
        %v4689 = vld [vmem:[%s4688] sm:$0x1]
        %4690 = vrot.lane.b32.xlu0 %v4388, 66
        %v4691 = vpop.permute.xlu0 %4690
        %4692 = vrot.lane.b32.xlu0 %v4389, 66
        %v4693 = vpop.permute.xlu0 %4692
        %4694 = vrot.lane.b32.xlu0 %v4390, 66
        %v4695 = vpop.permute.xlu0 %4694
        %4696 = vrot.lane.b32.xlu0 %v4391, 66
        %v4697 = vpop.permute.xlu0 %4696
        %4698 = vrot.lane.b32.xlu0 %v4392, 66
        %v4699 = vpop.permute.xlu0 %4698
        %4700 = vrot.lane.b32.xlu0 %v4393, 66
        %v4701 = vpop.permute.xlu0 %4700
        %4702 = vrot.lane.b32.xlu0 %v4394, 66
        %v4703 = vpop.permute.xlu0 %4702
        %4704 = vrot.lane.b32.xlu0 %v4395, 66
        %v4705 = vpop.permute.xlu0 %4704
        %v4706 = vsel %vm3313, %v4691, %v4693
        %v4707 = vsel %vm3313, %v4693, %v4695
        %v4708 = vsel %vm3313, %v4695, %v4697
        %v4709 = vsel %vm3313, %v4697, %v4699
        %v4710 = vsel %vm3313, %v4699, %v4701
        %v4711 = vsel %vm3313, %v4701, %v4703
        %v4712 = vsel %vm3313, %v4703, %v4705
        %v4714 = vsel %vm3563, %v4689, 0
        %v4717 = vsel %vm2098, %v4706, 0
        %v4720 = vsel %vm2098, %v4707, 0
        %v4723 = vsel %vm2098, %v4708, 0
        %v4726 = vsel %vm2098, %v4709, 0
        %v4729 = vsel %vm2098, %v4710, 0
        %v4732 = vsel %vm2098, %v4711, 0
        %v4735 = vsel %vm2098, %v4712, 0
        %4737 = vmatpush.bf16.msra.mxu0 0
        %4738 = vmatpush.bf16.msra.mxu0 0
        %4739 = vmatpush.bf16.msra.mxu0 0
        %4740 = vmatpush.bf16.msra.mxu0 0
        %4741 = vmatpush.bf16.msra.mxu0 0
        %4742 = vmatpush.bf16.msra.mxu0 0
        %4743 = vmatpush.bf16.msra.mxu0 0
        %4744 = vmatpush.bf16.msra.mxu0 %v4717
        %4745 = vmatmul.bf16.gmra.mxu0 %v4714
        %v4746 = vpop.f32.mrf.mxu0
        %v4747 = vadd.f32 0.0, %v4746
        %v4748 = vpop.f32.mrf.mxu0
        %4749 = vdwg.mxu0
        %4750 = vmatpush.bf16.msra.mxu0 0
        %4751 = vmatpush.bf16.msra.mxu0 0
        %4752 = vmatpush.bf16.msra.mxu0 0
        %4753 = vmatpush.bf16.msra.mxu0 0
        %4754 = vmatpush.bf16.msra.mxu0 0
        %4755 = vmatpush.bf16.msra.mxu0 0
        %4756 = vmatpush.bf16.msra.mxu0 0
        %4757 = vmatpush.bf16.msra.mxu0 %v4720
        %4758 = vmatmul.bf16.gmra.mxu0 %v4714
        %v4759 = vpop.f32.mrf.mxu0
        %v4760 = vadd.f32 0.0, %v4759
        %v4761 = vpop.f32.mrf.mxu0
        %4762 = vdwg.mxu0
        %4763 = vmatpush.bf16.msra.mxu0 0
        %4764 = vmatpush.bf16.msra.mxu0 0
        %4765 = vmatpush.bf16.msra.mxu0 0
        %4766 = vmatpush.bf16.msra.mxu0 0
        %4767 = vmatpush.bf16.msra.mxu0 0
        %4768 = vmatpush.bf16.msra.mxu0 0
        %4769 = vmatpush.bf16.msra.mxu0 0
        %4770 = vmatpush.bf16.msra.mxu0 %v4723
        %4771 = vmatmul.bf16.gmra.mxu0 %v4714
        %v4772 = vpop.f32.mrf.mxu0
        %v4773 = vadd.f32 0.0, %v4772
        %v4774 = vpop.f32.mrf.mxu0
        %4775 = vdwg.mxu0
        %4776 = vmatpush.bf16.msra.mxu0 0
        %4777 = vmatpush.bf16.msra.mxu0 0
        %4778 = vmatpush.bf16.msra.mxu0 0
        %4779 = vmatpush.bf16.msra.mxu0 0
        %4780 = vmatpush.bf16.msra.mxu0 0
        %4781 = vmatpush.bf16.msra.mxu0 0
        %4782 = vmatpush.bf16.msra.mxu0 0
        %4783 = vmatpush.bf16.msra.mxu0 %v4726
        %4784 = vmatmul.bf16.gmra.mxu0 %v4714
        %v4785 = vpop.f32.mrf.mxu0
        %v4786 = vadd.f32 0.0, %v4785
        %v4787 = vpop.f32.mrf.mxu0
        %4788 = vdwg.mxu0
        %4789 = vmatpush.bf16.msra.mxu0 0
        %4790 = vmatpush.bf16.msra.mxu0 0
        %4791 = vmatpush.bf16.msra.mxu0 0
        %4792 = vmatpush.bf16.msra.mxu0 0
        %4793 = vmatpush.bf16.msra.mxu0 0
        %4794 = vmatpush.bf16.msra.mxu0 0
        %4795 = vmatpush.bf16.msra.mxu0 0
        %4796 = vmatpush.bf16.msra.mxu0 %v4729
        %4797 = vmatmul.bf16.gmra.mxu0 %v4714
        %v4798 = vpop.f32.mrf.mxu0
        %v4799 = vadd.f32 0.0, %v4798
        %v4800 = vpop.f32.mrf.mxu0
        %4801 = vdwg.mxu0
        %4802 = vmatpush.bf16.msra.mxu0 0
        %4803 = vmatpush.bf16.msra.mxu0 0
        %4804 = vmatpush.bf16.msra.mxu0 0
        %4805 = vmatpush.bf16.msra.mxu0 0
        %4806 = vmatpush.bf16.msra.mxu0 0
        %4807 = vmatpush.bf16.msra.mxu0 0
        %4808 = vmatpush.bf16.msra.mxu0 0
        %4809 = vmatpush.bf16.msra.mxu0 %v4732
        %4810 = vmatmul.bf16.gmra.mxu0 %v4714
        %v4811 = vpop.f32.mrf.mxu0
        %v4812 = vadd.f32 0.0, %v4811
        %v4813 = vpop.f32.mrf.mxu0
        %4814 = vdwg.mxu0
        %4815 = vmatpush.bf16.msra.mxu0 0
        %4816 = vmatpush.bf16.msra.mxu0 0
        %4817 = vmatpush.bf16.msra.mxu0 0
        %4818 = vmatpush.bf16.msra.mxu0 0
        %4819 = vmatpush.bf16.msra.mxu0 0
        %4820 = vmatpush.bf16.msra.mxu0 0
        %4821 = vmatpush.bf16.msra.mxu0 0
        %4822 = vmatpush.bf16.msra.mxu0 %v4735
        %4823 = vmatmul.bf16.gmra.mxu0 %v4714
        %v4824 = vpop.f32.mrf.mxu0
        %v4825 = vadd.f32 0.0, %v4824
        %v4826 = vpop.f32.mrf.mxu0
        %4827 = vdwg.mxu0
        %v4828 = vadd.f32 %v4681, %v4747
        %v4829 = vadd.f32 %v4682, %v4760
        %v4830 = vadd.f32 %v4683, %v4773
        %v4831 = vadd.f32 %v4684, %v4786
        %v4832 = vadd.f32 %v4685, %v4799
        %v4833 = vadd.f32 %v4686, %v4812
        %v4834 = vadd.f32 %v4687, %v4825
        %v4835 = vld [vmem:[#allocation5] sm:$0x1]
        %4837 = vset.pattern.permute.xlu0 0
        %4838 = vperm.xlu0 %4837, %v4835
        %v4839 = vpop.permute.xlu0 %4838
        %v4841 = vperm.slane %v4839, 0
        %v4842 = vadd.f32 %v4828, %v4841
        %v4843 = vadd.f32 %v4829, %v4841
        %v4844 = vadd.f32 %v4830, %v4841
        %v4845 = vadd.f32 %v4831, %v4841
        %v4846 = vadd.f32 %v4832, %v4841
        %v4847 = vadd.f32 %v4833, %v4841
        %v4848 = vadd.f32 %v4834, %v4841
        %v4849 = vsub.f32 0.0, %v4842
        %v4850 = vsub.f32 0.0, %v4843
        %v4851 = vsub.f32 0.0, %v4844
        %v4852 = vsub.f32 0.0, %v4845
        %v4853 = vsub.f32 0.0, %v4846
        %v4854 = vsub.f32 0.0, %v4847
        %v4855 = vsub.f32 0.0, %v4848
        %v4856 = vmul.f32 %v4849, 1.442695
        %v4857 = vpow.pop %v4856
        %v4858 = vmul.f32 %v4850, 1.442695
        %v4859 = vpow.pop %v4858
        %v4860 = vmul.f32 %v4851, 1.442695
        %v4861 = vpow.pop %v4860
        %v4862 = vmul.f32 %v4852, 1.442695
        %v4863 = vpow.pop %v4862
        %v4864 = vmul.f32 %v4853, 1.442695
        %v4865 = vpow.pop %v4864
        %v4866 = vmul.f32 %v4854, 1.442695
        %v4867 = vpow.pop %v4866
        %v4868 = vmul.f32 %v4855, 1.442695
        %v4869 = vpow.pop %v4868
        %v4870 = vadd.f32 %v4857, 1.0
        %v4871 = vadd.f32 %v4859, 1.0
        %v4872 = vadd.f32 %v4861, 1.0
        %v4873 = vadd.f32 %v4863, 1.0
        %v4874 = vadd.f32 %v4865, 1.0
        %v4875 = vadd.f32 %v4867, 1.0
        %v4876 = vadd.f32 %v4869, 1.0
        %v4877 = vrcp.pop %v4870
        %v4878 = vmul.f32 %v4870, %v4877
        %v4879 = vsub.f32 1.0, %v4878
        %v4880 = vmul.f32 %v4877, %v4879
        %v4881 = vadd.f32 %v4877, %v4880
        %vm4882 = vweird.f32 %v4870
        %vm4883 = vweird.f32 %v4877
        %vm4884 = vmor %vm4882, %vm4883
        %v4885 = vsel %vm4884, %v4877, %v4881
        %v4886 = vand.u32 2147483647, %v4870
        %vm4887 = vcmp.eq.f32.partialorder %v4886, 8.507059e+37
        %v4888 = vand.u32 %v4870, 2147483648
        %v4889 = vor.u32 1.1754944e-38, %v4888
        %v4890 = vsel %vm4887, %v4889, %v4885
        %v4891 = vmul.f32 1.0, %v4890
        %v4892 = vrcp.pop %v4871
        %v4893 = vmul.f32 %v4871, %v4892
        %v4894 = vsub.f32 1.0, %v4893
        %v4895 = vmul.f32 %v4892, %v4894
        %v4896 = vadd.f32 %v4892, %v4895
        %vm4897 = vweird.f32 %v4871
        %vm4898 = vweird.f32 %v4892
        %vm4899 = vmor %vm4897, %vm4898
        %v4900 = vsel %vm4899, %v4892, %v4896
        %v4901 = vand.u32 2147483647, %v4871
        %vm4902 = vcmp.eq.f32.partialorder %v4901, 8.507059e+37
        %v4903 = vand.u32 %v4871, 2147483648
        %v4904 = vor.u32 1.1754944e-38, %v4903
        %v4905 = vsel %vm4902, %v4904, %v4900
        %v4906 = vmul.f32 1.0, %v4905
        %v4907 = vrcp.pop %v4872
        %v4908 = vmul.f32 %v4872, %v4907
        %v4909 = vsub.f32 1.0, %v4908
        %v4910 = vmul.f32 %v4907, %v4909
        %v4911 = vadd.f32 %v4907, %v4910
        %vm4912 = vweird.f32 %v4872
        %vm4913 = vweird.f32 %v4907
        %vm4914 = vmor %vm4912, %vm4913
        %v4915 = vsel %vm4914, %v4907, %v4911
        %v4916 = vand.u32 2147483647, %v4872
        %vm4917 = vcmp.eq.f32.partialorder %v4916, 8.507059e+37
        %v4918 = vand.u32 %v4872, 2147483648
        %v4919 = vor.u32 1.1754944e-38, %v4918
        %v4920 = vsel %vm4917, %v4919, %v4915
        %v4921 = vmul.f32 1.0, %v4920
        %v4922 = vrcp.pop %v4873
        %v4923 = vmul.f32 %v4873, %v4922
        %v4924 = vsub.f32 1.0, %v4923
        %v4925 = vmul.f32 %v4922, %v4924
        %v4926 = vadd.f32 %v4922, %v4925
        %vm4927 = vweird.f32 %v4873
        %vm4928 = vweird.f32 %v4922
        %vm4929 = vmor %vm4927, %vm4928
        %v4930 = vsel %vm4929, %v4922, %v4926
        %v4931 = vand.u32 2147483647, %v4873
        %vm4932 = vcmp.eq.f32.partialorder %v4931, 8.507059e+37
        %v4933 = vand.u32 %v4873, 2147483648
        %v4934 = vor.u32 1.1754944e-38, %v4933
        %v4935 = vsel %vm4932, %v4934, %v4930
        %v4936 = vmul.f32 1.0, %v4935
        %v4937 = vrcp.pop %v4874
        %v4938 = vmul.f32 %v4874, %v4937
        %v4939 = vsub.f32 1.0, %v4938
        %v4940 = vmul.f32 %v4937, %v4939
        %v4941 = vadd.f32 %v4937, %v4940
        %vm4942 = vweird.f32 %v4874
        %vm4943 = vweird.f32 %v4937
        %vm4944 = vmor %vm4942, %vm4943
        %v4945 = vsel %vm4944, %v4937, %v4941
        %v4946 = vand.u32 2147483647, %v4874
        %vm4947 = vcmp.eq.f32.partialorder %v4946, 8.507059e+37
        %v4948 = vand.u32 %v4874, 2147483648
        %v4949 = vor.u32 1.1754944e-38, %v4948
        %v4950 = vsel %vm4947, %v4949, %v4945
        %v4951 = vmul.f32 1.0, %v4950
        %v4952 = vrcp.pop %v4875
        %v4953 = vmul.f32 %v4875, %v4952
        %v4954 = vsub.f32 1.0, %v4953
        %v4955 = vmul.f32 %v4952, %v4954
        %v4956 = vadd.f32 %v4952, %v4955
        %vm4957 = vweird.f32 %v4875
        %vm4958 = vweird.f32 %v4952
        %vm4959 = vmor %vm4957, %vm4958
        %v4960 = vsel %vm4959, %v4952, %v4956
        %v4961 = vand.u32 2147483647, %v4875
        %vm4962 = vcmp.eq.f32.partialorder %v4961, 8.507059e+37
        %v4963 = vand.u32 %v4875, 2147483648
        %v4964 = vor.u32 1.1754944e-38, %v4963
        %v4965 = vsel %vm4962, %v4964, %v4960
        %v4966 = vmul.f32 1.0, %v4965
        %v4967 = vrcp.pop %v4876
        %v4968 = vmul.f32 %v4876, %v4967
        %v4969 = vsub.f32 1.0, %v4968
        %v4970 = vmul.f32 %v4967, %v4969
        %v4971 = vadd.f32 %v4967, %v4970
        %vm4972 = vweird.f32 %v4876
        %vm4973 = vweird.f32 %v4967
        %vm4974 = vmor %vm4972, %vm4973
        %v4975 = vsel %vm4974, %v4967, %v4971
        %v4976 = vand.u32 2147483647, %v4876
        %vm4977 = vcmp.eq.f32.partialorder %v4976, 8.507059e+37
        %v4978 = vand.u32 %v4876, 2147483648
        %v4979 = vor.u32 1.1754944e-38, %v4978
        %v4980 = vsel %vm4977, %v4979, %v4975
        %v4981 = vmul.f32 1.0, %v4980
        %v4989 = vrot.slane %v4906, 7
        %v4990 = vrot.slane %v4921, 6
        %v4991 = vrot.slane %v4936, 5
        %v4992 = vrot.slane %v4951, 4
        %v4993 = vrot.slane %v4966, 3
        %v4994 = vrot.slane %v4981, 2
        %v4995 = vsel %vm502, %v4891, %v4989
        %vm4996 = vcmask 1042434
        %v4997 = vsel %vm4996, %v4990, %v4991
        %vm4998 = vcmask 1041408
        %v4999 = vsel %vm4998, %v4995, %v4997
        %vm5000 = vcmask 1044484
        %v5001 = vsel %vm5000, %v4992, %v4993
        %vm5002 = vcmask 1045508
        %v5003 = vsel %vm5002, %v5001, %v4994
        %v5004 = vsel %vm2098, %v4999, %v5003
        %v5006 = vlaneseq
        %vm5007 = vcmp.ge.s32.totalorder %v5006, 0
        %vm5008 = vcmp.lt.s32.totalorder %v5006, 840
        %vm5009 = vmand %vm5007, %vm5008
        %5010 = vst.msk [vmem:[%s409] sm:$0x7f] %vm5009, %v5004
        %p5011 = scmp.lt.s32.totalorder %s25, 1
        %s5012 = scalar_select %p5011, %s25, 1
        %s5013 = smul.addr %s5012, 7
        %s5014 = scalar_lea.vmem %s10, %s5013
        // Predicated region
        $region73: #{gnet_forward.3} parent=59 // pred_check
          %p5015 = pneg %p258
        $region74: #{gnet_forward.3} parent=59 // pred_check_branch
          %5017 = sbr.rel (%p5015) target = $region76
        $region75: #{gnet_forward.3} parent=59 // pred_region
          _
        $region76: #{gnet_forward.3} parent=59 // pred_fallthru
          _
      $region60: #{gnet_forward.3} parent=5 // pred_fallthru
        _
      %p5018 = scmp.le.s32.totalorder 2, %s20
      // Predicated region
      $region77: #{gnet_forward.3} parent=5 // pred_check
        %p5019 = pneg %p5018
      $region78: #{gnet_forward.3} parent=5 // pred_check_branch
        %5021 = sbr.rel (%p5019) target = $region80
      $region79: #{gnet_forward.3} parent=5 // pred_region
        %s5022 = ssub.s32 %s20, 2
        // Predicated region
        $region81: #{gnet_forward.3} parent=79 // pred_check
          %p5023 = pneg %p264
        $region82: #{gnet_forward.3} parent=79 // pred_check_branch
          %5025 = sbr.rel (%p5023) target = $region84
        $region83: #{gnet_forward.3} parent=79 // pred_region
          %p5026 = scmp.lt.s32.totalorder %s26, 1
          %s5027 = scalar_select %p5026, %s26, 1
          %s5028 = smul.addr %s5027, 7
          %s5029 = scalar_lea.vmem %s10, %s5028
        $region84: #{gnet_forward.3} parent=79 // pred_fallthru
          _
      $region80: #{gnet_forward.3} parent=5 // pred_fallthru
        _
    $region6: #{gnet_forward.3} parent=1 // loop_footer
      %s24 = sadd.s32 1, %s20
    $region7: #{gnet_forward.3} parent=1 // loop_footer_branch
      %19 = sbr.rel target = $region3
    $region8: #{gnet_forward.3} parent=1 // loop_exit
      _
    %5030 = vsyncpa [#allocation7], 1
    %s5031 = scalar_lea.sflag [#allocation7], 1
    %5032 = vsyncpa %s5031, 1
    %5033 = vsyncpa [#allocation9], 1

</llo_original>
